<compile_context>
chip_gen: v5e
topology: v5e:2x2
jax: 0.10.0
libtpu: 0.0.40
codegen_flags: <defaults>
</compile_context>

<pallas_src>
import functools

import jax
import jax.numpy as jnp
from jax.experimental import pallas as pl
from jax.experimental.pallas import tpu as pltpu


def _ru(x, m):
    return (x + m - 1) // m * m


# ----------------------------- fused layer kernel ----------------------------

def _dense_layer_kernel(x_ref, w_ref, pb_ref, m_ref, o_ref, *, dil, f_pad, f, t, eps):
    """One DilatedDenseNet layer for one batch element.

    x_ref : (1, Cin, T*F_pad) f32   activations in the zero-padded flattened frame
    w_ref : (6, Cout, Cin)    bf16  conv taps, index 3*kh + kw
    pb_ref: (Cout, 4)         f32   columns = [conv bias, gamma, beta, prelu alpha]
    m_ref : (1, T*F_pad)      f32   1.0 on valid F columns, 0.0 on pad columns
    o_ref : (1, Cout, T*F_pad) f32
    """
    x = x_ref[0]                                   # (Cin, T*F_pad) f32
    cin, tfp = x.shape
    cout = o_ref.shape[1]
    row_skip = dil * f_pad

    def conv_row(kh):
        # Sum of the three kernel-width taps for kernel-height index kh.
        part = None
        for kw in range(3):
            shift = ((1 - kh) * row_skip + (1 - kw)) % tfp
            xs = x if shift == 0 else pltpu.roll(x, shift, axis=1)      # XLU lane roll
            p = jnp.dot(w_ref[3 * kh + kw], xs.astype(jnp.bfloat16),
                        preferred_element_type=jnp.float32)             # MXU, f32 acc
            part = p if part is None else part + p
        return part

    acc = conv_row(1)                              # current-time-row taps
    if dil < t:                                    # previous-time-row (dilated) taps
        prev = conv_row(0)
        # Output rows t < dil only see the zero top padding for these taps; in the
        # flattened frame those are lanes p < dil*F_pad (also covers roll wrap-around).
        ok = jax.lax.broadcasted_iota(jnp.int32, (cout, tfp), 1) >= row_skip
        acc = acc + jnp.where(ok, prev, 0.0)

    # Fused epilogue: bias + InstanceNorm2d(affine=True) + PReLU (all per channel).
    bias = pb_ref[:, 0:1]
    gamma = pb_ref[:, 1:2]
    beta = pb_ref[:, 2:3]
    alpha = pb_ref[:, 3:4]
    m = m_ref[...]                                 # (1, T*F_pad)

    acc = acc + bias
    inv_cnt = 1.0 / float(t * f)
    am = acc * m                                   # masked values (pad cols -> 0)
    mean = jnp.sum(am, axis=1, keepdims=True) * inv_cnt
    var = jnp.sum(am * am, axis=1, keepdims=True) * inv_cnt - mean * mean
    scale = gamma * jax.lax.rsqrt(var + eps)       # fold gamma into the scale
    off = beta - mean * scale
    y = acc * scale + off
    y = jnp.where(y >= 0.0, y, alpha * y)          # PReLU
    o_ref[0] = y * m                               # keep pad columns exactly zero


def _dense_layer(x, wt, pb, mask, *, dil, t, f, f_pad, eps=1e-5):
    b, cin, tfp = x.shape
    cout = wt.shape[1]
    taps = 6 if dil < t else 3
    cost = pl.CostEstimate(
        flops=2 * b * cout * cin * taps * tfp,
        transcendentals=b * cout,
        bytes_accessed=4 * x.size + 4 * b * cout * tfp + 2 * wt.size
                       + 4 * pb.size + 4 * mask.size,
    )
    kern = functools.partial(_dense_layer_kernel, dil=dil, f_pad=f_pad, f=f, t=t, eps=eps)
    return pl.pallas_call(
        kern,
        out_shape=jax.ShapeDtypeStruct((b, cout, tfp), jnp.float32),
        grid=(b,),
        in_specs=[pl.BlockSpec((1, cin, tfp), lambda i: (i, 0, 0)),
                  pl.BlockSpec((6, cout, cin), lambda i: (0, 0, 0)),
                  pl.BlockSpec((cout, 4), lambda i: (0, 0)),
                  pl.BlockSpec((1, tfp), lambda i: (0, 0))],
        out_specs=pl.BlockSpec((1, cout, tfp), lambda i: (i, 0, 0)),
        compiler_params=pltpu.CompilerParams(dimension_semantics=("parallel",)),
        cost_estimate=cost,
    )(x, wt, pb, mask)


# ------------------------------ forward wrapper ------------------------------

def dilated_dense_net(params, x, depth=4):
    """x: (B, C, T, F) NCHW float32 -> (B, C, T, F) float32."""
    b, c, t, f = x.shape
    f_pad = _ru(f + 2, 8)
    tfp = t * f_pad

    # One-time layout transform into the persistent zero-padded flattened frame:
    # padded column 0 / F+1 are the conv width padding, remaining columns stay 0.
    skip = jnp.pad(x, ((0, 0), (0, 0), (0, 0), (1, f_pad - f - 1))).reshape(b, c, tfp)
    col = jnp.arange(f_pad)
    mask = jnp.tile(((col >= 1) & (col <= f)).astype(jnp.float32), t)[None, :]

    out = skip
    for i in range(depth):
        dil = 2 ** i
        w = params[f'conv{i}_w']                                   # (C, C*(i+1), 2, 3)
        wt = jnp.transpose(w, (2, 3, 0, 1)).reshape(6, c, c * (i + 1)).astype(jnp.bfloat16)
        pb = jnp.stack([params[f'conv{i}_b'], params[f'norm{i}_g'],
                        params[f'norm{i}_b'], params[f'prelu{i}_a']], axis=1)  # (C, 4)
        out = _dense_layer(skip, wt, pb, mask, dil=dil, t=t, f=f, f_pad=f_pad)
        if i + 1 < depth:
            skip = jnp.concatenate([out, skip], axis=1)            # dense skip (torch.cat)
    return out.reshape(b, c, t, f_pad)[:, :, :, 1:f + 1]


# ------------------------------ pure-JAX reference ---------------------------

def dilated_dense_net_ref(params, x, depth=4):
    skip = x
    out = x
    for i in range(depth):
        dil = 2 ** i
        h = jnp.pad(skip, ((0, 0), (0, 0), (dil, 0), (1, 1)))
        h = jax.lax.conv_general_dilated(
            h, params[f'conv{i}_w'], window_strides=(1, 1), padding='VALID',
            rhs_dilation=(dil, 1), dimension_numbers=('NCHW', 'OIHW', 'NCHW'),
            precision=jax.lax.Precision.HIGHEST)
        h = h + params[f'conv{i}_b'][None, :, None, None]
        mean = jnp.mean(h, axis=(2, 3), keepdims=True)
        var = jnp.mean(jnp.square(h - mean), axis=(2, 3), keepdims=True)
        h = (h - mean) * jax.lax.rsqrt(var + 1e-5)
        h = h * params[f'norm{i}_g'][None, :, None, None] \
            + params[f'norm{i}_b'][None, :, None, None]
        a = params[f'prelu{i}_a'][None, :, None, None]
        out = jnp.where(h >= 0, h, a * h)
        skip = jnp.concatenate([out, skip], axis=1)
    return out


# ---------------------------------- main --------------------------------------

if __name__ == "__main__":
    depth = 4
    B, C, T, F = 2, 16, 16, 17          # small NCHW spectrogram-like input

    key = jax.random.PRNGKey(0)
    params = {}
    for i in range(depth):
        key, kw, kb, kg, kbt = jax.random.split(key, 5)
        cin = C * (i + 1)
        params[f'conv{i}_w'] = 0.1 * jax.random.normal(kw, (C, cin, 2, 3), jnp.float32)
        params[f'conv{i}_b'] = 0.02 * jax.random.normal(kb, (C,), jnp.float32)
        params[f'norm{i}_g'] = 1.0 + 0.1 * jax.random.normal(kg, (C,), jnp.float32)
        params[f'norm{i}_b'] = 0.05 * jax.random.normal(kbt, (C,), jnp.float32)
        params[f'prelu{i}_a'] = jnp.full((C,), 0.25, jnp.float32)
    key, kx = jax.random.split(key)
    x = jax.random.normal(kx, (B, C, T, F), jnp.float32)

    fwd = jax.jit(functools.partial(dilated_dense_net, depth=depth))
    out = jax.block_until_ready(fwd(params, x))

    assert out.shape == (B, C, T, F), out.shape
    assert bool(jnp.all(jnp.isfinite(out))), "non-finite output"

    # Correctness vs a pure-JAX reference (tolerance covers bf16 MXU inputs).
    ref = dilated_dense_net_ref(params, x, depth=depth)
    err = float(jnp.max(jnp.abs(out - ref)))
    assert err < 0.2, f"kernel deviates from reference: max abs err = {err}"

    print("KERNEL_OK")
</pallas_src>

<mosaic_0001>
module attributes {stable_mosaic.version = 11 : i64} {
  func.func @_dense_layer_kernel(%arg0: i32, %arg1: memref<1x16x384xf32, #tpu.memory_space<vmem>>, %arg2: memref<6x16x16xbf16, #tpu.memory_space<vmem>>, %arg3: memref<16x4xf32, #tpu.memory_space<vmem>>, %arg4: memref<1x384xf32, #tpu.memory_space<vmem>>, %arg5: memref<1x16x384xf32, #tpu.memory_space<vmem>>) attributes {dimension_semantics = [#tpu.dimension_semantics<parallel>], iteration_bounds = array<i64: 2>, scalar_prefetch = 0 : i64, scratch_operands = 0 : i64, tpu.core_type = #tpu.core_type<tc>, window_params = [{transform_indices = @transform_0, window_bounds = array<i64: 1, 16, 384>}, {pipeline_mode = #tpu.pipeline_mode<synchronous>, transform_indices = @transform_1, window_bounds = array<i64: 6, 16, 16>}, {pipeline_mode = #tpu.pipeline_mode<synchronous>, transform_indices = @transform_2, window_bounds = array<i64: 16, 4>}, {pipeline_mode = #tpu.pipeline_mode<synchronous>, transform_indices = @transform_3, window_bounds = array<i64: 1, 384>}, {transform_indices = @transform_4, window_bounds = array<i64: 1, 16, 384>}]} {
    %c0 = arith.constant 0 : index
    %c0_0 = arith.constant 0 : index
    %c0_1 = arith.constant 0 : index
    %0 = vector.load %arg1[%c0, %c0_0, %c0_1] : memref<1x16x384xf32, #tpu.memory_space<vmem>>, vector<1x16x384xf32>
    %1 = vector.shape_cast %0 : vector<1x16x384xf32> to vector<16x384xf32>
    %c1_i32 = arith.constant 1 : i32
    %2 = tpu.dynamic_rotate %1 by %c1_i32 dim 1 : vector<16x384xf32>, i32 -> vector<16x384xf32>
    %c3 = arith.constant 3 : index
    %c0_2 = arith.constant 0 : index
    %c0_3 = arith.constant 0 : index
    %3 = vector.load %arg2[%c3, %c0_2, %c0_3] : memref<6x16x16xbf16, #tpu.memory_space<vmem>>, vector<1x16x16xbf16>
    %4 = vector.shape_cast %3 : vector<1x16x16xbf16> to vector<16x16xbf16>
    %5 = arith.truncf %2 : vector<16x384xf32> to vector<16x384xbf16>
    %cst = arith.constant dense<0.000000e+00> : vector<16x384xf32>
    %6 = tpu.matmul %4, %5, %cst {dimension_numbers = #tpu.dot_dimension_numbers<[1], [0], [0], [1], [0, 0, 1, 1], [], []>} : vector<16x16xbf16>, vector<16x384xbf16>, vector<16x384xf32> -> vector<16x384xf32>
    %c4 = arith.constant 4 : index
    %c0_4 = arith.constant 0 : index
    %c0_5 = arith.constant 0 : index
    %7 = vector.load %arg2[%c4, %c0_4, %c0_5] : memref<6x16x16xbf16, #tpu.memory_space<vmem>>, vector<1x16x16xbf16>
    %8 = vector.shape_cast %7 : vector<1x16x16xbf16> to vector<16x16xbf16>
    %9 = arith.truncf %1 : vector<16x384xf32> to vector<16x384xbf16>
    %cst_6 = arith.constant dense<0.000000e+00> : vector<16x384xf32>
    %10 = tpu.matmul %8, %9, %cst_6 {dimension_numbers = #tpu.dot_dimension_numbers<[1], [0], [0], [1], [0, 0, 1, 1], [], []>} : vector<16x16xbf16>, vector<16x384xbf16>, vector<16x384xf32> -> vector<16x384xf32>
    %11 = arith.addf %6, %10 : vector<16x384xf32>
    %c383_i32 = arith.constant 383 : i32
    %12 = tpu.dynamic_rotate %1 by %c383_i32 dim 1 : vector<16x384xf32>, i32 -> vector<16x384xf32>
    %c5 = arith.constant 5 : index
    %c0_7 = arith.constant 0 : index
    %c0_8 = arith.constant 0 : index
    %13 = vector.load %arg2[%c5, %c0_7, %c0_8] : memref<6x16x16xbf16, #tpu.memory_space<vmem>>, vector<1x16x16xbf16>
    %14 = vector.shape_cast %13 : vector<1x16x16xbf16> to vector<16x16xbf16>
    %15 = arith.truncf %12 : vector<16x384xf32> to vector<16x384xbf16>
    %cst_9 = arith.constant dense<0.000000e+00> : vector<16x384xf32>
    %16 = tpu.matmul %14, %15, %cst_9 {dimension_numbers = #tpu.dot_dimension_numbers<[1], [0], [0], [1], [0, 0, 1, 1], [], []>} : vector<16x16xbf16>, vector<16x384xbf16>, vector<16x384xf32> -> vector<16x384xf32>
    %17 = arith.addf %11, %16 : vector<16x384xf32>
    %c25_i32 = arith.constant 25 : i32
    %18 = tpu.dynamic_rotate %1 by %c25_i32 dim 1 : vector<16x384xf32>, i32 -> vector<16x384xf32>
    %c0_10 = arith.constant 0 : index
    %c0_11 = arith.constant 0 : index
    %c0_12 = arith.constant 0 : index
    %19 = vector.load %arg2[%c0_10, %c0_11, %c0_12] : memref<6x16x16xbf16, #tpu.memory_space<vmem>>, vector<1x16x16xbf16>
    %20 = vector.shape_cast %19 : vector<1x16x16xbf16> to vector<16x16xbf16>
    %21 = arith.truncf %18 : vector<16x384xf32> to vector<16x384xbf16>
    %cst_13 = arith.constant dense<0.000000e+00> : vector<16x384xf32>
    %22 = tpu.matmul %20, %21, %cst_13 {dimension_numbers = #tpu.dot_dimension_numbers<[1], [0], [0], [1], [0, 0, 1, 1], [], []>} : vector<16x16xbf16>, vector<16x384xbf16>, vector<16x384xf32> -> vector<16x384xf32>
    %c24_i32 = arith.constant 24 : i32
    %23 = tpu.dynamic_rotate %1 by %c24_i32 dim 1 : vector<16x384xf32>, i32 -> vector<16x384xf32>
    %c1 = arith.constant 1 : index
    %c0_14 = arith.constant 0 : index
    %c0_15 = arith.constant 0 : index
    %24 = vector.load %arg2[%c1, %c0_14, %c0_15] : memref<6x16x16xbf16, #tpu.memory_space<vmem>>, vector<1x16x16xbf16>
    %25 = vector.shape_cast %24 : vector<1x16x16xbf16> to vector<16x16xbf16>
    %26 = arith.truncf %23 : vector<16x384xf32> to vector<16x384xbf16>
    %cst_16 = arith.constant dense<0.000000e+00> : vector<16x384xf32>
    %27 = tpu.matmul %25, %26, %cst_16 {dimension_numbers = #tpu.dot_dimension_numbers<[1], [0], [0], [1], [0, 0, 1, 1], [], []>} : vector<16x16xbf16>, vector<16x384xbf16>, vector<16x384xf32> -> vector<16x384xf32>
    %28 = arith.addf %22, %27 : vector<16x384xf32>
    %c23_i32 = arith.constant 23 : i32
    %29 = tpu.dynamic_rotate %1 by %c23_i32 dim 1 : vector<16x384xf32>, i32 -> vector<16x384xf32>
    %c2 = arith.constant 2 : index
    %c0_17 = arith.constant 0 : index
    %c0_18 = arith.constant 0 : index
    %30 = vector.load %arg2[%c2, %c0_17, %c0_18] : memref<6x16x16xbf16, #tpu.memory_space<vmem>>, vector<1x16x16xbf16>
    %31 = vector.shape_cast %30 : vector<1x16x16xbf16> to vector<16x16xbf16>
    %32 = arith.truncf %29 : vector<16x384xf32> to vector<16x384xbf16>
    %cst_19 = arith.constant dense<0.000000e+00> : vector<16x384xf32>
    %33 = tpu.matmul %31, %32, %cst_19 {dimension_numbers = #tpu.dot_dimension_numbers<[1], [0], [0], [1], [0, 0, 1, 1], [], []>} : vector<16x16xbf16>, vector<16x384xbf16>, vector<16x384xf32> -> vector<16x384xf32>
    %34 = arith.addf %28, %33 : vector<16x384xf32>
    %35 = tpu.iota {dimensions = array<i32: 1>} : vector<16x384xi32>
    %c24_i32_20 = arith.constant 24 : i32
    %36 = vector.broadcast %c24_i32_20 : i32 to vector<16x384xi32>
    %37 = arith.cmpi sge, %35, %36 : vector<16x384xi32>
    %cst_21 = arith.constant 0.000000e+00 : f32
    %38 = vector.broadcast %cst_21 : f32 to vector<16x384xf32>
    %39 = arith.select %37, %34, %38 : vector<16x384xi1>, vector<16x384xf32>
    %40 = arith.addf %17, %39 : vector<16x384xf32>
    %c0_22 = arith.constant 0 : index
    %c0_23 = arith.constant 0 : index
    %41 = vector.load %arg3[%c0_22, %c0_23] : memref<16x4xf32, #tpu.memory_space<vmem>>, vector<16x1xf32>
    %c0_24 = arith.constant 0 : index
    %c1_25 = arith.constant 1 : index
    %42 = vector.load %arg3[%c0_24, %c1_25] : memref<16x4xf32, #tpu.memory_space<vmem>>, vector<16x1xf32>
    %c0_26 = arith.constant 0 : index
    %c2_27 = arith.constant 2 : index
    %43 = vector.load %arg3[%c0_26, %c2_27] : memref<16x4xf32, #tpu.memory_space<vmem>>, vector<16x1xf32>
    %c0_28 = arith.constant 0 : index
    %c3_29 = arith.constant 3 : index
    %44 = vector.load %arg3[%c0_28, %c3_29] : memref<16x4xf32, #tpu.memory_space<vmem>>, vector<16x1xf32>
    %c0_30 = arith.constant 0 : index
    %c0_31 = arith.constant 0 : index
    %45 = vector.load %arg4[%c0_30, %c0_31] : memref<1x384xf32, #tpu.memory_space<vmem>>, vector<1x384xf32>
    %46 = vector.broadcast %41 : vector<16x1xf32> to vector<16x384xf32>
    %47 = arith.addf %40, %46 : vector<16x384xf32>
    %48 = vector.broadcast %45 : vector<1x384xf32> to vector<16x384xf32>
    %49 = arith.mulf %47, %48 : vector<16x384xf32>
    %cst_32 = arith.constant dense<0.000000e+00> : vector<16xf32>
    %50 = vector.multi_reduction <add>, %49, %cst_32 [1] : vector<16x384xf32> to vector<16xf32>
    %51 = vector.shape_cast %50 : vector<16xf32> to vector<16x1xf32>
    %cst_33 = arith.constant 0.0036764706 : f32
    %52 = vector.broadcast %cst_33 : f32 to vector<16x1xf32>
    %53 = arith.mulf %51, %52 : vector<16x1xf32>
    %54 = arith.mulf %49, %49 : vector<16x384xf32>
    %cst_34 = arith.constant dense<0.000000e+00> : vector<16xf32>
    %55 = vector.multi_reduction <add>, %54, %cst_34 [1] : vector<16x384xf32> to vector<16xf32>
    %56 = vector.shape_cast %55 : vector<16xf32> to vector<16x1xf32>
    %cst_35 = arith.constant 0.0036764706 : f32
    %57 = vector.broadcast %cst_35 : f32 to vector<16x1xf32>
    %58 = arith.mulf %56, %57 : vector<16x1xf32>
    %59 = arith.mulf %53, %53 : vector<16x1xf32>
    %60 = arith.subf %58, %59 : vector<16x1xf32>
    %cst_36 = arith.constant 9.99999974E-6 : f32
    %61 = vector.broadcast %cst_36 : f32 to vector<16x1xf32>
    %62 = arith.addf %60, %61 : vector<16x1xf32>
    %63 = math.rsqrt %62 : vector<16x1xf32>
    %64 = arith.mulf %42, %63 : vector<16x1xf32>
    %65 = arith.mulf %53, %64 : vector<16x1xf32>
    %66 = arith.subf %43, %65 : vector<16x1xf32>
    %67 = vector.broadcast %64 : vector<16x1xf32> to vector<16x384xf32>
    %68 = arith.mulf %47, %67 : vector<16x384xf32>
    %69 = vector.broadcast %66 : vector<16x1xf32> to vector<16x384xf32>
    %70 = arith.addf %68, %69 : vector<16x384xf32>
    %cst_37 = arith.constant 0.000000e+00 : f32
    %71 = vector.broadcast %cst_37 : f32 to vector<16x384xf32>
    %72 = arith.cmpf oge, %70, %71 : vector<16x384xf32>
    %73 = vector.broadcast %44 : vector<16x1xf32> to vector<16x384xf32>
    %74 = arith.mulf %73, %70 : vector<16x384xf32>
    %75 = arith.select %72, %70, %74 : vector<16x384xi1>, vector<16x384xf32>
    %76 = vector.broadcast %45 : vector<1x384xf32> to vector<16x384xf32>
    %77 = arith.mulf %75, %76 : vector<16x384xf32>
    %c0_38 = arith.constant 0 : index
    %c0_39 = arith.constant 0 : index
    %c0_40 = arith.constant 0 : index
    %78 = vector.load %arg5[%c0_38, %c0_39, %c0_40] : memref<1x16x384xf32, #tpu.memory_space<vmem>>, vector<1x16x384xf32>
    %79 = vector.shape_cast %78 : vector<1x16x384xf32> to vector<16x384xf32>
    %80 = vector.shape_cast %77 : vector<16x384xf32> to vector<1x16x384xf32>
    tpu.vector_store %arg5[%c0_38, %c0_39, %c0_40], %80 {strides = array<i32>} : memref<1x16x384xf32, #tpu.memory_space<vmem>>, vector<1x16x384xf32>,
    return
  }
  func.func @transform_0(%arg0: i32) -> (i32, i32, i32) {
    %c0_i32 = arith.constant 0 : i32
    %c0_i32_0 = arith.constant 0 : i32
    %c0_i32_1 = arith.constant 0 : i32
    return %arg0, %c0_i32, %c0_i32_0 : i32, i32, i32
  }
  func.func @transform_1(%arg0: i32) -> (i32, i32, i32) {
    %c0_i32 = arith.constant 0 : i32
    %c0_i32_0 = arith.constant 0 : i32
    %c0_i32_1 = arith.constant 0 : i32
    %c0_i32_2 = arith.constant 0 : i32
    return %c0_i32, %c0_i32_0, %c0_i32_1 : i32, i32, i32
  }
  func.func @transform_2(%arg0: i32) -> (i32, i32) {
    %c0_i32 = arith.constant 0 : i32
    %c0_i32_0 = arith.constant 0 : i32
    %c0_i32_1 = arith.constant 0 : i32
    return %c0_i32, %c0_i32_0 : i32, i32
  }
  func.func @transform_3(%arg0: i32) -> (i32, i32) {
    %c0_i32 = arith.constant 0 : i32
    %c0_i32_0 = arith.constant 0 : i32
    %c0_i32_1 = arith.constant 0 : i32
    return %c0_i32, %c0_i32_0 : i32, i32
  }
  func.func @transform_4(%arg0: i32) -> (i32, i32, i32) {
    %c0_i32 = arith.constant 0 : i32
    %c0_i32_0 = arith.constant 0 : i32
    %c0_i32_1 = arith.constant 0 : i32
    return %arg0, %c0_i32, %c0_i32_0 : i32, i32, i32
  }
}

module attributes {stable_mosaic.version = 11 : i64} {
  func.func @_dense_layer_kernel(%arg0: i32, %arg1: memref<1x32x384xf32, #tpu.memory_space<vmem>>, %arg2: memref<6x16x32xbf16, #tpu.memory_space<vmem>>, %arg3: memref<16x4xf32, #tpu.memory_space<vmem>>, %arg4: memref<1x384xf32, #tpu.memory_space<vmem>>, %arg5: memref<1x16x384xf32, #tpu.memory_space<vmem>>) attributes {dimension_semantics = [#tpu.dimension_semantics<parallel>], iteration_bounds = array<i64: 2>, scalar_prefetch = 0 : i64, scratch_operands = 0 : i64, tpu.core_type = #tpu.core_type<tc>, window_params = [{transform_indices = @transform_0, window_bounds = array<i64: 1, 32, 384>}, {pipeline_mode = #tpu.pipeline_mode<synchronous>, transform_indices = @transform_1, window_bounds = array<i64: 6, 16, 32>}, {pipeline_mode = #tpu.pipeline_mode<synchronous>, transform_indices = @transform_2, window_bounds = array<i64: 16, 4>}, {pipeline_mode = #tpu.pipeline_mode<synchronous>, transform_indices = @transform_3, window_bounds = array<i64: 1, 384>}, {transform_indices = @transform_4, window_bounds = array<i64: 1, 16, 384>}]} {
    %c0 = arith.constant 0 : index
    %c0_0 = arith.constant 0 : index
    %c0_1 = arith.constant 0 : index
    %0 = vector.load %arg1[%c0, %c0_0, %c0_1] : memref<1x32x384xf32, #tpu.memory_space<vmem>>, vector<1x32x384xf32>
    %1 = vector.shape_cast %0 : vector<1x32x384xf32> to vector<32x384xf32>
    %c1_i32 = arith.constant 1 : i32
    %2 = tpu.dynamic_rotate %1 by %c1_i32 dim 1 : vector<32x384xf32>, i32 -> vector<32x384xf32>
    %c3 = arith.constant 3 : index
    %c0_2 = arith.constant 0 : index
    %c0_3 = arith.constant 0 : index
    %3 = vector.load %arg2[%c3, %c0_2, %c0_3] : memref<6x16x32xbf16, #tpu.memory_space<vmem>>, vector<1x16x32xbf16>
    %4 = vector.shape_cast %3 : vector<1x16x32xbf16> to vector<16x32xbf16>
    %5 = arith.truncf %2 : vector<32x384xf32> to vector<32x384xbf16>
    %cst = arith.constant dense<0.000000e+00> : vector<16x384xf32>
    %6 = tpu.matmul %4, %5, %cst {dimension_numbers = #tpu.dot_dimension_numbers<[1], [0], [0], [1], [0, 0, 1, 1], [], []>} : vector<16x32xbf16>, vector<32x384xbf16>, vector<16x384xf32> -> vector<16x384xf32>
    %c4 = arith.constant 4 : index
    %c0_4 = arith.constant 0 : index
    %c0_5 = arith.constant 0 : index
    %7 = vector.load %arg2[%c4, %c0_4, %c0_5] : memref<6x16x32xbf16, #tpu.memory_space<vmem>>, vector<1x16x32xbf16>
    %8 = vector.shape_cast %7 : vector<1x16x32xbf16> to vector<16x32xbf16>
    %9 = arith.truncf %1 : vector<32x384xf32> to vector<32x384xbf16>
    %cst_6 = arith.constant dense<0.000000e+00> : vector<16x384xf32>
    %10 = tpu.matmul %8, %9, %cst_6 {dimension_numbers = #tpu.dot_dimension_numbers<[1], [0], [0], [1], [0, 0, 1, 1], [], []>} : vector<16x32xbf16>, vector<32x384xbf16>, vector<16x384xf32> -> vector<16x384xf32>
    %11 = arith.addf %6, %10 : vector<16x384xf32>
    %c383_i32 = arith.constant 383 : i32
    %12 = tpu.dynamic_rotate %1 by %c383_i32 dim 1 : vector<32x384xf32>, i32 -> vector<32x384xf32>
    %c5 = arith.constant 5 : index
    %c0_7 = arith.constant 0 : index
    %c0_8 = arith.constant 0 : index
    %13 = vector.load %arg2[%c5, %c0_7, %c0_8] : memref<6x16x32xbf16, #tpu.memory_space<vmem>>, vector<1x16x32xbf16>
    %14 = vector.shape_cast %13 : vector<1x16x32xbf16> to vector<16x32xbf16>
    %15 = arith.truncf %12 : vector<32x384xf32> to vector<32x384xbf16>
    %cst_9 = arith.constant dense<0.000000e+00> : vector<16x384xf32>
    %16 = tpu.matmul %14, %15, %cst_9 {dimension_numbers = #tpu.dot_dimension_numbers<[1], [0], [0], [1], [0, 0, 1, 1], [], []>} : vector<16x32xbf16>, vector<32x384xbf16>, vector<16x384xf32> -> vector<16x384xf32>
    %17 = arith.addf %11, %16 : vector<16x384xf32>
    %c49_i32 = arith.constant 49 : i32
    %18 = tpu.dynamic_rotate %1 by %c49_i32 dim 1 : vector<32x384xf32>, i32 -> vector<32x384xf32>
    %c0_10 = arith.constant 0 : index
    %c0_11 = arith.constant 0 : index
    %c0_12 = arith.constant 0 : index
    %19 = vector.load %arg2[%c0_10, %c0_11, %c0_12] : memref<6x16x32xbf16, #tpu.memory_space<vmem>>, vector<1x16x32xbf16>
    %20 = vector.shape_cast %19 : vector<1x16x32xbf16> to vector<16x32xbf16>
    %21 = arith.truncf %18 : vector<32x384xf32> to vector<32x384xbf16>
    %cst_13 = arith.constant dense<0.000000e+00> : vector<16x384xf32>
    %22 = tpu.matmul %20, %21, %cst_13 {dimension_numbers = #tpu.dot_dimension_numbers<[1], [0], [0], [1], [0, 0, 1, 1], [], []>} : vector<16x32xbf16>, vector<32x384xbf16>, vector<16x384xf32> -> vector<16x384xf32>
    %c48_i32 = arith.constant 48 : i32
    %23 = tpu.dynamic_rotate %1 by %c48_i32 dim 1 : vector<32x384xf32>, i32 -> vector<32x384xf32>
    %c1 = arith.constant 1 : index
    %c0_14 = arith.constant 0 : index
    %c0_15 = arith.constant 0 : index
    %24 = vector.load %arg2[%c1, %c0_14, %c0_15] : memref<6x16x32xbf16, #tpu.memory_space<vmem>>, vector<1x16x32xbf16>
    %25 = vector.shape_cast %24 : vector<1x16x32xbf16> to vector<16x32xbf16>
    %26 = arith.truncf %23 : vector<32x384xf32> to vector<32x384xbf16>
    %cst_16 = arith.constant dense<0.000000e+00> : vector<16x384xf32>
    %27 = tpu.matmul %25, %26, %cst_16 {dimension_numbers = #tpu.dot_dimension_numbers<[1], [0], [0], [1], [0, 0, 1, 1], [], []>} : vector<16x32xbf16>, vector<32x384xbf16>, vector<16x384xf32> -> vector<16x384xf32>
    %28 = arith.addf %22, %27 : vector<16x384xf32>
    %c47_i32 = arith.constant 47 : i32
    %29 = tpu.dynamic_rotate %1 by %c47_i32 dim 1 : vector<32x384xf32>, i32 -> vector<32x384xf32>
    %c2 = arith.constant 2 : index
    %c0_17 = arith.constant 0 : index
    %c0_18 = arith.constant 0 : index
    %30 = vector.load %arg2[%c2, %c0_17, %c0_18] : memref<6x16x32xbf16, #tpu.memory_space<vmem>>, vector<1x16x32xbf16>
    %31 = vector.shape_cast %30 : vector<1x16x32xbf16> to vector<16x32xbf16>
    %32 = arith.truncf %29 : vector<32x384xf32> to vector<32x384xbf16>
    %cst_19 = arith.constant dense<0.000000e+00> : vector<16x384xf32>
    %33 = tpu.matmul %31, %32, %cst_19 {dimension_numbers = #tpu.dot_dimension_numbers<[1], [0], [0], [1], [0, 0, 1, 1], [], []>} : vector<16x32xbf16>, vector<32x384xbf16>, vector<16x384xf32> -> vector<16x384xf32>
    %34 = arith.addf %28, %33 : vector<16x384xf32>
    %35 = tpu.iota {dimensions = array<i32: 1>} : vector<16x384xi32>
    %c48_i32_20 = arith.constant 48 : i32
    %36 = vector.broadcast %c48_i32_20 : i32 to vector<16x384xi32>
    %37 = arith.cmpi sge, %35, %36 : vector<16x384xi32>
    %cst_21 = arith.constant 0.000000e+00 : f32
    %38 = vector.broadcast %cst_21 : f32 to vector<16x384xf32>
    %39 = arith.select %37, %34, %38 : vector<16x384xi1>, vector<16x384xf32>
    %40 = arith.addf %17, %39 : vector<16x384xf32>
    %c0_22 = arith.constant 0 : index
    %c0_23 = arith.constant 0 : index
    %41 = vector.load %arg3[%c0_22, %c0_23] : memref<16x4xf32, #tpu.memory_space<vmem>>, vector<16x1xf32>
    %c0_24 = arith.constant 0 : index
    %c1_25 = arith.constant 1 : index
    %42 = vector.load %arg3[%c0_24, %c1_25] : memref<16x4xf32, #tpu.memory_space<vmem>>, vector<16x1xf32>
    %c0_26 = arith.constant 0 : index
    %c2_27 = arith.constant 2 : index
    %43 = vector.load %arg3[%c0_26, %c2_27] : memref<16x4xf32, #tpu.memory_space<vmem>>, vector<16x1xf32>
    %c0_28 = arith.constant 0 : index
    %c3_29 = arith.constant 3 : index
    %44 = vector.load %arg3[%c0_28, %c3_29] : memref<16x4xf32, #tpu.memory_space<vmem>>, vector<16x1xf32>
    %c0_30 = arith.constant 0 : index
    %c0_31 = arith.constant 0 : index
    %45 = vector.load %arg4[%c0_30, %c0_31] : memref<1x384xf32, #tpu.memory_space<vmem>>, vector<1x384xf32>
    %46 = vector.broadcast %41 : vector<16x1xf32> to vector<16x384xf32>
    %47 = arith.addf %40, %46 : vector<16x384xf32>
    %48 = vector.broadcast %45 : vector<1x384xf32> to vector<16x384xf32>
    %49 = arith.mulf %47, %48 : vector<16x384xf32>
    %cst_32 = arith.constant dense<0.000000e+00> : vector<16xf32>
    %50 = vector.multi_reduction <add>, %49, %cst_32 [1] : vector<16x384xf32> to vector<16xf32>
    %51 = vector.shape_cast %50 : vector<16xf32> to vector<16x1xf32>
    %cst_33 = arith.constant 0.0036764706 : f32
    %52 = vector.broadcast %cst_33 : f32 to vector<16x1xf32>
    %53 = arith.mulf %51, %52 : vector<16x1xf32>
    %54 = arith.mulf %49, %49 : vector<16x384xf32>
    %cst_34 = arith.constant dense<0.000000e+00> : vector<16xf32>
    %55 = vector.multi_reduction <add>, %54, %cst_34 [1] : vector<16x384xf32> to vector<16xf32>
    %56 = vector.shape_cast %55 : vector<16xf32> to vector<16x1xf32>
    %cst_35 = arith.constant 0.0036764706 : f32
    %57 = vector.broadcast %cst_35 : f32 to vector<16x1xf32>
    %58 = arith.mulf %56, %57 : vector<16x1xf32>
    %59 = arith.mulf %53, %53 : vector<16x1xf32>
    %60 = arith.subf %58, %59 : vector<16x1xf32>
    %cst_36 = arith.constant 9.99999974E-6 : f32
    %61 = vector.broadcast %cst_36 : f32 to vector<16x1xf32>
    %62 = arith.addf %60, %61 : vector<16x1xf32>
    %63 = math.rsqrt %62 : vector<16x1xf32>
    %64 = arith.mulf %42, %63 : vector<16x1xf32>
    %65 = arith.mulf %53, %64 : vector<16x1xf32>
    %66 = arith.subf %43, %65 : vector<16x1xf32>
    %67 = vector.broadcast %64 : vector<16x1xf32> to vector<16x384xf32>
    %68 = arith.mulf %47, %67 : vector<16x384xf32>
    %69 = vector.broadcast %66 : vector<16x1xf32> to vector<16x384xf32>
    %70 = arith.addf %68, %69 : vector<16x384xf32>
    %cst_37 = arith.constant 0.000000e+00 : f32
    %71 = vector.broadcast %cst_37 : f32 to vector<16x384xf32>
    %72 = arith.cmpf oge, %70, %71 : vector<16x384xf32>
    %73 = vector.broadcast %44 : vector<16x1xf32> to vector<16x384xf32>
    %74 = arith.mulf %73, %70 : vector<16x384xf32>
    %75 = arith.select %72, %70, %74 : vector<16x384xi1>, vector<16x384xf32>
    %76 = vector.broadcast %45 : vector<1x384xf32> to vector<16x384xf32>
    %77 = arith.mulf %75, %76 : vector<16x384xf32>
    %c0_38 = arith.constant 0 : index
    %c0_39 = arith.constant 0 : index
    %c0_40 = arith.constant 0 : index
    %78 = vector.load %arg5[%c0_38, %c0_39, %c0_40] : memref<1x16x384xf32, #tpu.memory_space<vmem>>, vector<1x16x384xf32>
    %79 = vector.shape_cast %78 : vector<1x16x384xf32> to vector<16x384xf32>
    %80 = vector.shape_cast %77 : vector<16x384xf32> to vector<1x16x384xf32>
    tpu.vector_store %arg5[%c0_38, %c0_39, %c0_40], %80 {strides = array<i32>} : memref<1x16x384xf32, #tpu.memory_space<vmem>>, vector<1x16x384xf32>,
    return
  }
  func.func @transform_0(%arg0: i32) -> (i32, i32, i32) {
    %c0_i32 = arith.constant 0 : i32
    %c0_i32_0 = arith.constant 0 : i32
    %c0_i32_1 = arith.constant 0 : i32
    return %arg0, %c0_i32, %c0_i32_0 : i32, i32, i32
  }
  func.func @transform_1(%arg0: i32) -> (i32, i32, i32) {
    %c0_i32 = arith.constant 0 : i32
    %c0_i32_0 = arith.constant 0 : i32
    %c0_i32_1 = arith.constant 0 : i32
    %c0_i32_2 = arith.constant 0 : i32
    return %c0_i32, %c0_i32_0, %c0_i32_1 : i32, i32, i32
  }
  func.func @transform_2(%arg0: i32) -> (i32, i32) {
    %c0_i32 = arith.constant 0 : i32
    %c0_i32_0 = arith.constant 0 : i32
    %c0_i32_1 = arith.constant 0 : i32
    return %c0_i32, %c0_i32_0 : i32, i32
  }
  func.func @transform_3(%arg0: i32) -> (i32, i32) {
    %c0_i32 = arith.constant 0 : i32
    %c0_i32_0 = arith.constant 0 : i32
    %c0_i32_1 = arith.constant 0 : i32
    return %c0_i32, %c0_i32_0 : i32, i32
  }
  func.func @transform_4(%arg0: i32) -> (i32, i32, i32) {
    %c0_i32 = arith.constant 0 : i32
    %c0_i32_0 = arith.constant 0 : i32
    %c0_i32_1 = arith.constant 0 : i32
    return %arg0, %c0_i32, %c0_i32_0 : i32, i32, i32
  }
}

module attributes {stable_mosaic.version = 11 : i64} {
  func.func @_dense_layer_kernel(%arg0: i32, %arg1: memref<1x48x384xf32, #tpu.memory_space<vmem>>, %arg2: memref<6x16x48xbf16, #tpu.memory_space<vmem>>, %arg3: memref<16x4xf32, #tpu.memory_space<vmem>>, %arg4: memref<1x384xf32, #tpu.memory_space<vmem>>, %arg5: memref<1x16x384xf32, #tpu.memory_space<vmem>>) attributes {dimension_semantics = [#tpu.dimension_semantics<parallel>], iteration_bounds = array<i64: 2>, scalar_prefetch = 0 : i64, scratch_operands = 0 : i64, tpu.core_type = #tpu.core_type<tc>, window_params = [{transform_indices = @transform_0, window_bounds = array<i64: 1, 48, 384>}, {pipeline_mode = #tpu.pipeline_mode<synchronous>, transform_indices = @transform_1, window_bounds = array<i64: 6, 16, 48>}, {pipeline_mode = #tpu.pipeline_mode<synchronous>, transform_indices = @transform_2, window_bounds = array<i64: 16, 4>}, {pipeline_mode = #tpu.pipeline_mode<synchronous>, transform_indices = @transform_3, window_bounds = array<i64: 1, 384>}, {transform_indices = @transform_4, window_bounds = array<i64: 1, 16, 384>}]} {
    %c0 = arith.constant 0 : index
    %c0_0 = arith.constant 0 : index
    %c0_1 = arith.constant 0 : index
    %0 = vector.load %arg1[%c0, %c0_0, %c0_1] : memref<1x48x384xf32, #tpu.memory_space<vmem>>, vector<1x48x384xf32>
    %1 = vector.shape_cast %0 : vector<1x48x384xf32> to vector<48x384xf32>
    %c1_i32 = arith.constant 1 : i32
    %2 = tpu.dynamic_rotate %1 by %c1_i32 dim 1 : vector<48x384xf32>, i32 -> vector<48x384xf32>
    %c3 = arith.constant 3 : index
    %c0_2 = arith.constant 0 : index
    %c0_3 = arith.constant 0 : index
    %3 = vector.load %arg2[%c3, %c0_2, %c0_3] : memref<6x16x48xbf16, #tpu.memory_space<vmem>>, vector<1x16x48xbf16>
    %4 = vector.shape_cast %3 : vector<1x16x48xbf16> to vector<16x48xbf16>
    %5 = arith.truncf %2 : vector<48x384xf32> to vector<48x384xbf16>
    %cst = arith.constant dense<0.000000e+00> : vector<16x384xf32>
    %6 = tpu.matmul %4, %5, %cst {dimension_numbers = #tpu.dot_dimension_numbers<[1], [0], [0], [1], [0, 0, 1, 1], [], []>} : vector<16x48xbf16>, vector<48x384xbf16>, vector<16x384xf32> -> vector<16x384xf32>
    %c4 = arith.constant 4 : index
    %c0_4 = arith.constant 0 : index
    %c0_5 = arith.constant 0 : index
    %7 = vector.load %arg2[%c4, %c0_4, %c0_5] : memref<6x16x48xbf16, #tpu.memory_space<vmem>>, vector<1x16x48xbf16>
    %8 = vector.shape_cast %7 : vector<1x16x48xbf16> to vector<16x48xbf16>
    %9 = arith.truncf %1 : vector<48x384xf32> to vector<48x384xbf16>
    %cst_6 = arith.constant dense<0.000000e+00> : vector<16x384xf32>
    %10 = tpu.matmul %8, %9, %cst_6 {dimension_numbers = #tpu.dot_dimension_numbers<[1], [0], [0], [1], [0, 0, 1, 1], [], []>} : vector<16x48xbf16>, vector<48x384xbf16>, vector<16x384xf32> -> vector<16x384xf32>
    %11 = arith.addf %6, %10 : vector<16x384xf32>
    %c383_i32 = arith.constant 383 : i32
    %12 = tpu.dynamic_rotate %1 by %c383_i32 dim 1 : vector<48x384xf32>, i32 -> vector<48x384xf32>
    %c5 = arith.constant 5 : index
    %c0_7 = arith.constant 0 : index
    %c0_8 = arith.constant 0 : index
    %13 = vector.load %arg2[%c5, %c0_7, %c0_8] : memref<6x16x48xbf16, #tpu.memory_space<vmem>>, vector<1x16x48xbf16>
    %14 = vector.shape_cast %13 : vector<1x16x48xbf16> to vector<16x48xbf16>
    %15 = arith.truncf %12 : vector<48x384xf32> to vector<48x384xbf16>
    %cst_9 = arith.constant dense<0.000000e+00> : vector<16x384xf32>
    %16 = tpu.matmul %14, %15, %cst_9 {dimension_numbers = #tpu.dot_dimension_numbers<[1], [0], [0], [1], [0, 0, 1, 1], [], []>} : vector<16x48xbf16>, vector<48x384xbf16>, vector<16x384xf32> -> vector<16x384xf32>
    %17 = arith.addf %11, %16 : vector<16x384xf32>
    %c97_i32 = arith.constant 97 : i32
    %18 = tpu.dynamic_rotate %1 by %c97_i32 dim 1 : vector<48x384xf32>, i32 -> vector<48x384xf32>
    %c0_10 = arith.constant 0 : index
    %c0_11 = arith.constant 0 : index
    %c0_12 = arith.constant 0 : index
    %19 = vector.load %arg2[%c0_10, %c0_11, %c0_12] : memref<6x16x48xbf16, #tpu.memory_space<vmem>>, vector<1x16x48xbf16>
    %20 = vector.shape_cast %19 : vector<1x16x48xbf16> to vector<16x48xbf16>
    %21 = arith.truncf %18 : vector<48x384xf32> to vector<48x384xbf16>
    %cst_13 = arith.constant dense<0.000000e+00> : vector<16x384xf32>
    %22 = tpu.matmul %20, %21, %cst_13 {dimension_numbers = #tpu.dot_dimension_numbers<[1], [0], [0], [1], [0, 0, 1, 1], [], []>} : vector<16x48xbf16>, vector<48x384xbf16>, vector<16x384xf32> -> vector<16x384xf32>
    %c96_i32 = arith.constant 96 : i32
    %23 = tpu.dynamic_rotate %1 by %c96_i32 dim 1 : vector<48x384xf32>, i32 -> vector<48x384xf32>
    %c1 = arith.constant 1 : index
    %c0_14 = arith.constant 0 : index
    %c0_15 = arith.constant 0 : index
    %24 = vector.load %arg2[%c1, %c0_14, %c0_15] : memref<6x16x48xbf16, #tpu.memory_space<vmem>>, vector<1x16x48xbf16>
    %25 = vector.shape_cast %24 : vector<1x16x48xbf16> to vector<16x48xbf16>
    %26 = arith.truncf %23 : vector<48x384xf32> to vector<48x384xbf16>
    %cst_16 = arith.constant dense<0.000000e+00> : vector<16x384xf32>
    %27 = tpu.matmul %25, %26, %cst_16 {dimension_numbers = #tpu.dot_dimension_numbers<[1], [0], [0], [1], [0, 0, 1, 1], [], []>} : vector<16x48xbf16>, vector<48x384xbf16>, vector<16x384xf32> -> vector<16x384xf32>
    %28 = arith.addf %22, %27 : vector<16x384xf32>
    %c95_i32 = arith.constant 95 : i32
    %29 = tpu.dynamic_rotate %1 by %c95_i32 dim 1 : vector<48x384xf32>, i32 -> vector<48x384xf32>
    %c2 = arith.constant 2 : index
    %c0_17 = arith.constant 0 : index
    %c0_18 = arith.constant 0 : index
    %30 = vector.load %arg2[%c2, %c0_17, %c0_18] : memref<6x16x48xbf16, #tpu.memory_space<vmem>>, vector<1x16x48xbf16>
    %31 = vector.shape_cast %30 : vector<1x16x48xbf16> to vector<16x48xbf16>
    %32 = arith.truncf %29 : vector<48x384xf32> to vector<48x384xbf16>
    %cst_19 = arith.constant dense<0.000000e+00> : vector<16x384xf32>
    %33 = tpu.matmul %31, %32, %cst_19 {dimension_numbers = #tpu.dot_dimension_numbers<[1], [0], [0], [1], [0, 0, 1, 1], [], []>} : vector<16x48xbf16>, vector<48x384xbf16>, vector<16x384xf32> -> vector<16x384xf32>
    %34 = arith.addf %28, %33 : vector<16x384xf32>
    %35 = tpu.iota {dimensions = array<i32: 1>} : vector<16x384xi32>
    %c96_i32_20 = arith.constant 96 : i32
    %36 = vector.broadcast %c96_i32_20 : i32 to vector<16x384xi32>
    %37 = arith.cmpi sge, %35, %36 : vector<16x384xi32>
    %cst_21 = arith.constant 0.000000e+00 : f32
    %38 = vector.broadcast %cst_21 : f32 to vector<16x384xf32>
    %39 = arith.select %37, %34, %38 : vector<16x384xi1>, vector<16x384xf32>
    %40 = arith.addf %17, %39 : vector<16x384xf32>
    %c0_22 = arith.constant 0 : index
    %c0_23 = arith.constant 0 : index
    %41 = vector.load %arg3[%c0_22, %c0_23] : memref<16x4xf32, #tpu.memory_space<vmem>>, vector<16x1xf32>
    %c0_24 = arith.constant 0 : index
    %c1_25 = arith.constant 1 : index
    %42 = vector.load %arg3[%c0_24, %c1_25] : memref<16x4xf32, #tpu.memory_space<vmem>>, vector<16x1xf32>
    %c0_26 = arith.constant 0 : index
    %c2_27 = arith.constant 2 : index
    %43 = vector.load %arg3[%c0_26, %c2_27] : memref<16x4xf32, #tpu.memory_space<vmem>>, vector<16x1xf32>
    %c0_28 = arith.constant 0 : index
    %c3_29 = arith.constant 3 : index
    %44 = vector.load %arg3[%c0_28, %c3_29] : memref<16x4xf32, #tpu.memory_space<vmem>>, vector<16x1xf32>
    %c0_30 = arith.constant 0 : index
    %c0_31 = arith.constant 0 : index
    %45 = vector.load %arg4[%c0_30, %c0_31] : memref<1x384xf32, #tpu.memory_space<vmem>>, vector<1x384xf32>
    %46 = vector.broadcast %41 : vector<16x1xf32> to vector<16x384xf32>
    %47 = arith.addf %40, %46 : vector<16x384xf32>
    %48 = vector.broadcast %45 : vector<1x384xf32> to vector<16x384xf32>
    %49 = arith.mulf %47, %48 : vector<16x384xf32>
    %cst_32 = arith.constant dense<0.000000e+00> : vector<16xf32>
    %50 = vector.multi_reduction <add>, %49, %cst_32 [1] : vector<16x384xf32> to vector<16xf32>
    %51 = vector.shape_cast %50 : vector<16xf32> to vector<16x1xf32>
    %cst_33 = arith.constant 0.0036764706 : f32
    %52 = vector.broadcast %cst_33 : f32 to vector<16x1xf32>
    %53 = arith.mulf %51, %52 : vector<16x1xf32>
    %54 = arith.mulf %49, %49 : vector<16x384xf32>
    %cst_34 = arith.constant dense<0.000000e+00> : vector<16xf32>
    %55 = vector.multi_reduction <add>, %54, %cst_34 [1] : vector<16x384xf32> to vector<16xf32>
    %56 = vector.shape_cast %55 : vector<16xf32> to vector<16x1xf32>
    %cst_35 = arith.constant 0.0036764706 : f32
    %57 = vector.broadcast %cst_35 : f32 to vector<16x1xf32>
    %58 = arith.mulf %56, %57 : vector<16x1xf32>
    %59 = arith.mulf %53, %53 : vector<16x1xf32>
    %60 = arith.subf %58, %59 : vector<16x1xf32>
    %cst_36 = arith.constant 9.99999974E-6 : f32
    %61 = vector.broadcast %cst_36 : f32 to vector<16x1xf32>
    %62 = arith.addf %60, %61 : vector<16x1xf32>
    %63 = math.rsqrt %62 : vector<16x1xf32>
    %64 = arith.mulf %42, %63 : vector<16x1xf32>
    %65 = arith.mulf %53, %64 : vector<16x1xf32>
    %66 = arith.subf %43, %65 : vector<16x1xf32>
    %67 = vector.broadcast %64 : vector<16x1xf32> to vector<16x384xf32>
    %68 = arith.mulf %47, %67 : vector<16x384xf32>
    %69 = vector.broadcast %66 : vector<16x1xf32> to vector<16x384xf32>
    %70 = arith.addf %68, %69 : vector<16x384xf32>
    %cst_37 = arith.constant 0.000000e+00 : f32
    %71 = vector.broadcast %cst_37 : f32 to vector<16x384xf32>
    %72 = arith.cmpf oge, %70, %71 : vector<16x384xf32>
    %73 = vector.broadcast %44 : vector<16x1xf32> to vector<16x384xf32>
    %74 = arith.mulf %73, %70 : vector<16x384xf32>
    %75 = arith.select %72, %70, %74 : vector<16x384xi1>, vector<16x384xf32>
    %76 = vector.broadcast %45 : vector<1x384xf32> to vector<16x384xf32>
    %77 = arith.mulf %75, %76 : vector<16x384xf32>
    %c0_38 = arith.constant 0 : index
    %c0_39 = arith.constant 0 : index
    %c0_40 = arith.constant 0 : index
    %78 = vector.load %arg5[%c0_38, %c0_39, %c0_40] : memref<1x16x384xf32, #tpu.memory_space<vmem>>, vector<1x16x384xf32>
    %79 = vector.shape_cast %78 : vector<1x16x384xf32> to vector<16x384xf32>
    %80 = vector.shape_cast %77 : vector<16x384xf32> to vector<1x16x384xf32>
    tpu.vector_store %arg5[%c0_38, %c0_39, %c0_40], %80 {strides = array<i32>} : memref<1x16x384xf32, #tpu.memory_space<vmem>>, vector<1x16x384xf32>,
    return
  }
  func.func @transform_0(%arg0: i32) -> (i32, i32, i32) {
    %c0_i32 = arith.constant 0 : i32
    %c0_i32_0 = arith.constant 0 : i32
    %c0_i32_1 = arith.constant 0 : i32
    return %arg0, %c0_i32, %c0_i32_0 : i32, i32, i32
  }
  func.func @transform_1(%arg0: i32) -> (i32, i32, i32) {
    %c0_i32 = arith.constant 0 : i32
    %c0_i32_0 = arith.constant 0 : i32
    %c0_i32_1 = arith.constant 0 : i32
    %c0_i32_2 = arith.constant 0 : i32
    return %c0_i32, %c0_i32_0, %c0_i32_1 : i32, i32, i32
  }
  func.func @transform_2(%arg0: i32) -> (i32, i32) {
    %c0_i32 = arith.constant 0 : i32
    %c0_i32_0 = arith.constant 0 : i32
    %c0_i32_1 = arith.constant 0 : i32
    return %c0_i32, %c0_i32_0 : i32, i32
  }
  func.func @transform_3(%arg0: i32) -> (i32, i32) {
    %c0_i32 = arith.constant 0 : i32
    %c0_i32_0 = arith.constant 0 : i32
    %c0_i32_1 = arith.constant 0 : i32
    return %c0_i32, %c0_i32_0 : i32, i32
  }
  func.func @transform_4(%arg0: i32) -> (i32, i32, i32) {
    %c0_i32 = arith.constant 0 : i32
    %c0_i32_0 = arith.constant 0 : i32
    %c0_i32_1 = arith.constant 0 : i32
    return %arg0, %c0_i32, %c0_i32_0 : i32, i32, i32
  }
}

module attributes {stable_mosaic.version = 11 : i64} {
  func.func @_dense_layer_kernel(%arg0: i32, %arg1: memref<1x64x384xf32, #tpu.memory_space<vmem>>, %arg2: memref<6x16x64xbf16, #tpu.memory_space<vmem>>, %arg3: memref<16x4xf32, #tpu.memory_space<vmem>>, %arg4: memref<1x384xf32, #tpu.memory_space<vmem>>, %arg5: memref<1x16x384xf32, #tpu.memory_space<vmem>>) attributes {dimension_semantics = [#tpu.dimension_semantics<parallel>], iteration_bounds = array<i64: 2>, scalar_prefetch = 0 : i64, scratch_operands = 0 : i64, tpu.core_type = #tpu.core_type<tc>, window_params = [{transform_indices = @transform_0, window_bounds = array<i64: 1, 64, 384>}, {pipeline_mode = #tpu.pipeline_mode<synchronous>, transform_indices = @transform_1, window_bounds = array<i64: 6, 16, 64>}, {pipeline_mode = #tpu.pipeline_mode<synchronous>, transform_indices = @transform_2, window_bounds = array<i64: 16, 4>}, {pipeline_mode = #tpu.pipeline_mode<synchronous>, transform_indices = @transform_3, window_bounds = array<i64: 1, 384>}, {transform_indices = @transform_4, window_bounds = array<i64: 1, 16, 384>}]} {
    %c0 = arith.constant 0 : index
    %c0_0 = arith.constant 0 : index
    %c0_1 = arith.constant 0 : index
    %0 = vector.load %arg1[%c0, %c0_0, %c0_1] : memref<1x64x384xf32, #tpu.memory_space<vmem>>, vector<1x64x384xf32>
    %1 = vector.shape_cast %0 : vector<1x64x384xf32> to vector<64x384xf32>
    %c1_i32 = arith.constant 1 : i32
    %2 = tpu.dynamic_rotate %1 by %c1_i32 dim 1 : vector<64x384xf32>, i32 -> vector<64x384xf32>
    %c3 = arith.constant 3 : index
    %c0_2 = arith.constant 0 : index
    %c0_3 = arith.constant 0 : index
    %3 = vector.load %arg2[%c3, %c0_2, %c0_3] : memref<6x16x64xbf16, #tpu.memory_space<vmem>>, vector<1x16x64xbf16>
    %4 = vector.shape_cast %3 : vector<1x16x64xbf16> to vector<16x64xbf16>
    %5 = arith.truncf %2 : vector<64x384xf32> to vector<64x384xbf16>
    %cst = arith.constant dense<0.000000e+00> : vector<16x384xf32>
    %6 = tpu.matmul %4, %5, %cst {dimension_numbers = #tpu.dot_dimension_numbers<[1], [0], [0], [1], [0, 0, 1, 1], [], []>} : vector<16x64xbf16>, vector<64x384xbf16>, vector<16x384xf32> -> vector<16x384xf32>
    %c4 = arith.constant 4 : index
    %c0_4 = arith.constant 0 : index
    %c0_5 = arith.constant 0 : index
    %7 = vector.load %arg2[%c4, %c0_4, %c0_5] : memref<6x16x64xbf16, #tpu.memory_space<vmem>>, vector<1x16x64xbf16>
    %8 = vector.shape_cast %7 : vector<1x16x64xbf16> to vector<16x64xbf16>
    %9 = arith.truncf %1 : vector<64x384xf32> to vector<64x384xbf16>
    %cst_6 = arith.constant dense<0.000000e+00> : vector<16x384xf32>
    %10 = tpu.matmul %8, %9, %cst_6 {dimension_numbers = #tpu.dot_dimension_numbers<[1], [0], [0], [1], [0, 0, 1, 1], [], []>} : vector<16x64xbf16>, vector<64x384xbf16>, vector<16x384xf32> -> vector<16x384xf32>
    %11 = arith.addf %6, %10 : vector<16x384xf32>
    %c383_i32 = arith.constant 383 : i32
    %12 = tpu.dynamic_rotate %1 by %c383_i32 dim 1 : vector<64x384xf32>, i32 -> vector<64x384xf32>
    %c5 = arith.constant 5 : index
    %c0_7 = arith.constant 0 : index
    %c0_8 = arith.constant 0 : index
    %13 = vector.load %arg2[%c5, %c0_7, %c0_8] : memref<6x16x64xbf16, #tpu.memory_space<vmem>>, vector<1x16x64xbf16>
    %14 = vector.shape_cast %13 : vector<1x16x64xbf16> to vector<16x64xbf16>
    %15 = arith.truncf %12 : vector<64x384xf32> to vector<64x384xbf16>
    %cst_9 = arith.constant dense<0.000000e+00> : vector<16x384xf32>
    %16 = tpu.matmul %14, %15, %cst_9 {dimension_numbers = #tpu.dot_dimension_numbers<[1], [0], [0], [1], [0, 0, 1, 1], [], []>} : vector<16x64xbf16>, vector<64x384xbf16>, vector<16x384xf32> -> vector<16x384xf32>
    %17 = arith.addf %11, %16 : vector<16x384xf32>
    %c193_i32 = arith.constant 193 : i32
    %18 = tpu.dynamic_rotate %1 by %c193_i32 dim 1 : vector<64x384xf32>, i32 -> vector<64x384xf32>
    %c0_10 = arith.constant 0 : index
    %c0_11 = arith.constant 0 : index
    %c0_12 = arith.constant 0 : index
    %19 = vector.load %arg2[%c0_10, %c0_11, %c0_12] : memref<6x16x64xbf16, #tpu.memory_space<vmem>>, vector<1x16x64xbf16>
    %20 = vector.shape_cast %19 : vector<1x16x64xbf16> to vector<16x64xbf16>
    %21 = arith.truncf %18 : vector<64x384xf32> to vector<64x384xbf16>
    %cst_13 = arith.constant dense<0.000000e+00> : vector<16x384xf32>
    %22 = tpu.matmul %20, %21, %cst_13 {dimension_numbers = #tpu.dot_dimension_numbers<[1], [0], [0], [1], [0, 0, 1, 1], [], []>} : vector<16x64xbf16>, vector<64x384xbf16>, vector<16x384xf32> -> vector<16x384xf32>
    %c192_i32 = arith.constant 192 : i32
    %23 = tpu.dynamic_rotate %1 by %c192_i32 dim 1 : vector<64x384xf32>, i32 -> vector<64x384xf32>
    %c1 = arith.constant 1 : index
    %c0_14 = arith.constant 0 : index
    %c0_15 = arith.constant 0 : index
    %24 = vector.load %arg2[%c1, %c0_14, %c0_15] : memref<6x16x64xbf16, #tpu.memory_space<vmem>>, vector<1x16x64xbf16>
    %25 = vector.shape_cast %24 : vector<1x16x64xbf16> to vector<16x64xbf16>
    %26 = arith.truncf %23 : vector<64x384xf32> to vector<64x384xbf16>
    %cst_16 = arith.constant dense<0.000000e+00> : vector<16x384xf32>
    %27 = tpu.matmul %25, %26, %cst_16 {dimension_numbers = #tpu.dot_dimension_numbers<[1], [0], [0], [1], [0, 0, 1, 1], [], []>} : vector<16x64xbf16>, vector<64x384xbf16>, vector<16x384xf32> -> vector<16x384xf32>
    %28 = arith.addf %22, %27 : vector<16x384xf32>
    %c191_i32 = arith.constant 191 : i32
    %29 = tpu.dynamic_rotate %1 by %c191_i32 dim 1 : vector<64x384xf32>, i32 -> vector<64x384xf32>
    %c2 = arith.constant 2 : index
    %c0_17 = arith.constant 0 : index
    %c0_18 = arith.constant 0 : index
    %30 = vector.load %arg2[%c2, %c0_17, %c0_18] : memref<6x16x64xbf16, #tpu.memory_space<vmem>>, vector<1x16x64xbf16>
    %31 = vector.shape_cast %30 : vector<1x16x64xbf16> to vector<16x64xbf16>
    %32 = arith.truncf %29 : vector<64x384xf32> to vector<64x384xbf16>
    %cst_19 = arith.constant dense<0.000000e+00> : vector<16x384xf32>
    %33 = tpu.matmul %31, %32, %cst_19 {dimension_numbers = #tpu.dot_dimension_numbers<[1], [0], [0], [1], [0, 0, 1, 1], [], []>} : vector<16x64xbf16>, vector<64x384xbf16>, vector<16x384xf32> -> vector<16x384xf32>
    %34 = arith.addf %28, %33 : vector<16x384xf32>
    %35 = tpu.iota {dimensions = array<i32: 1>} : vector<16x384xi32>
    %c192_i32_20 = arith.constant 192 : i32
    %36 = vector.broadcast %c192_i32_20 : i32 to vector<16x384xi32>
    %37 = arith.cmpi sge, %35, %36 : vector<16x384xi32>
    %cst_21 = arith.constant 0.000000e+00 : f32
    %38 = vector.broadcast %cst_21 : f32 to vector<16x384xf32>
    %39 = arith.select %37, %34, %38 : vector<16x384xi1>, vector<16x384xf32>
    %40 = arith.addf %17, %39 : vector<16x384xf32>
    %c0_22 = arith.constant 0 : index
    %c0_23 = arith.constant 0 : index
    %41 = vector.load %arg3[%c0_22, %c0_23] : memref<16x4xf32, #tpu.memory_space<vmem>>, vector<16x1xf32>
    %c0_24 = arith.constant 0 : index
    %c1_25 = arith.constant 1 : index
    %42 = vector.load %arg3[%c0_24, %c1_25] : memref<16x4xf32, #tpu.memory_space<vmem>>, vector<16x1xf32>
    %c0_26 = arith.constant 0 : index
    %c2_27 = arith.constant 2 : index
    %43 = vector.load %arg3[%c0_26, %c2_27] : memref<16x4xf32, #tpu.memory_space<vmem>>, vector<16x1xf32>
    %c0_28 = arith.constant 0 : index
    %c3_29 = arith.constant 3 : index
    %44 = vector.load %arg3[%c0_28, %c3_29] : memref<16x4xf32, #tpu.memory_space<vmem>>, vector<16x1xf32>
    %c0_30 = arith.constant 0 : index
    %c0_31 = arith.constant 0 : index
    %45 = vector.load %arg4[%c0_30, %c0_31] : memref<1x384xf32, #tpu.memory_space<vmem>>, vector<1x384xf32>
    %46 = vector.broadcast %41 : vector<16x1xf32> to vector<16x384xf32>
    %47 = arith.addf %40, %46 : vector<16x384xf32>
    %48 = vector.broadcast %45 : vector<1x384xf32> to vector<16x384xf32>
    %49 = arith.mulf %47, %48 : vector<16x384xf32>
    %cst_32 = arith.constant dense<0.000000e+00> : vector<16xf32>
    %50 = vector.multi_reduction <add>, %49, %cst_32 [1] : vector<16x384xf32> to vector<16xf32>
    %51 = vector.shape_cast %50 : vector<16xf32> to vector<16x1xf32>
    %cst_33 = arith.constant 0.0036764706 : f32
    %52 = vector.broadcast %cst_33 : f32 to vector<16x1xf32>
    %53 = arith.mulf %51, %52 : vector<16x1xf32>
    %54 = arith.mulf %49, %49 : vector<16x384xf32>
    %cst_34 = arith.constant dense<0.000000e+00> : vector<16xf32>
    %55 = vector.multi_reduction <add>, %54, %cst_34 [1] : vector<16x384xf32> to vector<16xf32>
    %56 = vector.shape_cast %55 : vector<16xf32> to vector<16x1xf32>
    %cst_35 = arith.constant 0.0036764706 : f32
    %57 = vector.broadcast %cst_35 : f32 to vector<16x1xf32>
    %58 = arith.mulf %56, %57 : vector<16x1xf32>
    %59 = arith.mulf %53, %53 : vector<16x1xf32>
    %60 = arith.subf %58, %59 : vector<16x1xf32>
    %cst_36 = arith.constant 9.99999974E-6 : f32
    %61 = vector.broadcast %cst_36 : f32 to vector<16x1xf32>
    %62 = arith.addf %60, %61 : vector<16x1xf32>
    %63 = math.rsqrt %62 : vector<16x1xf32>
    %64 = arith.mulf %42, %63 : vector<16x1xf32>
    %65 = arith.mulf %53, %64 : vector<16x1xf32>
    %66 = arith.subf %43, %65 : vector<16x1xf32>
    %67 = vector.broadcast %64 : vector<16x1xf32> to vector<16x384xf32>
    %68 = arith.mulf %47, %67 : vector<16x384xf32>
    %69 = vector.broadcast %66 : vector<16x1xf32> to vector<16x384xf32>
    %70 = arith.addf %68, %69 : vector<16x384xf32>
    %cst_37 = arith.constant 0.000000e+00 : f32
    %71 = vector.broadcast %cst_37 : f32 to vector<16x384xf32>
    %72 = arith.cmpf oge, %70, %71 : vector<16x384xf32>
    %73 = vector.broadcast %44 : vector<16x1xf32> to vector<16x384xf32>
    %74 = arith.mulf %73, %70 : vector<16x384xf32>
    %75 = arith.select %72, %70, %74 : vector<16x384xi1>, vector<16x384xf32>
    %76 = vector.broadcast %45 : vector<1x384xf32> to vector<16x384xf32>
    %77 = arith.mulf %75, %76 : vector<16x384xf32>
    %c0_38 = arith.constant 0 : index
    %c0_39 = arith.constant 0 : index
    %c0_40 = arith.constant 0 : index
    %78 = vector.load %arg5[%c0_38, %c0_39, %c0_40] : memref<1x16x384xf32, #tpu.memory_space<vmem>>, vector<1x16x384xf32>
    %79 = vector.shape_cast %78 : vector<1x16x384xf32> to vector<16x384xf32>
    %80 = vector.shape_cast %77 : vector<16x384xf32> to vector<1x16x384xf32>
    tpu.vector_store %arg5[%c0_38, %c0_39, %c0_40], %80 {strides = array<i32>} : memref<1x16x384xf32, #tpu.memory_space<vmem>>, vector<1x16x384xf32>,
    return
  }
  func.func @transform_0(%arg0: i32) -> (i32, i32, i32) {
    %c0_i32 = arith.constant 0 : i32
    %c0_i32_0 = arith.constant 0 : i32
    %c0_i32_1 = arith.constant 0 : i32
    return %arg0, %c0_i32, %c0_i32_0 : i32, i32, i32
  }
  func.func @transform_1(%arg0: i32) -> (i32, i32, i32) {
    %c0_i32 = arith.constant 0 : i32
    %c0_i32_0 = arith.constant 0 : i32
    %c0_i32_1 = arith.constant 0 : i32
    %c0_i32_2 = arith.constant 0 : i32
    return %c0_i32, %c0_i32_0, %c0_i32_1 : i32, i32, i32
  }
  func.func @transform_2(%arg0: i32) -> (i32, i32) {
    %c0_i32 = arith.constant 0 : i32
    %c0_i32_0 = arith.constant 0 : i32
    %c0_i32_1 = arith.constant 0 : i32
    return %c0_i32, %c0_i32_0 : i32, i32
  }
  func.func @transform_3(%arg0: i32) -> (i32, i32) {
    %c0_i32 = arith.constant 0 : i32
    %c0_i32_0 = arith.constant 0 : i32
    %c0_i32_1 = arith.constant 0 : i32
    return %c0_i32, %c0_i32_0 : i32, i32
  }
  func.func @transform_4(%arg0: i32) -> (i32, i32, i32) {
    %c0_i32 = arith.constant 0 : i32
    %c0_i32_0 = arith.constant 0 : i32
    %c0_i32_1 = arith.constant 0 : i32
    return %arg0, %c0_i32, %c0_i32_0 : i32, i32, i32
  }
}

</mosaic_0001>

<llo_original>
// kernel: tile.8
$region0: #{tile.8}
  #allocation0 [shape = 's32[1]{0}', space=sflag, size = 0x4, scoped, tag = 'scoped memory for tile.8']
  %s0 = inlined_call_operand.vmem [shape: f32[24], index: 0, kind: input, shape index: {}]
  %s1 = inlined_call_operand.vmem [shape: f32[16,24], index: 1, kind: output, shape index: {}]
  // Predicated region
  $region2: #{tile.8} parent=0 // pred_check
    _
  $region3: #{tile.8} parent=0 // pred_check_branch
    %3 = sbr.rel (0) target = $region5
  $region4: #{tile.8} parent=0 // pred_region
    _
  $region5: #{tile.8} parent=0 // pred_fallthru
    _
  %v4 = vld [vmem:[%s0] ss:$0 sm:$0xff]
  %5 = vst [vmem:[%s1] sm:$0xff] %v4
  %s6 = scalar_lea.vmem %s1, 8
  %7 = vst [vmem:[%s6] sm:$0xff] %v4

// kernel: tile.9
$region0: #{tile.9}
  %s0 = inlined_call_operand.vmem [shape: f32[16,24], index: 0, kind: input, shape index: {}]
  %s1 = inlined_call_operand.vmem [shape: f32[1,384], index: 1, kind: output, shape index: {}]
  $region1: #{tile.9} parent=0
    #allocation0 [shape = 'u8[12288]{0}', space=vmem, size = 0x3000, scoped, tag = 'scoped mem for output reshape']
    %v2 = vld [vmem:[%s0] sm:$0x1]
    %vm3 = vcmask 195584
    %4 = vst.msk [vmem:[#allocation0] sm:$0x1] %vm3, %v2
    %s5 = scalar_lea.vmem %s0, 5
    %v6 = vld [vmem:[%s5] sm:$0x1]
    %s7 = scalar_lea.vmem %s0, 5
    %v8 = vld [vmem:[%s7] sm:$0x1]
    %vm9 = vcmask 64512
    %v10 = vsel %vm9, %v8, %v6
    %11 = vrot.lane.b32.xlu0 %v10, 120
    %v12 = vpop.permute.xlu0 %11
    %vm13 = vcmask 130048
    %s14 = scalar_lea.vmem [#allocation0], 8
    %15 = vst.msk [vmem:[%s14] sm:$0x1] %vm13, %v12
    %vm16 = vcmask 1048512
    %17 = vst.msk [vmem:[#allocation0] sm:$0x1] %vm16, %v12
    %s18 = scalar_lea.vmem %s0, 10
    %v19 = vld [vmem:[%s18] sm:$0x1]
    %s20 = scalar_lea.vmem %s0, 10
    %v21 = vld [vmem:[%s20] sm:$0x1]
    %vm22 = vcmask 130048
    %v23 = vsel %vm22, %v21, %v19
    %24 = vrot.lane.b32.xlu0 %v23, 112
    %v25 = vpop.permute.xlu0 %24
    %vm26 = vcmask 64512
    %s27 = scalar_lea.vmem [#allocation0], 16
    %28 = vst.msk [vmem:[%s27] sm:$0x1] %vm26, %v25
    %vm29 = vcmask 1048448
    %s30 = scalar_lea.vmem [#allocation0], 8
    %31 = vst.msk [vmem:[%s30] sm:$0x1] %vm29, %v25
    %s32 = scalar_lea.vmem %s0, 15
    %v33 = vld [vmem:[%s32] sm:$0x1]
    %34 = vrot.lane.b32.xlu0 %v33, 104
    %v35 = vpop.permute.xlu0 %34
    %vm36 = vcmask 1048384
    %s37 = scalar_lea.vmem [#allocation0], 16
    %38 = vst.msk [vmem:[%s37] sm:$0x1] %vm36, %v35
    %s39 = scalar_lea.vmem %s0, 4
    %v40 = vld [vmem:[%s39] sm:$0x1]
    %41 = vrot.lane.b32.xlu0 %v40, 96
    %v42 = vpop.permute.xlu0 %41
    %vm43 = vcmask 982784
    %44 = vst.msk [vmem:[#allocation0] sm:$0x1] %vm43, %v42
    %s45 = scalar_lea.vmem %s0, 9
    %v46 = vld [vmem:[%s45] sm:$0x1]
    %47 = vrot.lane.b32.xlu0 %v46, 88
    %v48 = vpop.permute.xlu0 %47
    %vm49 = vcmask 917184
    %s50 = scalar_lea.vmem [#allocation0], 8
    %51 = vst.msk [vmem:[%s50] sm:$0x1] %vm49, %v48
    %s52 = scalar_lea.vmem %s0, 14
    %v53 = vld [vmem:[%s52] sm:$0x1]
    %54 = vrot.lane.b32.xlu0 %v53, 80
    %v55 = vpop.permute.xlu0 %54
    %vm56 = vcmask 851584
    %s57 = scalar_lea.vmem [#allocation0], 16
    %58 = vst.msk [vmem:[%s57] sm:$0x1] %vm56, %v55
    %s59 = scalar_lea.vmem %s0, 3
    %v60 = vld [vmem:[%s59] sm:$0x1]
    %61 = vrot.lane.b32.xlu0 %v60, 72
    %v62 = vpop.permute.xlu0 %61
    %vm63 = vcmask 785984
    %64 = vst.msk [vmem:[#allocation0] sm:$0x1] %vm63, %v62
    %s65 = scalar_lea.vmem %s0, 8
    %v66 = vld [vmem:[%s65] sm:$0x1]
    %67 = vrot.lane.b32.xlu0 %v66, 64
    %v68 = vpop.permute.xlu0 %67
    %vm69 = vcmask 720384
    %s70 = scalar_lea.vmem [#allocation0], 8
    %71 = vst.msk [vmem:[%s70] sm:$0x1] %vm69, %v68
    %s72 = scalar_lea.vmem %s0, 13
    %v73 = vld [vmem:[%s72] sm:$0x1]
    %74 = vrot.lane.b32.xlu0 %v73, 56
    %v75 = vpop.permute.xlu0 %74
    %vm76 = vcmask 654784
    %s77 = scalar_lea.vmem [#allocation0], 16
    %78 = vst.msk [vmem:[%s77] sm:$0x1] %vm76, %v75
    %s79 = scalar_lea.vmem %s0, 2
    %v80 = vld [vmem:[%s79] sm:$0x1]
    %81 = vrot.lane.b32.xlu0 %v80, 48
    %v82 = vpop.permute.xlu0 %81
    %vm83 = vcmask 589184
    %84 = vst.msk [vmem:[#allocation0] sm:$0x1] %vm83, %v82
    %s85 = scalar_lea.vmem %s0, 7
    %v86 = vld [vmem:[%s85] sm:$0x1]
    %87 = vrot.lane.b32.xlu0 %v86, 40
    %v88 = vpop.permute.xlu0 %87
    %vm89 = vcmask 523584
    %s90 = scalar_lea.vmem [#allocation0], 8
    %91 = vst.msk [vmem:[%s90] sm:$0x1] %vm89, %v88
    %s92 = scalar_lea.vmem %s0, 12
    %v93 = vld [vmem:[%s92] sm:$0x1]
    %94 = vrot.lane.b32.xlu0 %v93, 32
    %v95 = vpop.permute.xlu0 %94
    %vm96 = vcmask 457984
    %s97 = scalar_lea.vmem [#allocation0], 16
    %98 = vst.msk [vmem:[%s97] sm:$0x1] %vm96, %v95
    %s99 = scalar_lea.vmem %s0, 1
    %v100 = vld [vmem:[%s99] sm:$0x1]
    %101 = vrot.lane.b32.xlu0 %v100, 24
    %v102 = vpop.permute.xlu0 %101
    %vm103 = vcmask 392384
    %104 = vst.msk [vmem:[#allocation0] sm:$0x1] %vm103, %v102
    %s105 = scalar_lea.vmem %s0, 6
    %v106 = vld [vmem:[%s105] sm:$0x1]
    %107 = vrot.lane.b32.xlu0 %v106, 16
    %v108 = vpop.permute.xlu0 %107
    %vm109 = vcmask 326784
    %s110 = scalar_lea.vmem [#allocation0], 8
    %111 = vst.msk [vmem:[%s110] sm:$0x1] %vm109, %v108
    %s112 = scalar_lea.vmem %s0, 11
    %v113 = vld [vmem:[%s112] sm:$0x1]
    %114 = vrot.lane.b32.xlu0 %v113, 8
    %v115 = vpop.permute.xlu0 %114
    %vm116 = vcmask 261184
    %s117 = scalar_lea.vmem [#allocation0], 16
    %118 = vst.msk [vmem:[%s117] sm:$0x1] %vm116, %v115
    %s120 = ssub.s32 2, 1
    %v121 = vld [vmem:[#allocation0] sm:%s120]
    %s123 = ssub.s32 2, 1
    %124 = vst [vmem:[%s1] sm:%s123] %v121
    %s125 = scalar_lea.vmem [#allocation0], 8
    %v126 = vld [vmem:[%s125] sm:%s120]
    %s128 = ssub.s32 2, 1
    %s129 = scalar_lea.vmem %s1, 1
    %130 = vst [vmem:[%s129] sm:%s128] %v126
    %s131 = scalar_lea.vmem [#allocation0], 16
    %v132 = vld [vmem:[%s131] sm:%s120]
    %s134 = ssub.s32 2, 1
    %s135 = scalar_lea.vmem %s1, 2
    %136 = vst [vmem:[%s135] sm:%s134] %v132

// kernel: dilated_dense_net.4
$region0: #{dilated_dense_net.4}
  #allocation0 [shape = 'u32[]', space=smem, size = 0x4, offset = 0x4, fixed_abs, tag = 'smem constant byte address 0x4 - core index']
  #allocation1 [shape = 'u32[72,128]{1,0:T(1,128)}', space=vmem, size = 0x9000, scoped, tag = 'internal scratch']
  %s0 = inlined_call_operand.vmem [shape: f32[2,16,384], index: 0, kind: input, shape index: {}]
  %s1 = inlined_call_operand.vmem [shape: bf16[6,16,16], index: 1, kind: input, shape index: {}]
  %s2 = inlined_call_operand.vmem [shape: f32[16,4], index: 2, kind: input, shape index: {}]
  %s3 = inlined_call_operand.vmem [shape: f32[1,384], index: 3, kind: input, shape index: {}]
  %s4 = inlined_call_operand.vmem [shape: f32[2,16,384], index: 4, kind: output, shape index: {}]
  %s5 = sld [smem:[#allocation0]]
  $region49: #{dilated_dense_net.4} parent=0
    _
  %s7 = ssub.s32 1, %s5
  %s8 = scalar_select 0, %s7, %s5
  loop: start=0, step=1, limit=4
  $region2: #{dilated_dense_net.4} parent=0 // loop_pre_header
    _
  $region3: #{dilated_dense_net.4} parent=0 // loop_header
    %s10 = sphi 0, %s14
    %p11 = scmp.ge.s32.totalorder %s10, 4
    %s20 = sphi 0, %s22
    %s23 = sphi 0, %s20
    %s24 = sphi 0, %s23
    %s40 = sphi 0, %s24
    %s44 = sphi 0, %s44
    %s46 = sphi 0, %s44
    %s47 = sphi 0, %s46
    %s61 = sphi 0, %s47
    %s65 = sphi 0, %s65
    %s67 = sphi 0, %s65
    %s68 = sphi 0, %s67
    %s82 = sphi 0, %s68
    %s86 = sphi 0, %s86
    %s88 = sphi 0, %s86
    %s89 = sphi 0, %s88
    %s103 = sphi 0, %s89
    %s109 = sphi 0, %s111
    %s112 = sphi 0, %s109
    %s113 = sphi 0, %s112
    %s129 = sphi 0, %s113
  $region4: #{dilated_dense_net.4} parent=0 // loop_header_branch
    %13 = sbr.rel (%p11) target = $region8
  $region5: #{dilated_dense_net.4} parent=0 // loop_body
    %s15 = ssub.s32 %s10, 1
    %s16 = ssub.s32 %s10, 2
    %s17 = sadd.s32 %s10, 1
    %s18 = ssub.s32 %s10, %s17
    %p19 = scmp.eq.s32.totalorder %s18, 0
    %s21 = sadd.s32 %s20, 1
    %s22 = scalar_select %p19, %s20, %s21
    %p25 = pneg %p19
    %p26 = scmp.eq.s32.totalorder %s10, 1
    %p27 = por %p25, %p26
    %p28 = scmp.ne.s32.totalorder %s20, %s23
    %p29 = scmp.eq.s32.totalorder %s10, 0
    %p30 = por %p28, %p29
    %p31 = scmp.ne.s32.totalorder %s20, %s23
    %p32 = scmp.eq.s32.totalorder %s15, 1
    %p33 = por %p31, %p32
    %p34 = scmp.ne.s32.totalorder %s23, %s24
    %p35 = scmp.eq.s32.totalorder %s15, 0
    %p36 = por %p34, %p35
    %p37 = scmp.ne.s32.totalorder %s23, %s24
    %p38 = scmp.eq.s32.totalorder %s16, 1
    %p39 = por %p37, %p38
    %p41 = scmp.ne.s32.totalorder %s24, %s40
    %p42 = scmp.eq.s32.totalorder %s16, 0
    %p43 = por %p41, %p42
    %s45 = sadd.s32 %s44, 1
    %p48 = scmp.eq.s32.totalorder %s10, 1
    %p49 = scmp.ne.s32.totalorder %s44, %s46
    %p50 = scmp.eq.s32.totalorder %s10, 0
    %p51 = por %p49, %p50
    %p52 = scmp.ne.s32.totalorder %s44, %s46
    %p53 = scmp.eq.s32.totalorder %s15, 1
    %p54 = por %p52, %p53
    %p55 = scmp.ne.s32.totalorder %s46, %s47
    %p56 = scmp.eq.s32.totalorder %s15, 0
    %p57 = por %p55, %p56
    %p58 = scmp.ne.s32.totalorder %s46, %s47
    %p59 = scmp.eq.s32.totalorder %s16, 1
    %p60 = por %p58, %p59
    %p62 = scmp.ne.s32.totalorder %s47, %s61
    %p63 = scmp.eq.s32.totalorder %s16, 0
    %p64 = por %p62, %p63
    %s66 = sadd.s32 %s65, 1
    %p69 = scmp.eq.s32.totalorder %s10, 1
    %p70 = scmp.ne.s32.totalorder %s65, %s67
    %p71 = scmp.eq.s32.totalorder %s10, 0
    %p72 = por %p70, %p71
    %p73 = scmp.ne.s32.totalorder %s65, %s67
    %p74 = scmp.eq.s32.totalorder %s15, 1
    %p75 = por %p73, %p74
    %p76 = scmp.ne.s32.totalorder %s67, %s68
    %p77 = scmp.eq.s32.totalorder %s15, 0
    %p78 = por %p76, %p77
    %p79 = scmp.ne.s32.totalorder %s67, %s68
    %p80 = scmp.eq.s32.totalorder %s16, 1
    %p81 = por %p79, %p80
    %p83 = scmp.ne.s32.totalorder %s68, %s82
    %p84 = scmp.eq.s32.totalorder %s16, 0
    %p85 = por %p83, %p84
    %s87 = sadd.s32 %s86, 1
    %p90 = scmp.eq.s32.totalorder %s10, 1
    %p91 = scmp.ne.s32.totalorder %s86, %s88
    %p92 = scmp.eq.s32.totalorder %s10, 0
    %p93 = por %p91, %p92
    %p94 = scmp.ne.s32.totalorder %s86, %s88
    %p95 = scmp.eq.s32.totalorder %s15, 1
    %p96 = por %p94, %p95
    %p97 = scmp.ne.s32.totalorder %s88, %s89
    %p98 = scmp.eq.s32.totalorder %s15, 0
    %p99 = por %p97, %p98
    %p100 = scmp.ne.s32.totalorder %s88, %s89
    %p101 = scmp.eq.s32.totalorder %s16, 1
    %p102 = por %p100, %p101
    %p104 = scmp.ne.s32.totalorder %s89, %s103
    %p105 = scmp.eq.s32.totalorder %s16, 0
    %p106 = por %p104, %p105
    %s107 = ssub.s32 %s10, %s17
    %p108 = scmp.eq.s32.totalorder %s107, 0
    %s110 = sadd.s32 %s109, 1
    %s111 = scalar_select %p108, %s109, %s110
    %p114 = pneg %p108
    %p115 = scmp.eq.s32.totalorder %s10, 1
    %p116 = por %p114, %p115
    %p117 = scmp.ne.s32.totalorder %s109, %s112
    %p118 = scmp.eq.s32.totalorder %s10, 0
    %p119 = por %p117, %p118
    %p120 = scmp.ne.s32.totalorder %s109, %s112
    %p121 = scmp.eq.s32.totalorder %s15, 1
    %p122 = por %p120, %p121
    %p123 = scmp.ne.s32.totalorder %s112, %s113
    %p124 = scmp.eq.s32.totalorder %s15, 0
    %p125 = por %p123, %p124
    %p126 = scmp.ne.s32.totalorder %s112, %s113
    %p127 = scmp.eq.s32.totalorder %s16, 1
    %p128 = por %p126, %p127
    %p130 = scmp.ne.s32.totalorder %s113, %s129
    %p131 = scmp.eq.s32.totalorder %s16, 0
    %p132 = por %p130, %p131
    %p133 = scmp.le.s32.totalorder 1, %s10
    %p134 = scmp.lt.s32.totalorder %s10, 3
    %p135 = pnand %p133, %p134
    %p136 = pneg %p135
    // Predicated region
    $region9: #{dilated_dense_net.4} parent=5 // pred_check
      _
    $region10: #{dilated_dense_net.4} parent=5 // pred_check_branch
      %138 = sbr.rel (%p135) target = $region12
    $region11: #{dilated_dense_net.4} parent=5 // pred_region
      %s139 = ssub.s32 %s10, 1
      // Predicated region
      $region13: #{dilated_dense_net.4} parent=11 // pred_check
        %p140 = pneg %p57
      $region14: #{dilated_dense_net.4} parent=11 // pred_check_branch
        %142 = sbr.rel (%p140) target = $region16
      $region15: #{dilated_dense_net.4} parent=11 // pred_region
        _
      $region16: #{dilated_dense_net.4} parent=11 // pred_fallthru
        _
      // Predicated region
      $region17: #{dilated_dense_net.4} parent=11 // pred_check
        %p143 = pneg %p78
      $region18: #{dilated_dense_net.4} parent=11 // pred_check_branch
        %145 = sbr.rel (%p143) target = $region20
      $region19: #{dilated_dense_net.4} parent=11 // pred_region
        _
      $region20: #{dilated_dense_net.4} parent=11 // pred_fallthru
        _
      // Predicated region
      $region21: #{dilated_dense_net.4} parent=11 // pred_check
        %p146 = pneg %p99
      $region22: #{dilated_dense_net.4} parent=11 // pred_check_branch
        %148 = sbr.rel (%p146) target = $region24
      $region23: #{dilated_dense_net.4} parent=11 // pred_region
        _
      $region24: #{dilated_dense_net.4} parent=11 // pred_fallthru
        _
    $region12: #{dilated_dense_net.4} parent=5 // pred_fallthru
      _
    %p149 = scmp.lt.s32.totalorder %s10, 2
    // Predicated region
    $region25: #{dilated_dense_net.4} parent=5 // pred_check
      %p150 = pneg %p149
    $region26: #{dilated_dense_net.4} parent=5 // pred_check_branch
      %152 = sbr.rel (%p150) target = $region28
    $region27: #{dilated_dense_net.4} parent=5 // pred_region
      // Predicated region
      $region29: #{dilated_dense_net.4} parent=27 // pred_check
        %p153 = pneg %p30
      $region30: #{dilated_dense_net.4} parent=27 // pred_check_branch
        %155 = sbr.rel (%p153) target = $region32
      $region31: #{dilated_dense_net.4} parent=27 // pred_region
        %p156 = scmp.lt.s32.totalorder %s10, 1
        %s157 = scalar_select %p156, %s10, 1
        %s158 = smul.addr %s157, 6
        %s159 = smul.addr %s158, 8
        %s160 = scalar_lea.vmem %s0, %s159
      $region32: #{dilated_dense_net.4} parent=27 // pred_fallthru
        _
    $region28: #{dilated_dense_net.4} parent=5 // pred_fallthru
      _
    %p161 = scmp.le.s32.totalorder 1, %s10
    %p162 = scmp.lt.s32.totalorder %s10, 3
    %p163 = pnand %p161, %p162
    %p164 = pneg %p163
    // Predicated region
    $region33: #{dilated_dense_net.4} parent=5 // pred_check
      _
    $region34: #{dilated_dense_net.4} parent=5 // pred_check_branch
      %166 = sbr.rel (%p163) target = $region36
    $region35: #{dilated_dense_net.4} parent=5 // pred_region
      %s167 = ssub.s32 %s10, 1
      %p168 = scmp.lt.s32.totalorder %s15, 1
      %s169 = scalar_select %p168, %s15, 1
      %s170 = smul.addr %s169, 6
      %s171 = smul.addr %s170, 8
      %s172 = scalar_lea.vmem %s0, %s171
      %p173 = pneg %p36
      %p174 = pneg %p33
      %p175 = pneg %p57
      %p176 = pneg %p54
      %p177 = pneg %p78
      %p178 = pneg %p75
      %p179 = pneg %p99
      %p180 = pneg %p96
      %p181 = pneg %p125
      %p182 = pneg %p122
      %p183 = scmp.lt.s32.totalorder %s15, 1
      %s184 = scalar_select %p183, %s15, 1
      %s185 = smul.addr %s184, 6
      %s186 = smul.addr %s185, 8
      %s187 = scalar_lea.vmem %s4, %s186
      %p188 = scmp.lt.s32.totalorder %s15, 1
      %s189 = scalar_select %p188, %s15, 1
      %s190 = smul.addr %s189, 6
      %s191 = smul.addr %s190, 8
      %s192 = scalar_lea.vmem %s0, %s191
      %p193 = scmp.lt.s32.totalorder %s15, 1
      %s194 = scalar_select %p193, %s15, 1
      %s195 = smul.addr %s194, 6
      %s196 = smul.addr %s195, 8
      %s197 = scalar_lea.vmem %s4, %s196
      %v199 = vld [vmem:[%s192] sm:$0xff]
      %v200 = vld [vmem:[%s192 + $0x8] sm:$0xff]
      %v201 = vld [vmem:[%s192 + $0x10] sm:$0xff]
      %v202 = vld [vmem:[%s192 + $0x18] sm:$0xff]
      %v203 = vld [vmem:[%s192 + $0x20] sm:$0xff]
      %v204 = vld [vmem:[%s192 + $0x28] sm:$0xff]
      %205 = vrot.lane.b32.xlu0 %v199, 1
      %v206 = vpop.permute.xlu0 %205
      %207 = vrot.lane.b32.xlu0 %v202, 1
      %v208 = vpop.permute.xlu0 %207
      %209 = vrot.lane.b32.xlu0 %v200, 1
      %v210 = vpop.permute.xlu0 %209
      %211 = vrot.lane.b32.xlu0 %v203, 1
      %v212 = vpop.permute.xlu0 %211
      %213 = vrot.lane.b32.xlu0 %v201, 1
      %v214 = vpop.permute.xlu0 %213
      %215 = vrot.lane.b32.xlu0 %v204, 1
      %v216 = vpop.permute.xlu0 %215
      %v217 = vlaneseq
      %v218 = vand.u32 %v217, 127
      %vm219 = vcmp.lt.s32.totalorder %v218, 1
      %v220 = vsel %vm219, %v210, %v214
      %v221 = vsel %vm219, %v212, %v216
      %v222 = vsel %vm219, %v206, %v210
      %v223 = vsel %vm219, %v208, %v212
      %v224 = vsel %vm219, %v214, %v206
      %v225 = vsel %vm219, %v216, %v208
      %s226 = scalar_lea.vmem %s1, 24
      %v227 = vld [vmem:[%s226] sm:$0xf]
      %v228 = vld [vmem:[%s226 + $0x4] sm:$0xf]
      %v229 = vpack.c.bf16 %v225, %v224
      %v230 = vpack.c.bf16 %v223, %v222
      %v231 = vpack.c.bf16 %v221, %v220
      %s232 = scalar_lea.vmem %s1, 32
      %v233 = vld [vmem:[%s232] sm:$0xf]
      %v234 = vld [vmem:[%s232 + $0x4] sm:$0xf]
      %v235 = vpack.c.bf16 %v202, %v199
      %v236 = vpack.c.bf16 %v203, %v200
      %v237 = vpack.c.bf16 %v204, %v201
      %v240 = vunpack.c.l.b16 %v233
      %v241 = vunpack.c.l.b16 %v234
      %v242 = vpack.c.b16 %v241, %v240
      %vm243 = vcmask 130048
      %v245 = vsel %vm243, %v242, 0
      %247 = vmatpush.bf16.msra.mxu0 0
      %248 = vmatpush.bf16.msra.mxu0 0
      %249 = vmatpush.bf16.msra.mxu0 0
      %250 = vmatpush.bf16.msra.mxu0 0
      %251 = vmatpush.bf16.msra.mxu0 0
      %252 = vmatpush.bf16.msra.mxu0 0
      %253 = vmatpush.bf16.msra.mxu0 0
      %254 = vmatpush.bf16.msra.mxu0 %v235
      %255 = vmatmul.bf16.gmra.mxu0 %v245
      %v256 = vpop.f32.mrf.mxu0
      %v257 = vadd.f32 0.0, %v256
      %v258 = vpop.f32.mrf.mxu0
      %v259 = vadd.f32 0.0, %v258
      %260 = vdwg.mxu0
      %261 = vmatpush.bf16.msra.mxu0 0
      %262 = vmatpush.bf16.msra.mxu0 0
      %263 = vmatpush.bf16.msra.mxu0 0
      %264 = vmatpush.bf16.msra.mxu0 0
      %265 = vmatpush.bf16.msra.mxu0 0
      %266 = vmatpush.bf16.msra.mxu0 0
      %267 = vmatpush.bf16.msra.mxu0 0
      %268 = vmatpush.bf16.msra.mxu0 %v236
      %269 = vmatmul.bf16.gmra.mxu0 %v245
      %v270 = vpop.f32.mrf.mxu0
      %v271 = vadd.f32 0.0, %v270
      %v272 = vpop.f32.mrf.mxu0
      %v273 = vadd.f32 0.0, %v272
      %274 = vdwg.mxu0
      %275 = vmatpush.bf16.msra.mxu0 0
      %276 = vmatpush.bf16.msra.mxu0 0
      %277 = vmatpush.bf16.msra.mxu0 0
      %278 = vmatpush.bf16.msra.mxu0 0
      %279 = vmatpush.bf16.msra.mxu0 0
      %280 = vmatpush.bf16.msra.mxu0 0
      %281 = vmatpush.bf16.msra.mxu0 0
      %282 = vmatpush.bf16.msra.mxu0 %v237
      %283 = vmatmul.bf16.gmra.mxu0 %v245
      %v284 = vpop.f32.mrf.mxu0
      %v285 = vadd.f32 0.0, %v284
      %v286 = vpop.f32.mrf.mxu0
      %v287 = vadd.f32 0.0, %v286
      %288 = vdwg.mxu0
      %v291 = vunpack.c.l.b16 %v227
      %v292 = vunpack.c.l.b16 %v228
      %v293 = vpack.c.b16 %v292, %v291
      %v295 = vsel %vm243, %v293, 0
      %297 = vmatpush.bf16.msra.mxu0 0
      %298 = vmatpush.bf16.msra.mxu0 0
      %299 = vmatpush.bf16.msra.mxu0 0
      %300 = vmatpush.bf16.msra.mxu0 0
      %301 = vmatpush.bf16.msra.mxu0 0
      %302 = vmatpush.bf16.msra.mxu0 0
      %303 = vmatpush.bf16.msra.mxu0 0
      %304 = vmatpush.bf16.msra.mxu0 %v229
      %305 = vmatmul.bf16.gmra.mxu0 %v295
      %v306 = vpop.f32.mrf.mxu0
      %v307 = vadd.f32 %v257, %v306
      %v308 = vpop.f32.mrf.mxu0
      %v309 = vadd.f32 %v259, %v308
      %310 = vdwg.mxu0
      %311 = vmatpush.bf16.msra.mxu0 0
      %312 = vmatpush.bf16.msra.mxu0 0
      %313 = vmatpush.bf16.msra.mxu0 0
      %314 = vmatpush.bf16.msra.mxu0 0
      %315 = vmatpush.bf16.msra.mxu0 0
      %316 = vmatpush.bf16.msra.mxu0 0
      %317 = vmatpush.bf16.msra.mxu0 0
      %318 = vmatpush.bf16.msra.mxu0 %v230
      %319 = vmatmul.bf16.gmra.mxu0 %v295
      %v320 = vpop.f32.mrf.mxu0
      %v321 = vadd.f32 %v271, %v320
      %v322 = vpop.f32.mrf.mxu0
      %v323 = vadd.f32 %v273, %v322
      %324 = vdwg.mxu0
      %325 = vmatpush.bf16.msra.mxu0 0
      %326 = vmatpush.bf16.msra.mxu0 0
      %327 = vmatpush.bf16.msra.mxu0 0
      %328 = vmatpush.bf16.msra.mxu0 0
      %329 = vmatpush.bf16.msra.mxu0 0
      %330 = vmatpush.bf16.msra.mxu0 0
      %331 = vmatpush.bf16.msra.mxu0 0
      %332 = vmatpush.bf16.msra.mxu0 %v231
      %333 = vmatmul.bf16.gmra.mxu0 %v295
      %v334 = vpop.f32.mrf.mxu0
      %v335 = vadd.f32 %v285, %v334
      %v336 = vpop.f32.mrf.mxu0
      %v337 = vadd.f32 %v287, %v336
      %338 = vdwg.mxu0
      %339 = vrot.lane.b32.xlu0 %v199, 127
      %v340 = vpop.permute.xlu0 %339
      %341 = vrot.lane.b32.xlu0 %v202, 127
      %v342 = vpop.permute.xlu0 %341
      %343 = vrot.lane.b32.xlu0 %v200, 127
      %v344 = vpop.permute.xlu0 %343
      %345 = vrot.lane.b32.xlu0 %v203, 127
      %v346 = vpop.permute.xlu0 %345
      %347 = vrot.lane.b32.xlu0 %v201, 127
      %v348 = vpop.permute.xlu0 %347
      %349 = vrot.lane.b32.xlu0 %v204, 127
      %v350 = vpop.permute.xlu0 %349
      %vm351 = vcmp.lt.s32.totalorder %v218, 127
      %v352 = vsel %vm351, %v344, %v348
      %v353 = vsel %vm351, %v346, %v350
      %v354 = vsel %vm351, %v340, %v344
      %v355 = vsel %vm351, %v342, %v346
      %v356 = vsel %vm351, %v348, %v340
      %v357 = vsel %vm351, %v350, %v342
      %s358 = scalar_lea.vmem %s1, 40
      %v359 = vld [vmem:[%s358] sm:$0xf]
      %v360 = vld [vmem:[%s358 + $0x4] sm:$0xf]
      %v361 = vpack.c.bf16 %v355, %v354
      %v362 = vpack.c.bf16 %v353, %v352
      %v363 = vpack.c.bf16 %v357, %v356
      %v366 = vunpack.c.l.b16 %v359
      %v367 = vunpack.c.l.b16 %v360
      %v368 = vpack.c.b16 %v367, %v366
      %v370 = vsel %vm243, %v368, 0
      %372 = vmatpush.bf16.msra.mxu0 0
      %373 = vmatpush.bf16.msra.mxu0 0
      %374 = vmatpush.bf16.msra.mxu0 0
      %375 = vmatpush.bf16.msra.mxu0 0
      %376 = vmatpush.bf16.msra.mxu0 0
      %377 = vmatpush.bf16.msra.mxu0 0
      %378 = vmatpush.bf16.msra.mxu0 0
      %379 = vmatpush.bf16.msra.mxu0 %v361
      %380 = vmatmul.bf16.gmra.mxu0 %v370
      %v381 = vpop.f32.mrf.mxu0
      %v382 = vadd.f32 0.0, %v381
      %v383 = vpop.f32.mrf.mxu0
      %v384 = vadd.f32 0.0, %v383
      %385 = vdwg.mxu0
      %386 = vmatpush.bf16.msra.mxu0 0
      %387 = vmatpush.bf16.msra.mxu0 0
      %388 = vmatpush.bf16.msra.mxu0 0
      %389 = vmatpush.bf16.msra.mxu0 0
      %390 = vmatpush.bf16.msra.mxu0 0
      %391 = vmatpush.bf16.msra.mxu0 0
      %392 = vmatpush.bf16.msra.mxu0 0
      %393 = vmatpush.bf16.msra.mxu0 %v362
      %394 = vmatmul.bf16.gmra.mxu0 %v370
      %v395 = vpop.f32.mrf.mxu0
      %v396 = vadd.f32 0.0, %v395
      %v397 = vpop.f32.mrf.mxu0
      %v398 = vadd.f32 0.0, %v397
      %399 = vdwg.mxu0
      %400 = vmatpush.bf16.msra.mxu0 0
      %401 = vmatpush.bf16.msra.mxu0 0
      %402 = vmatpush.bf16.msra.mxu0 0
      %403 = vmatpush.bf16.msra.mxu0 0
      %404 = vmatpush.bf16.msra.mxu0 0
      %405 = vmatpush.bf16.msra.mxu0 0
      %406 = vmatpush.bf16.msra.mxu0 0
      %407 = vmatpush.bf16.msra.mxu0 %v363
      %408 = vmatmul.bf16.gmra.mxu0 %v370
      %v409 = vpop.f32.mrf.mxu0
      %v410 = vadd.f32 0.0, %v409
      %v411 = vpop.f32.mrf.mxu0
      %v412 = vadd.f32 0.0, %v411
      %413 = vdwg.mxu0
      %v414 = vadd.f32 %v307, %v382
      %v415 = vadd.f32 %v321, %v396
      %v416 = vadd.f32 %v335, %v410
      %v417 = vadd.f32 %v309, %v384
      %v418 = vadd.f32 %v323, %v398
      %v419 = vadd.f32 %v337, %v412
      %420 = vrot.lane.b32.xlu0 %v199, 25
      %v421 = vpop.permute.xlu0 %420
      %422 = vrot.lane.b32.xlu0 %v202, 25
      %v423 = vpop.permute.xlu0 %422
      %424 = vrot.lane.b32.xlu0 %v200, 25
      %v425 = vpop.permute.xlu0 %424
      %426 = vrot.lane.b32.xlu0 %v203, 25
      %v427 = vpop.permute.xlu0 %426
      %428 = vrot.lane.b32.xlu0 %v201, 25
      %v429 = vpop.permute.xlu0 %428
      %430 = vrot.lane.b32.xlu0 %v204, 25
      %v431 = vpop.permute.xlu0 %430
      %vm432 = vcmp.lt.s32.totalorder %v218, 25
      %v433 = vsel %vm432, %v425, %v429
      %v434 = vsel %vm432, %v427, %v431
      %v435 = vsel %vm432, %v421, %v425
      %v436 = vsel %vm432, %v423, %v427
      %v437 = vsel %vm432, %v429, %v421
      %v438 = vsel %vm432, %v431, %v423
      %v439 = vld [vmem:[%s1] sm:$0xf]
      %v440 = vld [vmem:[%s1 + $0x4] sm:$0xf]
      %v441 = vpack.c.bf16 %v438, %v437
      %v442 = vpack.c.bf16 %v436, %v435
      %v443 = vpack.c.bf16 %v434, %v433
      %444 = vrot.lane.b32.xlu0 %v199, 24
      %v445 = vpop.permute.xlu0 %444
      %446 = vrot.lane.b32.xlu0 %v202, 24
      %v447 = vpop.permute.xlu0 %446
      %448 = vrot.lane.b32.xlu0 %v200, 24
      %v449 = vpop.permute.xlu0 %448
      %450 = vrot.lane.b32.xlu0 %v203, 24
      %v451 = vpop.permute.xlu0 %450
      %452 = vrot.lane.b32.xlu0 %v201, 24
      %v453 = vpop.permute.xlu0 %452
      %454 = vrot.lane.b32.xlu0 %v204, 24
      %v455 = vpop.permute.xlu0 %454
      %vm456 = vcmp.lt.s32.totalorder %v218, 24
      %v457 = vsel %vm456, %v449, %v453
      %v458 = vsel %vm456, %v451, %v455
      %v459 = vsel %vm456, %v445, %v449
      %v460 = vsel %vm456, %v447, %v451
      %v461 = vsel %vm456, %v453, %v445
      %v462 = vsel %vm456, %v455, %v447
      %s463 = scalar_lea.vmem %s1, 8
      %v464 = vld [vmem:[%s463] sm:$0xf]
      %v465 = vld [vmem:[%s463 + $0x4] sm:$0xf]
      %v466 = vpack.c.bf16 %v462, %v461
      %v467 = vpack.c.bf16 %v460, %v459
      %v468 = vpack.c.bf16 %v458, %v457
      %v471 = vunpack.c.l.b16 %v464
      %v472 = vunpack.c.l.b16 %v465
      %v473 = vpack.c.b16 %v472, %v471
      %v475 = vsel %vm243, %v473, 0
      %477 = vmatpush.bf16.msra.mxu0 0
      %478 = vmatpush.bf16.msra.mxu0 0
      %479 = vmatpush.bf16.msra.mxu0 0
      %480 = vmatpush.bf16.msra.mxu0 0
      %481 = vmatpush.bf16.msra.mxu0 0
      %482 = vmatpush.bf16.msra.mxu0 0
      %483 = vmatpush.bf16.msra.mxu0 0
      %484 = vmatpush.bf16.msra.mxu0 %v466
      %485 = vmatmul.bf16.gmra.mxu0 %v475
      %v486 = vpop.f32.mrf.mxu0
      %v487 = vadd.f32 0.0, %v486
      %v488 = vpop.f32.mrf.mxu0
      %v489 = vadd.f32 0.0, %v488
      %490 = vdwg.mxu0
      %491 = vmatpush.bf16.msra.mxu0 0
      %492 = vmatpush.bf16.msra.mxu0 0
      %493 = vmatpush.bf16.msra.mxu0 0
      %494 = vmatpush.bf16.msra.mxu0 0
      %495 = vmatpush.bf16.msra.mxu0 0
      %496 = vmatpush.bf16.msra.mxu0 0
      %497 = vmatpush.bf16.msra.mxu0 0
      %498 = vmatpush.bf16.msra.mxu0 %v467
      %499 = vmatmul.bf16.gmra.mxu0 %v475
      %v500 = vpop.f32.mrf.mxu0
      %v501 = vadd.f32 0.0, %v500
      %v502 = vpop.f32.mrf.mxu0
      %v503 = vadd.f32 0.0, %v502
      %504 = vdwg.mxu0
      %505 = vmatpush.bf16.msra.mxu0 0
      %506 = vmatpush.bf16.msra.mxu0 0
      %507 = vmatpush.bf16.msra.mxu0 0
      %508 = vmatpush.bf16.msra.mxu0 0
      %509 = vmatpush.bf16.msra.mxu0 0
      %510 = vmatpush.bf16.msra.mxu0 0
      %511 = vmatpush.bf16.msra.mxu0 0
      %512 = vmatpush.bf16.msra.mxu0 %v468
      %513 = vmatmul.bf16.gmra.mxu0 %v475
      %v514 = vpop.f32.mrf.mxu0
      %v515 = vadd.f32 0.0, %v514
      %v516 = vpop.f32.mrf.mxu0
      %v517 = vadd.f32 0.0, %v516
      %518 = vdwg.mxu0
      %v521 = vunpack.c.l.b16 %v439
      %v522 = vunpack.c.l.b16 %v440
      %v523 = vpack.c.b16 %v522, %v521
      %v525 = vsel %vm243, %v523, 0
      %527 = vmatpush.bf16.msra.mxu0 0
      %528 = vmatpush.bf16.msra.mxu0 0
      %529 = vmatpush.bf16.msra.mxu0 0
      %530 = vmatpush.bf16.msra.mxu0 0
      %531 = vmatpush.bf16.msra.mxu0 0
      %532 = vmatpush.bf16.msra.mxu0 0
      %533 = vmatpush.bf16.msra.mxu0 0
      %534 = vmatpush.bf16.msra.mxu0 %v441
      %535 = vmatmul.bf16.gmra.mxu0 %v525
      %v536 = vpop.f32.mrf.mxu0
      %v537 = vadd.f32 %v487, %v536
      %v538 = vpop.f32.mrf.mxu0
      %v539 = vadd.f32 %v489, %v538
      %540 = vdwg.mxu0
      %541 = vmatpush.bf16.msra.mxu0 0
      %542 = vmatpush.bf16.msra.mxu0 0
      %543 = vmatpush.bf16.msra.mxu0 0
      %544 = vmatpush.bf16.msra.mxu0 0
      %545 = vmatpush.bf16.msra.mxu0 0
      %546 = vmatpush.bf16.msra.mxu0 0
      %547 = vmatpush.bf16.msra.mxu0 0
      %548 = vmatpush.bf16.msra.mxu0 %v442
      %549 = vmatmul.bf16.gmra.mxu0 %v525
      %v550 = vpop.f32.mrf.mxu0
      %v551 = vadd.f32 %v501, %v550
      %v552 = vpop.f32.mrf.mxu0
      %v553 = vadd.f32 %v503, %v552
      %554 = vdwg.mxu0
      %555 = vmatpush.bf16.msra.mxu0 0
      %556 = vmatpush.bf16.msra.mxu0 0
      %557 = vmatpush.bf16.msra.mxu0 0
      %558 = vmatpush.bf16.msra.mxu0 0
      %559 = vmatpush.bf16.msra.mxu0 0
      %560 = vmatpush.bf16.msra.mxu0 0
      %561 = vmatpush.bf16.msra.mxu0 0
      %562 = vmatpush.bf16.msra.mxu0 %v443
      %563 = vmatmul.bf16.gmra.mxu0 %v525
      %v564 = vpop.f32.mrf.mxu0
      %v565 = vadd.f32 %v515, %v564
      %v566 = vpop.f32.mrf.mxu0
      %v567 = vadd.f32 %v517, %v566
      %568 = vdwg.mxu0
      %569 = vrot.lane.b32.xlu0 %v199, 23
      %v570 = vpop.permute.xlu0 %569
      %571 = vrot.lane.b32.xlu0 %v202, 23
      %v572 = vpop.permute.xlu0 %571
      %573 = vrot.lane.b32.xlu0 %v200, 23
      %v574 = vpop.permute.xlu0 %573
      %575 = vrot.lane.b32.xlu0 %v203, 23
      %v576 = vpop.permute.xlu0 %575
      %577 = vrot.lane.b32.xlu0 %v201, 23
      %v578 = vpop.permute.xlu0 %577
      %579 = vrot.lane.b32.xlu0 %v204, 23
      %v580 = vpop.permute.xlu0 %579
      %vm581 = vcmp.lt.s32.totalorder %v218, 23
      %v582 = vsel %vm581, %v574, %v578
      %v583 = vsel %vm581, %v576, %v580
      %v584 = vsel %vm581, %v570, %v574
      %v585 = vsel %vm581, %v572, %v576
      %v586 = vsel %vm581, %v578, %v570
      %v587 = vsel %vm581, %v580, %v572
      %s588 = scalar_lea.vmem %s1, 16
      %v589 = vld [vmem:[%s588] sm:$0xf]
      %v590 = vld [vmem:[%s588 + $0x4] sm:$0xf]
      %v591 = vpack.c.bf16 %v587, %v586
      %v592 = vpack.c.bf16 %v585, %v584
      %v593 = vpack.c.bf16 %v583, %v582
      %v596 = vunpack.c.l.b16 %v589
      %v597 = vunpack.c.l.b16 %v590
      %v598 = vpack.c.b16 %v597, %v596
      %v600 = vsel %vm243, %v598, 0
      %602 = vmatpush.bf16.msra.mxu0 0
      %603 = vmatpush.bf16.msra.mxu0 0
      %604 = vmatpush.bf16.msra.mxu0 0
      %605 = vmatpush.bf16.msra.mxu0 0
      %606 = vmatpush.bf16.msra.mxu0 0
      %607 = vmatpush.bf16.msra.mxu0 0
      %608 = vmatpush.bf16.msra.mxu0 0
      %609 = vmatpush.bf16.msra.mxu0 %v591
      %610 = vmatmul.bf16.gmra.mxu0 %v600
      %v611 = vpop.f32.mrf.mxu0
      %v612 = vadd.f32 0.0, %v611
      %v613 = vpop.f32.mrf.mxu0
      %v614 = vadd.f32 0.0, %v613
      %615 = vdwg.mxu0
      %616 = vmatpush.bf16.msra.mxu0 0
      %617 = vmatpush.bf16.msra.mxu0 0
      %618 = vmatpush.bf16.msra.mxu0 0
      %619 = vmatpush.bf16.msra.mxu0 0
      %620 = vmatpush.bf16.msra.mxu0 0
      %621 = vmatpush.bf16.msra.mxu0 0
      %622 = vmatpush.bf16.msra.mxu0 0
      %623 = vmatpush.bf16.msra.mxu0 %v592
      %624 = vmatmul.bf16.gmra.mxu0 %v600
      %v625 = vpop.f32.mrf.mxu0
      %v626 = vadd.f32 0.0, %v625
      %v627 = vpop.f32.mrf.mxu0
      %v628 = vadd.f32 0.0, %v627
      %629 = vdwg.mxu0
      %630 = vmatpush.bf16.msra.mxu0 0
      %631 = vmatpush.bf16.msra.mxu0 0
      %632 = vmatpush.bf16.msra.mxu0 0
      %633 = vmatpush.bf16.msra.mxu0 0
      %634 = vmatpush.bf16.msra.mxu0 0
      %635 = vmatpush.bf16.msra.mxu0 0
      %636 = vmatpush.bf16.msra.mxu0 0
      %637 = vmatpush.bf16.msra.mxu0 %v593
      %638 = vmatmul.bf16.gmra.mxu0 %v600
      %v639 = vpop.f32.mrf.mxu0
      %v640 = vadd.f32 0.0, %v639
      %v641 = vpop.f32.mrf.mxu0
      %v642 = vadd.f32 0.0, %v641
      %643 = vdwg.mxu0
      %v644 = vadd.f32 %v537, %v612
      %v645 = vadd.f32 %v551, %v626
      %v646 = vadd.f32 %v565, %v640
      %v647 = vadd.f32 %v539, %v614
      %v648 = vadd.f32 %v553, %v628
      %v649 = vadd.f32 %v567, %v642
      %v650 = vadd.s32 %v218, 128
      %v651 = vadd.s32 %v218, 256
      %vm652 = vcmp.ge.s32.totalorder %v218, 24
      %vm653 = vcmp.ge.s32.totalorder %v650, 24
      %vm654 = vcmp.ge.s32.totalorder %v651, 24
      %v655 = vsel %vm652, %v644, 0.0
      %v656 = vsel %vm653, %v645, 0.0
      %v657 = vsel %vm654, %v646, 0.0
      %v658 = vsel %vm652, %v647, 0.0
      %v659 = vsel %vm653, %v648, 0.0
      %v660 = vsel %vm654, %v649, 0.0
      %v661 = vadd.f32 %v414, %v655
      %v662 = vadd.f32 %v415, %v656
      %v663 = vadd.f32 %v416, %v657
      %v664 = vadd.f32 %v417, %v658
      %v665 = vadd.f32 %v418, %v659
      %v666 = vadd.f32 %v419, %v660
      %v667 = vld [vmem:[%s2] sm:$0xff]
      %v668 = vld [vmem:[%s2 + $0x8] sm:$0xff]
      %v669 = vld [vmem:[%s3] sm:$0x7]
      %671 = vset.pattern.permute.xlu0 0
      %672 = vperm.xlu0 %671, %v667
      %v673 = vpop.permute.xlu0 %672
      %676 = vset.pattern.permute.xlu0 0
      %677 = vperm.xlu0 %676, %v668
      %v678 = vpop.permute.xlu0 %677
      %v680 = vadd.f32 %v661, %v673
      %v681 = vadd.f32 %v662, %v673
      %v682 = vadd.f32 %v663, %v673
      %v683 = vadd.f32 %v664, %v678
      %v684 = vadd.f32 %v665, %v678
      %v685 = vadd.f32 %v666, %v678
      %v687 = vperm.slane %v669, 0
      %v688 = vperm.slane %v669, 1
      %v689 = vperm.slane %v669, 2
      %v693 = vmul.f32 %v680, %v687
      %v694 = vmul.f32 %v681, %v688
      %v695 = vmul.f32 %v682, %v689
      %v696 = vmul.f32 %v683, %v687
      %v697 = vmul.f32 %v684, %v688
      %v698 = vmul.f32 %v685, %v689
      %v699 = vadd.f32 %v693, %v694
      %v700 = vadd.f32 %v699, %v695
      %701 = vadd.xlane.f32.xlu0 %v700
      %v702 = vpop.xlane.xlu0 %701
      %v703 = vadd.f32 %v696, %v697
      %v704 = vadd.f32 %v703, %v698
      %705 = vadd.xlane.f32.xlu0 %v704
      %v706 = vpop.xlane.xlu0 %705
      %v707 = vmul.f32 %v702, 0.0036764706
      %v708 = vmul.f32 %v706, 0.0036764706
      %v709 = vmul.f32 %v693, %v693
      %v710 = vmul.f32 %v694, %v694
      %v711 = vmul.f32 %v695, %v695
      %v712 = vmul.f32 %v696, %v696
      %v713 = vmul.f32 %v697, %v697
      %v714 = vmul.f32 %v698, %v698
      %v715 = vadd.f32 %v709, %v710
      %v716 = vadd.f32 %v715, %v711
      %717 = vadd.xlane.f32.xlu0 %v716
      %v718 = vpop.xlane.xlu0 %717
      %v719 = vadd.f32 %v712, %v713
      %v720 = vadd.f32 %v719, %v714
      %721 = vadd.xlane.f32.xlu0 %v720
      %v722 = vpop.xlane.xlu0 %721
      %v723 = vmul.f32 %v718, 0.0036764706
      %v724 = vmul.f32 %v722, 0.0036764706
      %v725 = vmul.f32 %v707, %v707
      %v726 = vmul.f32 %v708, %v708
      %v727 = vsub.f32 %v723, %v725
      %v728 = vsub.f32 %v724, %v726
      %v729 = vadd.f32 %v727, 1e-05
      %v730 = vadd.f32 %v728, 1e-05
      %v731 = vrsqrt.pop %v729
      %v732 = vmul.f32 %v731, %v729
      %v733 = vmul.f32 %v732, %v731
      %v734 = vmul.f32 0.5, %v733
      %v735 = vsub.f32 1.5, %v734
      %v736 = vmul.f32 %v731, %v735
      %vm737 = vweird.f32 %v729
      %vm738 = vweird.f32 %v731
      %vm739 = vmor %vm737, %vm738
      %v740 = vsel %vm739, %v731, %v736
      %v741 = vrsqrt.pop %v730
      %v742 = vmul.f32 %v741, %v730
      %v743 = vmul.f32 %v742, %v741
      %v744 = vmul.f32 0.5, %v743
      %v745 = vsub.f32 1.5, %v744
      %v746 = vmul.f32 %v741, %v745
      %vm747 = vweird.f32 %v730
      %vm748 = vweird.f32 %v741
      %vm749 = vmor %vm747, %vm748
      %v750 = vsel %vm749, %v741, %v746
      %v751 = vmul.f32 %v667, %v740
      %v752 = vmul.f32 %v668, %v750
      %v753 = vmul.f32 %v707, %v751
      %v754 = vmul.f32 %v708, %v752
      %757 = vrot.lane.b32.xlu0 %v753, 1
      %v758 = vpop.permute.xlu0 %757
      %759 = vrot.lane.b32.xlu0 %v754, 1
      %v760 = vpop.permute.xlu0 %759
      %v763 = vsub.f32 %v667, %v758
      %v764 = vsub.f32 %v668, %v760
      %766 = vset.pattern.permute.xlu0 1
      %767 = vperm.xlu0 %766, %v751
      %v768 = vpop.permute.xlu0 %767
      %771 = vset.pattern.permute.xlu0 1
      %772 = vperm.xlu0 %771, %v752
      %v773 = vpop.permute.xlu0 %772
      %v775 = vmul.f32 %v680, %v768
      %v776 = vmul.f32 %v681, %v768
      %v777 = vmul.f32 %v682, %v768
      %v778 = vmul.f32 %v683, %v773
      %v779 = vmul.f32 %v684, %v773
      %v780 = vmul.f32 %v685, %v773
      %782 = vset.pattern.permute.xlu0 2
      %783 = vperm.xlu0 %782, %v763
      %v784 = vpop.permute.xlu0 %783
      %787 = vset.pattern.permute.xlu0 2
      %788 = vperm.xlu0 %787, %v764
      %v789 = vpop.permute.xlu0 %788
      %v791 = vadd.f32 %v775, %v784
      %v792 = vadd.f32 %v776, %v784
      %v793 = vadd.f32 %v777, %v784
      %v794 = vadd.f32 %v778, %v789
      %v795 = vadd.f32 %v779, %v789
      %v796 = vadd.f32 %v780, %v789
      %vm797 = vcmp.ge.f32.partialorder %v791, 0.0
      %vm798 = vcmp.ge.f32.partialorder %v792, 0.0
      %vm799 = vcmp.ge.f32.partialorder %v793, 0.0
      %vm800 = vcmp.ge.f32.partialorder %v794, 0.0
      %vm801 = vcmp.ge.f32.partialorder %v795, 0.0
      %vm802 = vcmp.ge.f32.partialorder %v796, 0.0
      %803 = vset.pattern.permute.xlu0 3
      %804 = vperm.xlu0 %803, %v667
      %v805 = vpop.permute.xlu0 %804
      %807 = vset.pattern.permute.xlu0 3
      %808 = vperm.xlu0 %807, %v668
      %v809 = vpop.permute.xlu0 %808
      %v811 = vmul.f32 %v805, %v791
      %v812 = vmul.f32 %v805, %v792
      %v813 = vmul.f32 %v805, %v793
      %v814 = vmul.f32 %v809, %v794
      %v815 = vmul.f32 %v809, %v795
      %v816 = vmul.f32 %v809, %v796
      %v817 = vsel %vm797, %v791, %v811
      %v818 = vsel %vm798, %v792, %v812
      %v819 = vsel %vm799, %v793, %v813
      %v820 = vsel %vm800, %v794, %v814
      %v821 = vsel %vm801, %v795, %v815
      %v822 = vsel %vm802, %v796, %v816
      %v823 = vmul.f32 %v817, %v687
      %v824 = vmul.f32 %v818, %v688
      %v825 = vmul.f32 %v819, %v689
      %v826 = vmul.f32 %v820, %v687
      %v827 = vmul.f32 %v821, %v688
      %v828 = vmul.f32 %v822, %v689
      %829 = vst [vmem:[%s197] sm:$0xff] %v823
      %830 = vst [vmem:[%s197 + $0x8] sm:$0xff] %v824
      %831 = vst [vmem:[%s197 + $0x10] sm:$0xff] %v825
      %832 = vst [vmem:[%s197 + $0x18] sm:$0xff] %v826
      %833 = vst [vmem:[%s197 + $0x20] sm:$0xff] %v827
      %834 = vst [vmem:[%s197 + $0x28] sm:$0xff] %v828
      %p835 = scmp.lt.s32.totalorder %s15, 1
      %s836 = scalar_select %p835, %s15, 1
      %s837 = smul.addr %s836, 6
      %s838 = smul.addr %s837, 8
      %s839 = scalar_lea.vmem %s4, %s838
      // Predicated region
      $region37: #{dilated_dense_net.4} parent=35 // pred_check
        %p840 = pneg %p122
      $region38: #{dilated_dense_net.4} parent=35 // pred_check_branch
        %842 = sbr.rel (%p840) target = $region40
      $region39: #{dilated_dense_net.4} parent=35 // pred_region
        _
      $region40: #{dilated_dense_net.4} parent=35 // pred_fallthru
        _
    $region36: #{dilated_dense_net.4} parent=5 // pred_fallthru
      _
    %p843 = scmp.le.s32.totalorder 2, %s10
    // Predicated region
    $region41: #{dilated_dense_net.4} parent=5 // pred_check
      %p844 = pneg %p843
    $region42: #{dilated_dense_net.4} parent=5 // pred_check_branch
      %846 = sbr.rel (%p844) target = $region44
    $region43: #{dilated_dense_net.4} parent=5 // pred_region
      %s847 = ssub.s32 %s10, 2
      // Predicated region
      $region45: #{dilated_dense_net.4} parent=43 // pred_check
        %p848 = pneg %p128
      $region46: #{dilated_dense_net.4} parent=43 // pred_check_branch
        %850 = sbr.rel (%p848) target = $region48
      $region47: #{dilated_dense_net.4} parent=43 // pred_region
        %p851 = scmp.lt.s32.totalorder %s16, 1
        %s852 = scalar_select %p851, %s16, 1
        %s853 = smul.addr %s852, 6
        %s854 = smul.addr %s853, 8
        %s855 = scalar_lea.vmem %s4, %s854
      $region48: #{dilated_dense_net.4} parent=43 // pred_fallthru
        _
    $region44: #{dilated_dense_net.4} parent=5 // pred_fallthru
      _
  $region6: #{dilated_dense_net.4} parent=0 // loop_footer
    %s14 = sadd.s32 1, %s10
  $region7: #{dilated_dense_net.4} parent=0 // loop_footer_branch
    %9 = sbr.rel target = $region3
  $region8: #{dilated_dense_net.4} parent=0 // loop_exit
    _

// kernel: dilated_dense_net.5
$region0: #{dilated_dense_net.5}
  #allocation0 [shape = 'u32[]', space=smem, size = 0x4, offset = 0x4, fixed_abs, tag = 'smem constant byte address 0x4 - core index']
  #allocation1 [shape = 'u32[72,128]{1,0:T(1,128)}', space=vmem, size = 0x9000, scoped, tag = 'internal scratch']
  %s0 = inlined_call_operand.vmem [shape: f32[2,32,384], index: 0, kind: input, shape index: {}]
  %s1 = inlined_call_operand.vmem [shape: bf16[6,16,32], index: 1, kind: input, shape index: {}]
  %s2 = inlined_call_operand.vmem [shape: f32[16,4], index: 2, kind: input, shape index: {}]
  %s3 = inlined_call_operand.vmem [shape: f32[1,384], index: 3, kind: input, shape index: {}]
  %s4 = inlined_call_operand.vmem [shape: f32[2,16,384], index: 4, kind: output, shape index: {}]
  %s5 = sld [smem:[#allocation0]]
  $region49: #{dilated_dense_net.5} parent=0
    _
  %s7 = ssub.s32 1, %s5
  %s8 = scalar_select 0, %s7, %s5
  loop: start=0, step=1, limit=4
  $region2: #{dilated_dense_net.5} parent=0 // loop_pre_header
    _
  $region3: #{dilated_dense_net.5} parent=0 // loop_header
    %s10 = sphi 0, %s14
    %p11 = scmp.ge.s32.totalorder %s10, 4
    %s20 = sphi 0, %s22
    %s23 = sphi 0, %s20
    %s24 = sphi 0, %s23
    %s40 = sphi 0, %s24
    %s44 = sphi 0, %s44
    %s46 = sphi 0, %s44
    %s47 = sphi 0, %s46
    %s61 = sphi 0, %s47
    %s65 = sphi 0, %s65
    %s67 = sphi 0, %s65
    %s68 = sphi 0, %s67
    %s82 = sphi 0, %s68
    %s86 = sphi 0, %s86
    %s88 = sphi 0, %s86
    %s89 = sphi 0, %s88
    %s103 = sphi 0, %s89
    %s109 = sphi 0, %s111
    %s112 = sphi 0, %s109
    %s113 = sphi 0, %s112
    %s129 = sphi 0, %s113
  $region4: #{dilated_dense_net.5} parent=0 // loop_header_branch
    %13 = sbr.rel (%p11) target = $region8
  $region5: #{dilated_dense_net.5} parent=0 // loop_body
    %s15 = ssub.s32 %s10, 1
    %s16 = ssub.s32 %s10, 2
    %s17 = sadd.s32 %s10, 1
    %s18 = ssub.s32 %s10, %s17
    %p19 = scmp.eq.s32.totalorder %s18, 0
    %s21 = sadd.s32 %s20, 1
    %s22 = scalar_select %p19, %s20, %s21
    %p25 = pneg %p19
    %p26 = scmp.eq.s32.totalorder %s10, 1
    %p27 = por %p25, %p26
    %p28 = scmp.ne.s32.totalorder %s20, %s23
    %p29 = scmp.eq.s32.totalorder %s10, 0
    %p30 = por %p28, %p29
    %p31 = scmp.ne.s32.totalorder %s20, %s23
    %p32 = scmp.eq.s32.totalorder %s15, 1
    %p33 = por %p31, %p32
    %p34 = scmp.ne.s32.totalorder %s23, %s24
    %p35 = scmp.eq.s32.totalorder %s15, 0
    %p36 = por %p34, %p35
    %p37 = scmp.ne.s32.totalorder %s23, %s24
    %p38 = scmp.eq.s32.totalorder %s16, 1
    %p39 = por %p37, %p38
    %p41 = scmp.ne.s32.totalorder %s24, %s40
    %p42 = scmp.eq.s32.totalorder %s16, 0
    %p43 = por %p41, %p42
    %s45 = sadd.s32 %s44, 1
    %p48 = scmp.eq.s32.totalorder %s10, 1
    %p49 = scmp.ne.s32.totalorder %s44, %s46
    %p50 = scmp.eq.s32.totalorder %s10, 0
    %p51 = por %p49, %p50
    %p52 = scmp.ne.s32.totalorder %s44, %s46
    %p53 = scmp.eq.s32.totalorder %s15, 1
    %p54 = por %p52, %p53
    %p55 = scmp.ne.s32.totalorder %s46, %s47
    %p56 = scmp.eq.s32.totalorder %s15, 0
    %p57 = por %p55, %p56
    %p58 = scmp.ne.s32.totalorder %s46, %s47
    %p59 = scmp.eq.s32.totalorder %s16, 1
    %p60 = por %p58, %p59
    %p62 = scmp.ne.s32.totalorder %s47, %s61
    %p63 = scmp.eq.s32.totalorder %s16, 0
    %p64 = por %p62, %p63
    %s66 = sadd.s32 %s65, 1
    %p69 = scmp.eq.s32.totalorder %s10, 1
    %p70 = scmp.ne.s32.totalorder %s65, %s67
    %p71 = scmp.eq.s32.totalorder %s10, 0
    %p72 = por %p70, %p71
    %p73 = scmp.ne.s32.totalorder %s65, %s67
    %p74 = scmp.eq.s32.totalorder %s15, 1
    %p75 = por %p73, %p74
    %p76 = scmp.ne.s32.totalorder %s67, %s68
    %p77 = scmp.eq.s32.totalorder %s15, 0
    %p78 = por %p76, %p77
    %p79 = scmp.ne.s32.totalorder %s67, %s68
    %p80 = scmp.eq.s32.totalorder %s16, 1
    %p81 = por %p79, %p80
    %p83 = scmp.ne.s32.totalorder %s68, %s82
    %p84 = scmp.eq.s32.totalorder %s16, 0
    %p85 = por %p83, %p84
    %s87 = sadd.s32 %s86, 1
    %p90 = scmp.eq.s32.totalorder %s10, 1
    %p91 = scmp.ne.s32.totalorder %s86, %s88
    %p92 = scmp.eq.s32.totalorder %s10, 0
    %p93 = por %p91, %p92
    %p94 = scmp.ne.s32.totalorder %s86, %s88
    %p95 = scmp.eq.s32.totalorder %s15, 1
    %p96 = por %p94, %p95
    %p97 = scmp.ne.s32.totalorder %s88, %s89
    %p98 = scmp.eq.s32.totalorder %s15, 0
    %p99 = por %p97, %p98
    %p100 = scmp.ne.s32.totalorder %s88, %s89
    %p101 = scmp.eq.s32.totalorder %s16, 1
    %p102 = por %p100, %p101
    %p104 = scmp.ne.s32.totalorder %s89, %s103
    %p105 = scmp.eq.s32.totalorder %s16, 0
    %p106 = por %p104, %p105
    %s107 = ssub.s32 %s10, %s17
    %p108 = scmp.eq.s32.totalorder %s107, 0
    %s110 = sadd.s32 %s109, 1
    %s111 = scalar_select %p108, %s109, %s110
    %p114 = pneg %p108
    %p115 = scmp.eq.s32.totalorder %s10, 1
    %p116 = por %p114, %p115
    %p117 = scmp.ne.s32.totalorder %s109, %s112
    %p118 = scmp.eq.s32.totalorder %s10, 0
    %p119 = por %p117, %p118
    %p120 = scmp.ne.s32.totalorder %s109, %s112
    %p121 = scmp.eq.s32.totalorder %s15, 1
    %p122 = por %p120, %p121
    %p123 = scmp.ne.s32.totalorder %s112, %s113
    %p124 = scmp.eq.s32.totalorder %s15, 0
    %p125 = por %p123, %p124
    %p126 = scmp.ne.s32.totalorder %s112, %s113
    %p127 = scmp.eq.s32.totalorder %s16, 1
    %p128 = por %p126, %p127
    %p130 = scmp.ne.s32.totalorder %s113, %s129
    %p131 = scmp.eq.s32.totalorder %s16, 0
    %p132 = por %p130, %p131
    %p133 = scmp.le.s32.totalorder 1, %s10
    %p134 = scmp.lt.s32.totalorder %s10, 3
    %p135 = pnand %p133, %p134
    %p136 = pneg %p135
    // Predicated region
    $region9: #{dilated_dense_net.5} parent=5 // pred_check
      _
    $region10: #{dilated_dense_net.5} parent=5 // pred_check_branch
      %138 = sbr.rel (%p135) target = $region12
    $region11: #{dilated_dense_net.5} parent=5 // pred_region
      %s139 = ssub.s32 %s10, 1
      // Predicated region
      $region13: #{dilated_dense_net.5} parent=11 // pred_check
        %p140 = pneg %p57
      $region14: #{dilated_dense_net.5} parent=11 // pred_check_branch
        %142 = sbr.rel (%p140) target = $region16
      $region15: #{dilated_dense_net.5} parent=11 // pred_region
        _
      $region16: #{dilated_dense_net.5} parent=11 // pred_fallthru
        _
      // Predicated region
      $region17: #{dilated_dense_net.5} parent=11 // pred_check
        %p143 = pneg %p78
      $region18: #{dilated_dense_net.5} parent=11 // pred_check_branch
        %145 = sbr.rel (%p143) target = $region20
      $region19: #{dilated_dense_net.5} parent=11 // pred_region
        _
      $region20: #{dilated_dense_net.5} parent=11 // pred_fallthru
        _
      // Predicated region
      $region21: #{dilated_dense_net.5} parent=11 // pred_check
        %p146 = pneg %p99
      $region22: #{dilated_dense_net.5} parent=11 // pred_check_branch
        %148 = sbr.rel (%p146) target = $region24
      $region23: #{dilated_dense_net.5} parent=11 // pred_region
        _
      $region24: #{dilated_dense_net.5} parent=11 // pred_fallthru
        _
    $region12: #{dilated_dense_net.5} parent=5 // pred_fallthru
      _
    %p149 = scmp.lt.s32.totalorder %s10, 2
    // Predicated region
    $region25: #{dilated_dense_net.5} parent=5 // pred_check
      %p150 = pneg %p149
    $region26: #{dilated_dense_net.5} parent=5 // pred_check_branch
      %152 = sbr.rel (%p150) target = $region28
    $region27: #{dilated_dense_net.5} parent=5 // pred_region
      // Predicated region
      $region29: #{dilated_dense_net.5} parent=27 // pred_check
        %p153 = pneg %p30
      $region30: #{dilated_dense_net.5} parent=27 // pred_check_branch
        %155 = sbr.rel (%p153) target = $region32
      $region31: #{dilated_dense_net.5} parent=27 // pred_region
        %p156 = scmp.lt.s32.totalorder %s10, 1
        %s157 = scalar_select %p156, %s10, 1
        %s158 = smul.addr %s157, 12
        %s159 = smul.addr %s158, 8
        %s160 = scalar_lea.vmem %s0, %s159
      $region32: #{dilated_dense_net.5} parent=27 // pred_fallthru
        _
    $region28: #{dilated_dense_net.5} parent=5 // pred_fallthru
      _
    %p161 = scmp.le.s32.totalorder 1, %s10
    %p162 = scmp.lt.s32.totalorder %s10, 3
    %p163 = pnand %p161, %p162
    %p164 = pneg %p163
    // Predicated region
    $region33: #{dilated_dense_net.5} parent=5 // pred_check
      _
    $region34: #{dilated_dense_net.5} parent=5 // pred_check_branch
      %166 = sbr.rel (%p163) target = $region36
    $region35: #{dilated_dense_net.5} parent=5 // pred_region
      %s167 = ssub.s32 %s10, 1
      %p168 = scmp.lt.s32.totalorder %s15, 1
      %s169 = scalar_select %p168, %s15, 1
      %s170 = smul.addr %s169, 12
      %s171 = smul.addr %s170, 8
      %s172 = scalar_lea.vmem %s0, %s171
      %p173 = pneg %p36
      %p174 = pneg %p33
      %p175 = pneg %p57
      %p176 = pneg %p54
      %p177 = pneg %p78
      %p178 = pneg %p75
      %p179 = pneg %p99
      %p180 = pneg %p96
      %p181 = pneg %p125
      %p182 = pneg %p122
      %p183 = scmp.lt.s32.totalorder %s15, 1
      %s184 = scalar_select %p183, %s15, 1
      %s185 = smul.addr %s184, 6
      %s186 = smul.addr %s185, 8
      %s187 = scalar_lea.vmem %s4, %s186
      %p188 = scmp.lt.s32.totalorder %s15, 1
      %s189 = scalar_select %p188, %s15, 1
      %s190 = smul.addr %s189, 12
      %s191 = smul.addr %s190, 8
      %s192 = scalar_lea.vmem %s0, %s191
      %p193 = scmp.lt.s32.totalorder %s15, 1
      %s194 = scalar_select %p193, %s15, 1
      %s195 = smul.addr %s194, 6
      %s196 = smul.addr %s195, 8
      %s197 = scalar_lea.vmem %s4, %s196
      %v199 = vld [vmem:[%s192] sm:$0xff]
      %v200 = vld [vmem:[%s192 + $0x8] sm:$0xff]
      %v201 = vld [vmem:[%s192 + $0x10] sm:$0xff]
      %v202 = vld [vmem:[%s192 + $0x18] sm:$0xff]
      %v203 = vld [vmem:[%s192 + $0x20] sm:$0xff]
      %v204 = vld [vmem:[%s192 + $0x28] sm:$0xff]
      %v205 = vld [vmem:[%s192 + $0x30] sm:$0xff]
      %v206 = vld [vmem:[%s192 + $0x38] sm:$0xff]
      %v207 = vld [vmem:[%s192 + $0x40] sm:$0xff]
      %v208 = vld [vmem:[%s192 + $0x48] sm:$0xff]
      %v209 = vld [vmem:[%s192 + $0x50] sm:$0xff]
      %v210 = vld [vmem:[%s192 + $0x58] sm:$0xff]
      %211 = vrot.lane.b32.xlu0 %v199, 1
      %v212 = vpop.permute.xlu0 %211
      %213 = vrot.lane.b32.xlu0 %v202, 1
      %v214 = vpop.permute.xlu0 %213
      %215 = vrot.lane.b32.xlu0 %v205, 1
      %v216 = vpop.permute.xlu0 %215
      %217 = vrot.lane.b32.xlu0 %v208, 1
      %v218 = vpop.permute.xlu0 %217
      %219 = vrot.lane.b32.xlu0 %v200, 1
      %v220 = vpop.permute.xlu0 %219
      %221 = vrot.lane.b32.xlu0 %v203, 1
      %v222 = vpop.permute.xlu0 %221
      %223 = vrot.lane.b32.xlu0 %v206, 1
      %v224 = vpop.permute.xlu0 %223
      %225 = vrot.lane.b32.xlu0 %v209, 1
      %v226 = vpop.permute.xlu0 %225
      %227 = vrot.lane.b32.xlu0 %v201, 1
      %v228 = vpop.permute.xlu0 %227
      %229 = vrot.lane.b32.xlu0 %v204, 1
      %v230 = vpop.permute.xlu0 %229
      %231 = vrot.lane.b32.xlu0 %v207, 1
      %v232 = vpop.permute.xlu0 %231
      %233 = vrot.lane.b32.xlu0 %v210, 1
      %v234 = vpop.permute.xlu0 %233
      %v235 = vlaneseq
      %v236 = vand.u32 %v235, 127
      %vm237 = vcmp.lt.s32.totalorder %v236, 1
      %v238 = vsel %vm237, %v220, %v228
      %v239 = vsel %vm237, %v222, %v230
      %v240 = vsel %vm237, %v224, %v232
      %v241 = vsel %vm237, %v226, %v234
      %v242 = vsel %vm237, %v212, %v220
      %v243 = vsel %vm237, %v214, %v222
      %v244 = vsel %vm237, %v216, %v224
      %v245 = vsel %vm237, %v218, %v226
      %v246 = vsel %vm237, %v228, %v212
      %v247 = vsel %vm237, %v230, %v214
      %v248 = vsel %vm237, %v232, %v216
      %v249 = vsel %vm237, %v234, %v218
      %s250 = scalar_lea.vmem %s1, 24
      %v251 = vld [vmem:[%s250] sm:$0xf]
      %v252 = vld [vmem:[%s250 + $0x4] sm:$0xf]
      %v253 = vpack.c.bf16 %v247, %v246
      %v254 = vpack.c.bf16 %v243, %v242
      %v255 = vpack.c.bf16 %v239, %v238
      %v256 = vpack.c.bf16 %v249, %v248
      %v257 = vpack.c.bf16 %v245, %v244
      %v258 = vpack.c.bf16 %v241, %v240
      %s259 = scalar_lea.vmem %s1, 32
      %v260 = vld [vmem:[%s259] sm:$0xf]
      %v261 = vld [vmem:[%s259 + $0x4] sm:$0xf]
      %v262 = vpack.c.bf16 %v202, %v199
      %v263 = vpack.c.bf16 %v203, %v200
      %v264 = vpack.c.bf16 %v204, %v201
      %v265 = vpack.c.bf16 %v208, %v205
      %v266 = vpack.c.bf16 %v209, %v206
      %v267 = vpack.c.bf16 %v210, %v207
      %v270 = vunpack.c.l.b16 %v260
      %v271 = vunpack.c.l.b16 %v261
      %v272 = vpack.c.b16 %v271, %v270
      %vm273 = vcmask 261120
      %v275 = vsel %vm273, %v272, 0
      %277 = vmatpush.bf16.msra.mxu0 0
      %278 = vmatpush.bf16.msra.mxu0 0
      %279 = vmatpush.bf16.msra.mxu0 0
      %280 = vmatpush.bf16.msra.mxu0 0
      %281 = vmatpush.bf16.msra.mxu0 0
      %282 = vmatpush.bf16.msra.mxu0 0
      %283 = vmatpush.bf16.msra.mxu0 %v265
      %284 = vmatpush.bf16.msra.mxu0 %v262
      %285 = vmatmul.bf16.gmra.mxu0 %v275
      %v286 = vpop.f32.mrf.mxu0
      %v287 = vadd.f32 0.0, %v286
      %v288 = vpop.f32.mrf.mxu0
      %v289 = vadd.f32 0.0, %v288
      %290 = vdwg.mxu0
      %291 = vmatpush.bf16.msra.mxu0 0
      %292 = vmatpush.bf16.msra.mxu0 0
      %293 = vmatpush.bf16.msra.mxu0 0
      %294 = vmatpush.bf16.msra.mxu0 0
      %295 = vmatpush.bf16.msra.mxu0 0
      %296 = vmatpush.bf16.msra.mxu0 0
      %297 = vmatpush.bf16.msra.mxu0 %v266
      %298 = vmatpush.bf16.msra.mxu0 %v263
      %299 = vmatmul.bf16.gmra.mxu0 %v275
      %v300 = vpop.f32.mrf.mxu0
      %v301 = vadd.f32 0.0, %v300
      %v302 = vpop.f32.mrf.mxu0
      %v303 = vadd.f32 0.0, %v302
      %304 = vdwg.mxu0
      %305 = vmatpush.bf16.msra.mxu0 0
      %306 = vmatpush.bf16.msra.mxu0 0
      %307 = vmatpush.bf16.msra.mxu0 0
      %308 = vmatpush.bf16.msra.mxu0 0
      %309 = vmatpush.bf16.msra.mxu0 0
      %310 = vmatpush.bf16.msra.mxu0 0
      %311 = vmatpush.bf16.msra.mxu0 %v267
      %312 = vmatpush.bf16.msra.mxu0 %v264
      %313 = vmatmul.bf16.gmra.mxu0 %v275
      %v314 = vpop.f32.mrf.mxu0
      %v315 = vadd.f32 0.0, %v314
      %v316 = vpop.f32.mrf.mxu0
      %v317 = vadd.f32 0.0, %v316
      %318 = vdwg.mxu0
      %v321 = vunpack.c.l.b16 %v251
      %v322 = vunpack.c.l.b16 %v252
      %v323 = vpack.c.b16 %v322, %v321
      %v325 = vsel %vm273, %v323, 0
      %327 = vmatpush.bf16.msra.mxu0 0
      %328 = vmatpush.bf16.msra.mxu0 0
      %329 = vmatpush.bf16.msra.mxu0 0
      %330 = vmatpush.bf16.msra.mxu0 0
      %331 = vmatpush.bf16.msra.mxu0 0
      %332 = vmatpush.bf16.msra.mxu0 0
      %333 = vmatpush.bf16.msra.mxu0 %v256
      %334 = vmatpush.bf16.msra.mxu0 %v253
      %335 = vmatmul.bf16.gmra.mxu0 %v325
      %v336 = vpop.f32.mrf.mxu0
      %v337 = vadd.f32 %v287, %v336
      %v338 = vpop.f32.mrf.mxu0
      %v339 = vadd.f32 %v289, %v338
      %340 = vdwg.mxu0
      %341 = vmatpush.bf16.msra.mxu0 0
      %342 = vmatpush.bf16.msra.mxu0 0
      %343 = vmatpush.bf16.msra.mxu0 0
      %344 = vmatpush.bf16.msra.mxu0 0
      %345 = vmatpush.bf16.msra.mxu0 0
      %346 = vmatpush.bf16.msra.mxu0 0
      %347 = vmatpush.bf16.msra.mxu0 %v257
      %348 = vmatpush.bf16.msra.mxu0 %v254
      %349 = vmatmul.bf16.gmra.mxu0 %v325
      %v350 = vpop.f32.mrf.mxu0
      %v351 = vadd.f32 %v301, %v350
      %v352 = vpop.f32.mrf.mxu0
      %v353 = vadd.f32 %v303, %v352
      %354 = vdwg.mxu0
      %355 = vmatpush.bf16.msra.mxu0 0
      %356 = vmatpush.bf16.msra.mxu0 0
      %357 = vmatpush.bf16.msra.mxu0 0
      %358 = vmatpush.bf16.msra.mxu0 0
      %359 = vmatpush.bf16.msra.mxu0 0
      %360 = vmatpush.bf16.msra.mxu0 0
      %361 = vmatpush.bf16.msra.mxu0 %v258
      %362 = vmatpush.bf16.msra.mxu0 %v255
      %363 = vmatmul.bf16.gmra.mxu0 %v325
      %v364 = vpop.f32.mrf.mxu0
      %v365 = vadd.f32 %v315, %v364
      %v366 = vpop.f32.mrf.mxu0
      %v367 = vadd.f32 %v317, %v366
      %368 = vdwg.mxu0
      %369 = vrot.lane.b32.xlu0 %v199, 127
      %v370 = vpop.permute.xlu0 %369
      %371 = vrot.lane.b32.xlu0 %v202, 127
      %v372 = vpop.permute.xlu0 %371
      %373 = vrot.lane.b32.xlu0 %v205, 127
      %v374 = vpop.permute.xlu0 %373
      %375 = vrot.lane.b32.xlu0 %v208, 127
      %v376 = vpop.permute.xlu0 %375
      %377 = vrot.lane.b32.xlu0 %v200, 127
      %v378 = vpop.permute.xlu0 %377
      %379 = vrot.lane.b32.xlu0 %v203, 127
      %v380 = vpop.permute.xlu0 %379
      %381 = vrot.lane.b32.xlu0 %v206, 127
      %v382 = vpop.permute.xlu0 %381
      %383 = vrot.lane.b32.xlu0 %v209, 127
      %v384 = vpop.permute.xlu0 %383
      %385 = vrot.lane.b32.xlu0 %v201, 127
      %v386 = vpop.permute.xlu0 %385
      %387 = vrot.lane.b32.xlu0 %v204, 127
      %v388 = vpop.permute.xlu0 %387
      %389 = vrot.lane.b32.xlu0 %v207, 127
      %v390 = vpop.permute.xlu0 %389
      %391 = vrot.lane.b32.xlu0 %v210, 127
      %v392 = vpop.permute.xlu0 %391
      %vm393 = vcmp.lt.s32.totalorder %v236, 127
      %v394 = vsel %vm393, %v378, %v386
      %v395 = vsel %vm393, %v380, %v388
      %v396 = vsel %vm393, %v382, %v390
      %v397 = vsel %vm393, %v384, %v392
      %v398 = vsel %vm393, %v370, %v378
      %v399 = vsel %vm393, %v372, %v380
      %v400 = vsel %vm393, %v374, %v382
      %v401 = vsel %vm393, %v376, %v384
      %v402 = vsel %vm393, %v386, %v370
      %v403 = vsel %vm393, %v388, %v372
      %v404 = vsel %vm393, %v390, %v374
      %v405 = vsel %vm393, %v392, %v376
      %s406 = scalar_lea.vmem %s1, 40
      %v407 = vld [vmem:[%s406] sm:$0xf]
      %v408 = vld [vmem:[%s406 + $0x4] sm:$0xf]
      %v409 = vpack.c.bf16 %v399, %v398
      %v410 = vpack.c.bf16 %v395, %v394
      %v411 = vpack.c.bf16 %v403, %v402
      %v412 = vpack.c.bf16 %v401, %v400
      %v413 = vpack.c.bf16 %v397, %v396
      %v414 = vpack.c.bf16 %v405, %v404
      %v417 = vunpack.c.l.b16 %v407
      %v418 = vunpack.c.l.b16 %v408
      %v419 = vpack.c.b16 %v418, %v417
      %v421 = vsel %vm273, %v419, 0
      %423 = vmatpush.bf16.msra.mxu0 0
      %424 = vmatpush.bf16.msra.mxu0 0
      %425 = vmatpush.bf16.msra.mxu0 0
      %426 = vmatpush.bf16.msra.mxu0 0
      %427 = vmatpush.bf16.msra.mxu0 0
      %428 = vmatpush.bf16.msra.mxu0 0
      %429 = vmatpush.bf16.msra.mxu0 %v412
      %430 = vmatpush.bf16.msra.mxu0 %v409
      %431 = vmatmul.bf16.gmra.mxu0 %v421
      %v432 = vpop.f32.mrf.mxu0
      %v433 = vadd.f32 0.0, %v432
      %v434 = vpop.f32.mrf.mxu0
      %v435 = vadd.f32 0.0, %v434
      %436 = vdwg.mxu0
      %437 = vmatpush.bf16.msra.mxu0 0
      %438 = vmatpush.bf16.msra.mxu0 0
      %439 = vmatpush.bf16.msra.mxu0 0
      %440 = vmatpush.bf16.msra.mxu0 0
      %441 = vmatpush.bf16.msra.mxu0 0
      %442 = vmatpush.bf16.msra.mxu0 0
      %443 = vmatpush.bf16.msra.mxu0 %v413
      %444 = vmatpush.bf16.msra.mxu0 %v410
      %445 = vmatmul.bf16.gmra.mxu0 %v421
      %v446 = vpop.f32.mrf.mxu0
      %v447 = vadd.f32 0.0, %v446
      %v448 = vpop.f32.mrf.mxu0
      %v449 = vadd.f32 0.0, %v448
      %450 = vdwg.mxu0
      %451 = vmatpush.bf16.msra.mxu0 0
      %452 = vmatpush.bf16.msra.mxu0 0
      %453 = vmatpush.bf16.msra.mxu0 0
      %454 = vmatpush.bf16.msra.mxu0 0
      %455 = vmatpush.bf16.msra.mxu0 0
      %456 = vmatpush.bf16.msra.mxu0 0
      %457 = vmatpush.bf16.msra.mxu0 %v414
      %458 = vmatpush.bf16.msra.mxu0 %v411
      %459 = vmatmul.bf16.gmra.mxu0 %v421
      %v460 = vpop.f32.mrf.mxu0
      %v461 = vadd.f32 0.0, %v460
      %v462 = vpop.f32.mrf.mxu0
      %v463 = vadd.f32 0.0, %v462
      %464 = vdwg.mxu0
      %v465 = vadd.f32 %v337, %v433
      %v466 = vadd.f32 %v351, %v447
      %v467 = vadd.f32 %v365, %v461
      %v468 = vadd.f32 %v339, %v435
      %v469 = vadd.f32 %v353, %v449
      %v470 = vadd.f32 %v367, %v463
      %471 = vrot.lane.b32.xlu0 %v199, 49
      %v472 = vpop.permute.xlu0 %471
      %473 = vrot.lane.b32.xlu0 %v202, 49
      %v474 = vpop.permute.xlu0 %473
      %475 = vrot.lane.b32.xlu0 %v205, 49
      %v476 = vpop.permute.xlu0 %475
      %477 = vrot.lane.b32.xlu0 %v208, 49
      %v478 = vpop.permute.xlu0 %477
      %479 = vrot.lane.b32.xlu0 %v200, 49
      %v480 = vpop.permute.xlu0 %479
      %481 = vrot.lane.b32.xlu0 %v203, 49
      %v482 = vpop.permute.xlu0 %481
      %483 = vrot.lane.b32.xlu0 %v206, 49
      %v484 = vpop.permute.xlu0 %483
      %485 = vrot.lane.b32.xlu0 %v209, 49
      %v486 = vpop.permute.xlu0 %485
      %487 = vrot.lane.b32.xlu0 %v201, 49
      %v488 = vpop.permute.xlu0 %487
      %489 = vrot.lane.b32.xlu0 %v204, 49
      %v490 = vpop.permute.xlu0 %489
      %491 = vrot.lane.b32.xlu0 %v207, 49
      %v492 = vpop.permute.xlu0 %491
      %493 = vrot.lane.b32.xlu0 %v210, 49
      %v494 = vpop.permute.xlu0 %493
      %vm495 = vcmp.lt.s32.totalorder %v236, 49
      %v496 = vsel %vm495, %v480, %v488
      %v497 = vsel %vm495, %v482, %v490
      %v498 = vsel %vm495, %v484, %v492
      %v499 = vsel %vm495, %v486, %v494
      %v500 = vsel %vm495, %v472, %v480
      %v501 = vsel %vm495, %v474, %v482
      %v502 = vsel %vm495, %v476, %v484
      %v503 = vsel %vm495, %v478, %v486
      %v504 = vsel %vm495, %v488, %v472
      %v505 = vsel %vm495, %v490, %v474
      %v506 = vsel %vm495, %v492, %v476
      %v507 = vsel %vm495, %v494, %v478
      %v508 = vld [vmem:[%s1] sm:$0xf]
      %v509 = vld [vmem:[%s1 + $0x4] sm:$0xf]
      %v510 = vpack.c.bf16 %v505, %v504
      %v511 = vpack.c.bf16 %v501, %v500
      %v512 = vpack.c.bf16 %v497, %v496
      %v513 = vpack.c.bf16 %v507, %v506
      %v514 = vpack.c.bf16 %v503, %v502
      %v515 = vpack.c.bf16 %v499, %v498
      %516 = vrot.lane.b32.xlu0 %v199, 48
      %v517 = vpop.permute.xlu0 %516
      %518 = vrot.lane.b32.xlu0 %v202, 48
      %v519 = vpop.permute.xlu0 %518
      %520 = vrot.lane.b32.xlu0 %v205, 48
      %v521 = vpop.permute.xlu0 %520
      %522 = vrot.lane.b32.xlu0 %v208, 48
      %v523 = vpop.permute.xlu0 %522
      %524 = vrot.lane.b32.xlu0 %v200, 48
      %v525 = vpop.permute.xlu0 %524
      %526 = vrot.lane.b32.xlu0 %v203, 48
      %v527 = vpop.permute.xlu0 %526
      %528 = vrot.lane.b32.xlu0 %v206, 48
      %v529 = vpop.permute.xlu0 %528
      %530 = vrot.lane.b32.xlu0 %v209, 48
      %v531 = vpop.permute.xlu0 %530
      %532 = vrot.lane.b32.xlu0 %v201, 48
      %v533 = vpop.permute.xlu0 %532
      %534 = vrot.lane.b32.xlu0 %v204, 48
      %v535 = vpop.permute.xlu0 %534
      %536 = vrot.lane.b32.xlu0 %v207, 48
      %v537 = vpop.permute.xlu0 %536
      %538 = vrot.lane.b32.xlu0 %v210, 48
      %v539 = vpop.permute.xlu0 %538
      %vm540 = vcmp.lt.s32.totalorder %v236, 48
      %v541 = vsel %vm540, %v525, %v533
      %v542 = vsel %vm540, %v527, %v535
      %v543 = vsel %vm540, %v529, %v537
      %v544 = vsel %vm540, %v531, %v539
      %v545 = vsel %vm540, %v517, %v525
      %v546 = vsel %vm540, %v519, %v527
      %v547 = vsel %vm540, %v521, %v529
      %v548 = vsel %vm540, %v523, %v531
      %v549 = vsel %vm540, %v533, %v517
      %v550 = vsel %vm540, %v535, %v519
      %v551 = vsel %vm540, %v537, %v521
      %v552 = vsel %vm540, %v539, %v523
      %s553 = scalar_lea.vmem %s1, 8
      %v554 = vld [vmem:[%s553] sm:$0xf]
      %v555 = vld [vmem:[%s553 + $0x4] sm:$0xf]
      %v556 = vpack.c.bf16 %v550, %v549
      %v557 = vpack.c.bf16 %v546, %v545
      %v558 = vpack.c.bf16 %v542, %v541
      %v559 = vpack.c.bf16 %v552, %v551
      %v560 = vpack.c.bf16 %v548, %v547
      %v561 = vpack.c.bf16 %v544, %v543
      %v564 = vunpack.c.l.b16 %v554
      %v565 = vunpack.c.l.b16 %v555
      %v566 = vpack.c.b16 %v565, %v564
      %v568 = vsel %vm273, %v566, 0
      %570 = vmatpush.bf16.msra.mxu0 0
      %571 = vmatpush.bf16.msra.mxu0 0
      %572 = vmatpush.bf16.msra.mxu0 0
      %573 = vmatpush.bf16.msra.mxu0 0
      %574 = vmatpush.bf16.msra.mxu0 0
      %575 = vmatpush.bf16.msra.mxu0 0
      %576 = vmatpush.bf16.msra.mxu0 %v559
      %577 = vmatpush.bf16.msra.mxu0 %v556
      %578 = vmatmul.bf16.gmra.mxu0 %v568
      %v579 = vpop.f32.mrf.mxu0
      %v580 = vadd.f32 0.0, %v579
      %v581 = vpop.f32.mrf.mxu0
      %v582 = vadd.f32 0.0, %v581
      %583 = vdwg.mxu0
      %584 = vmatpush.bf16.msra.mxu0 0
      %585 = vmatpush.bf16.msra.mxu0 0
      %586 = vmatpush.bf16.msra.mxu0 0
      %587 = vmatpush.bf16.msra.mxu0 0
      %588 = vmatpush.bf16.msra.mxu0 0
      %589 = vmatpush.bf16.msra.mxu0 0
      %590 = vmatpush.bf16.msra.mxu0 %v560
      %591 = vmatpush.bf16.msra.mxu0 %v557
      %592 = vmatmul.bf16.gmra.mxu0 %v568
      %v593 = vpop.f32.mrf.mxu0
      %v594 = vadd.f32 0.0, %v593
      %v595 = vpop.f32.mrf.mxu0
      %v596 = vadd.f32 0.0, %v595
      %597 = vdwg.mxu0
      %598 = vmatpush.bf16.msra.mxu0 0
      %599 = vmatpush.bf16.msra.mxu0 0
      %600 = vmatpush.bf16.msra.mxu0 0
      %601 = vmatpush.bf16.msra.mxu0 0
      %602 = vmatpush.bf16.msra.mxu0 0
      %603 = vmatpush.bf16.msra.mxu0 0
      %604 = vmatpush.bf16.msra.mxu0 %v561
      %605 = vmatpush.bf16.msra.mxu0 %v558
      %606 = vmatmul.bf16.gmra.mxu0 %v568
      %v607 = vpop.f32.mrf.mxu0
      %v608 = vadd.f32 0.0, %v607
      %v609 = vpop.f32.mrf.mxu0
      %v610 = vadd.f32 0.0, %v609
      %611 = vdwg.mxu0
      %v614 = vunpack.c.l.b16 %v508
      %v615 = vunpack.c.l.b16 %v509
      %v616 = vpack.c.b16 %v615, %v614
      %v618 = vsel %vm273, %v616, 0
      %620 = vmatpush.bf16.msra.mxu0 0
      %621 = vmatpush.bf16.msra.mxu0 0
      %622 = vmatpush.bf16.msra.mxu0 0
      %623 = vmatpush.bf16.msra.mxu0 0
      %624 = vmatpush.bf16.msra.mxu0 0
      %625 = vmatpush.bf16.msra.mxu0 0
      %626 = vmatpush.bf16.msra.mxu0 %v513
      %627 = vmatpush.bf16.msra.mxu0 %v510
      %628 = vmatmul.bf16.gmra.mxu0 %v618
      %v629 = vpop.f32.mrf.mxu0
      %v630 = vadd.f32 %v580, %v629
      %v631 = vpop.f32.mrf.mxu0
      %v632 = vadd.f32 %v582, %v631
      %633 = vdwg.mxu0
      %634 = vmatpush.bf16.msra.mxu0 0
      %635 = vmatpush.bf16.msra.mxu0 0
      %636 = vmatpush.bf16.msra.mxu0 0
      %637 = vmatpush.bf16.msra.mxu0 0
      %638 = vmatpush.bf16.msra.mxu0 0
      %639 = vmatpush.bf16.msra.mxu0 0
      %640 = vmatpush.bf16.msra.mxu0 %v514
      %641 = vmatpush.bf16.msra.mxu0 %v511
      %642 = vmatmul.bf16.gmra.mxu0 %v618
      %v643 = vpop.f32.mrf.mxu0
      %v644 = vadd.f32 %v594, %v643
      %v645 = vpop.f32.mrf.mxu0
      %v646 = vadd.f32 %v596, %v645
      %647 = vdwg.mxu0
      %648 = vmatpush.bf16.msra.mxu0 0
      %649 = vmatpush.bf16.msra.mxu0 0
      %650 = vmatpush.bf16.msra.mxu0 0
      %651 = vmatpush.bf16.msra.mxu0 0
      %652 = vmatpush.bf16.msra.mxu0 0
      %653 = vmatpush.bf16.msra.mxu0 0
      %654 = vmatpush.bf16.msra.mxu0 %v515
      %655 = vmatpush.bf16.msra.mxu0 %v512
      %656 = vmatmul.bf16.gmra.mxu0 %v618
      %v657 = vpop.f32.mrf.mxu0
      %v658 = vadd.f32 %v608, %v657
      %v659 = vpop.f32.mrf.mxu0
      %v660 = vadd.f32 %v610, %v659
      %661 = vdwg.mxu0
      %662 = vrot.lane.b32.xlu0 %v199, 47
      %v663 = vpop.permute.xlu0 %662
      %664 = vrot.lane.b32.xlu0 %v202, 47
      %v665 = vpop.permute.xlu0 %664
      %666 = vrot.lane.b32.xlu0 %v205, 47
      %v667 = vpop.permute.xlu0 %666
      %668 = vrot.lane.b32.xlu0 %v208, 47
      %v669 = vpop.permute.xlu0 %668
      %670 = vrot.lane.b32.xlu0 %v200, 47
      %v671 = vpop.permute.xlu0 %670
      %672 = vrot.lane.b32.xlu0 %v203, 47
      %v673 = vpop.permute.xlu0 %672
      %674 = vrot.lane.b32.xlu0 %v206, 47
      %v675 = vpop.permute.xlu0 %674
      %676 = vrot.lane.b32.xlu0 %v209, 47
      %v677 = vpop.permute.xlu0 %676
      %678 = vrot.lane.b32.xlu0 %v201, 47
      %v679 = vpop.permute.xlu0 %678
      %680 = vrot.lane.b32.xlu0 %v204, 47
      %v681 = vpop.permute.xlu0 %680
      %682 = vrot.lane.b32.xlu0 %v207, 47
      %v683 = vpop.permute.xlu0 %682
      %684 = vrot.lane.b32.xlu0 %v210, 47
      %v685 = vpop.permute.xlu0 %684
      %vm686 = vcmp.lt.s32.totalorder %v236, 47
      %v687 = vsel %vm686, %v671, %v679
      %v688 = vsel %vm686, %v673, %v681
      %v689 = vsel %vm686, %v675, %v683
      %v690 = vsel %vm686, %v677, %v685
      %v691 = vsel %vm686, %v663, %v671
      %v692 = vsel %vm686, %v665, %v673
      %v693 = vsel %vm686, %v667, %v675
      %v694 = vsel %vm686, %v669, %v677
      %v695 = vsel %vm686, %v679, %v663
      %v696 = vsel %vm686, %v681, %v665
      %v697 = vsel %vm686, %v683, %v667
      %v698 = vsel %vm686, %v685, %v669
      %s699 = scalar_lea.vmem %s1, 16
      %v700 = vld [vmem:[%s699] sm:$0xf]
      %v701 = vld [vmem:[%s699 + $0x4] sm:$0xf]
      %v702 = vpack.c.bf16 %v696, %v695
      %v703 = vpack.c.bf16 %v692, %v691
      %v704 = vpack.c.bf16 %v688, %v687
      %v705 = vpack.c.bf16 %v698, %v697
      %v706 = vpack.c.bf16 %v694, %v693
      %v707 = vpack.c.bf16 %v690, %v689
      %v710 = vunpack.c.l.b16 %v700
      %v711 = vunpack.c.l.b16 %v701
      %v712 = vpack.c.b16 %v711, %v710
      %v714 = vsel %vm273, %v712, 0
      %716 = vmatpush.bf16.msra.mxu0 0
      %717 = vmatpush.bf16.msra.mxu0 0
      %718 = vmatpush.bf16.msra.mxu0 0
      %719 = vmatpush.bf16.msra.mxu0 0
      %720 = vmatpush.bf16.msra.mxu0 0
      %721 = vmatpush.bf16.msra.mxu0 0
      %722 = vmatpush.bf16.msra.mxu0 %v705
      %723 = vmatpush.bf16.msra.mxu0 %v702
      %724 = vmatmul.bf16.gmra.mxu0 %v714
      %v725 = vpop.f32.mrf.mxu0
      %v726 = vadd.f32 0.0, %v725
      %v727 = vpop.f32.mrf.mxu0
      %v728 = vadd.f32 0.0, %v727
      %729 = vdwg.mxu0
      %730 = vmatpush.bf16.msra.mxu0 0
      %731 = vmatpush.bf16.msra.mxu0 0
      %732 = vmatpush.bf16.msra.mxu0 0
      %733 = vmatpush.bf16.msra.mxu0 0
      %734 = vmatpush.bf16.msra.mxu0 0
      %735 = vmatpush.bf16.msra.mxu0 0
      %736 = vmatpush.bf16.msra.mxu0 %v706
      %737 = vmatpush.bf16.msra.mxu0 %v703
      %738 = vmatmul.bf16.gmra.mxu0 %v714
      %v739 = vpop.f32.mrf.mxu0
      %v740 = vadd.f32 0.0, %v739
      %v741 = vpop.f32.mrf.mxu0
      %v742 = vadd.f32 0.0, %v741
      %743 = vdwg.mxu0
      %744 = vmatpush.bf16.msra.mxu0 0
      %745 = vmatpush.bf16.msra.mxu0 0
      %746 = vmatpush.bf16.msra.mxu0 0
      %747 = vmatpush.bf16.msra.mxu0 0
      %748 = vmatpush.bf16.msra.mxu0 0
      %749 = vmatpush.bf16.msra.mxu0 0
      %750 = vmatpush.bf16.msra.mxu0 %v707
      %751 = vmatpush.bf16.msra.mxu0 %v704
      %752 = vmatmul.bf16.gmra.mxu0 %v714
      %v753 = vpop.f32.mrf.mxu0
      %v754 = vadd.f32 0.0, %v753
      %v755 = vpop.f32.mrf.mxu0
      %v756 = vadd.f32 0.0, %v755
      %757 = vdwg.mxu0
      %v758 = vadd.f32 %v630, %v726
      %v759 = vadd.f32 %v644, %v740
      %v760 = vadd.f32 %v658, %v754
      %v761 = vadd.f32 %v632, %v728
      %v762 = vadd.f32 %v646, %v742
      %v763 = vadd.f32 %v660, %v756
      %v764 = vadd.s32 %v236, 128
      %v765 = vadd.s32 %v236, 256
      %vm766 = vcmp.ge.s32.totalorder %v236, 48
      %vm767 = vcmp.ge.s32.totalorder %v764, 48
      %vm768 = vcmp.ge.s32.totalorder %v765, 48
      %v769 = vsel %vm766, %v758, 0.0
      %v770 = vsel %vm767, %v759, 0.0
      %v771 = vsel %vm768, %v760, 0.0
      %v772 = vsel %vm766, %v761, 0.0
      %v773 = vsel %vm767, %v762, 0.0
      %v774 = vsel %vm768, %v763, 0.0
      %v775 = vadd.f32 %v465, %v769
      %v776 = vadd.f32 %v466, %v770
      %v777 = vadd.f32 %v467, %v771
      %v778 = vadd.f32 %v468, %v772
      %v779 = vadd.f32 %v469, %v773
      %v780 = vadd.f32 %v470, %v774
      %v781 = vld [vmem:[%s2] sm:$0xff]
      %v782 = vld [vmem:[%s2 + $0x8] sm:$0xff]
      %v783 = vld [vmem:[%s3] sm:$0x7]
      %785 = vset.pattern.permute.xlu0 0
      %786 = vperm.xlu0 %785, %v781
      %v787 = vpop.permute.xlu0 %786
      %790 = vset.pattern.permute.xlu0 0
      %791 = vperm.xlu0 %790, %v782
      %v792 = vpop.permute.xlu0 %791
      %v794 = vadd.f32 %v775, %v787
      %v795 = vadd.f32 %v776, %v787
      %v796 = vadd.f32 %v777, %v787
      %v797 = vadd.f32 %v778, %v792
      %v798 = vadd.f32 %v779, %v792
      %v799 = vadd.f32 %v780, %v792
      %v801 = vperm.slane %v783, 0
      %v802 = vperm.slane %v783, 1
      %v803 = vperm.slane %v783, 2
      %v807 = vmul.f32 %v794, %v801
      %v808 = vmul.f32 %v795, %v802
      %v809 = vmul.f32 %v796, %v803
      %v810 = vmul.f32 %v797, %v801
      %v811 = vmul.f32 %v798, %v802
      %v812 = vmul.f32 %v799, %v803
      %v813 = vadd.f32 %v807, %v808
      %v814 = vadd.f32 %v813, %v809
      %815 = vadd.xlane.f32.xlu0 %v814
      %v816 = vpop.xlane.xlu0 %815
      %v817 = vadd.f32 %v810, %v811
      %v818 = vadd.f32 %v817, %v812
      %819 = vadd.xlane.f32.xlu0 %v818
      %v820 = vpop.xlane.xlu0 %819
      %v821 = vmul.f32 %v816, 0.0036764706
      %v822 = vmul.f32 %v820, 0.0036764706
      %v823 = vmul.f32 %v807, %v807
      %v824 = vmul.f32 %v808, %v808
      %v825 = vmul.f32 %v809, %v809
      %v826 = vmul.f32 %v810, %v810
      %v827 = vmul.f32 %v811, %v811
      %v828 = vmul.f32 %v812, %v812
      %v829 = vadd.f32 %v823, %v824
      %v830 = vadd.f32 %v829, %v825
      %831 = vadd.xlane.f32.xlu0 %v830
      %v832 = vpop.xlane.xlu0 %831
      %v833 = vadd.f32 %v826, %v827
      %v834 = vadd.f32 %v833, %v828
      %835 = vadd.xlane.f32.xlu0 %v834
      %v836 = vpop.xlane.xlu0 %835
      %v837 = vmul.f32 %v832, 0.0036764706
      %v838 = vmul.f32 %v836, 0.0036764706
      %v839 = vmul.f32 %v821, %v821
      %v840 = vmul.f32 %v822, %v822
      %v841 = vsub.f32 %v837, %v839
      %v842 = vsub.f32 %v838, %v840
      %v843 = vadd.f32 %v841, 1e-05
      %v844 = vadd.f32 %v842, 1e-05
      %v845 = vrsqrt.pop %v843
      %v846 = vmul.f32 %v845, %v843
      %v847 = vmul.f32 %v846, %v845
      %v848 = vmul.f32 0.5, %v847
      %v849 = vsub.f32 1.5, %v848
      %v850 = vmul.f32 %v845, %v849
      %vm851 = vweird.f32 %v843
      %vm852 = vweird.f32 %v845
      %vm853 = vmor %vm851, %vm852
      %v854 = vsel %vm853, %v845, %v850
      %v855 = vrsqrt.pop %v844
      %v856 = vmul.f32 %v855, %v844
      %v857 = vmul.f32 %v856, %v855
      %v858 = vmul.f32 0.5, %v857
      %v859 = vsub.f32 1.5, %v858
      %v860 = vmul.f32 %v855, %v859
      %vm861 = vweird.f32 %v844
      %vm862 = vweird.f32 %v855
      %vm863 = vmor %vm861, %vm862
      %v864 = vsel %vm863, %v855, %v860
      %v865 = vmul.f32 %v781, %v854
      %v866 = vmul.f32 %v782, %v864
      %v867 = vmul.f32 %v821, %v865
      %v868 = vmul.f32 %v822, %v866
      %871 = vrot.lane.b32.xlu0 %v867, 1
      %v872 = vpop.permute.xlu0 %871
      %873 = vrot.lane.b32.xlu0 %v868, 1
      %v874 = vpop.permute.xlu0 %873
      %v877 = vsub.f32 %v781, %v872
      %v878 = vsub.f32 %v782, %v874
      %880 = vset.pattern.permute.xlu0 1
      %881 = vperm.xlu0 %880, %v865
      %v882 = vpop.permute.xlu0 %881
      %885 = vset.pattern.permute.xlu0 1
      %886 = vperm.xlu0 %885, %v866
      %v887 = vpop.permute.xlu0 %886
      %v889 = vmul.f32 %v794, %v882
      %v890 = vmul.f32 %v795, %v882
      %v891 = vmul.f32 %v796, %v882
      %v892 = vmul.f32 %v797, %v887
      %v893 = vmul.f32 %v798, %v887
      %v894 = vmul.f32 %v799, %v887
      %896 = vset.pattern.permute.xlu0 2
      %897 = vperm.xlu0 %896, %v877
      %v898 = vpop.permute.xlu0 %897
      %901 = vset.pattern.permute.xlu0 2
      %902 = vperm.xlu0 %901, %v878
      %v903 = vpop.permute.xlu0 %902
      %v905 = vadd.f32 %v889, %v898
      %v906 = vadd.f32 %v890, %v898
      %v907 = vadd.f32 %v891, %v898
      %v908 = vadd.f32 %v892, %v903
      %v909 = vadd.f32 %v893, %v903
      %v910 = vadd.f32 %v894, %v903
      %vm911 = vcmp.ge.f32.partialorder %v905, 0.0
      %vm912 = vcmp.ge.f32.partialorder %v906, 0.0
      %vm913 = vcmp.ge.f32.partialorder %v907, 0.0
      %vm914 = vcmp.ge.f32.partialorder %v908, 0.0
      %vm915 = vcmp.ge.f32.partialorder %v909, 0.0
      %vm916 = vcmp.ge.f32.partialorder %v910, 0.0
      %917 = vset.pattern.permute.xlu0 3
      %918 = vperm.xlu0 %917, %v781
      %v919 = vpop.permute.xlu0 %918
      %921 = vset.pattern.permute.xlu0 3
      %922 = vperm.xlu0 %921, %v782
      %v923 = vpop.permute.xlu0 %922
      %v925 = vmul.f32 %v919, %v905
      %v926 = vmul.f32 %v919, %v906
      %v927 = vmul.f32 %v919, %v907
      %v928 = vmul.f32 %v923, %v908
      %v929 = vmul.f32 %v923, %v909
      %v930 = vmul.f32 %v923, %v910
      %v931 = vsel %vm911, %v905, %v925
      %v932 = vsel %vm912, %v906, %v926
      %v933 = vsel %vm913, %v907, %v927
      %v934 = vsel %vm914, %v908, %v928
      %v935 = vsel %vm915, %v909, %v929
      %v936 = vsel %vm916, %v910, %v930
      %v937 = vmul.f32 %v931, %v801
      %v938 = vmul.f32 %v932, %v802
      %v939 = vmul.f32 %v933, %v803
      %v940 = vmul.f32 %v934, %v801
      %v941 = vmul.f32 %v935, %v802
      %v942 = vmul.f32 %v936, %v803
      %943 = vst [vmem:[%s197] sm:$0xff] %v937
      %944 = vst [vmem:[%s197 + $0x8] sm:$0xff] %v938
      %945 = vst [vmem:[%s197 + $0x10] sm:$0xff] %v939
      %946 = vst [vmem:[%s197 + $0x18] sm:$0xff] %v940
      %947 = vst [vmem:[%s197 + $0x20] sm:$0xff] %v941
      %948 = vst [vmem:[%s197 + $0x28] sm:$0xff] %v942
      %p949 = scmp.lt.s32.totalorder %s15, 1
      %s950 = scalar_select %p949, %s15, 1
      %s951 = smul.addr %s950, 6
      %s952 = smul.addr %s951, 8
      %s953 = scalar_lea.vmem %s4, %s952
      // Predicated region
      $region37: #{dilated_dense_net.5} parent=35 // pred_check
        %p954 = pneg %p122
      $region38: #{dilated_dense_net.5} parent=35 // pred_check_branch
        %956 = sbr.rel (%p954) target = $region40
      $region39: #{dilated_dense_net.5} parent=35 // pred_region
        _
      $region40: #{dilated_dense_net.5} parent=35 // pred_fallthru
        _
    $region36: #{dilated_dense_net.5} parent=5 // pred_fallthru
      _
    %p957 = scmp.le.s32.totalorder 2, %s10
    // Predicated region
    $region41: #{dilated_dense_net.5} parent=5 // pred_check
      %p958 = pneg %p957
    $region42: #{dilated_dense_net.5} parent=5 // pred_check_branch
      %960 = sbr.rel (%p958) target = $region44
    $region43: #{dilated_dense_net.5} parent=5 // pred_region
      %s961 = ssub.s32 %s10, 2
      // Predicated region
      $region45: #{dilated_dense_net.5} parent=43 // pred_check
        %p962 = pneg %p128
      $region46: #{dilated_dense_net.5} parent=43 // pred_check_branch
        %964 = sbr.rel (%p962) target = $region48
      $region47: #{dilated_dense_net.5} parent=43 // pred_region
        %p965 = scmp.lt.s32.totalorder %s16, 1
        %s966 = scalar_select %p965, %s16, 1
        %s967 = smul.addr %s966, 6
        %s968 = smul.addr %s967, 8
        %s969 = scalar_lea.vmem %s4, %s968
      $region48: #{dilated_dense_net.5} parent=43 // pred_fallthru
        _
    $region44: #{dilated_dense_net.5} parent=5 // pred_fallthru
      _
  $region6: #{dilated_dense_net.5} parent=0 // loop_footer
    %s14 = sadd.s32 1, %s10
  $region7: #{dilated_dense_net.5} parent=0 // loop_footer_branch
    %9 = sbr.rel target = $region3
  $region8: #{dilated_dense_net.5} parent=0 // loop_exit
    _

// kernel: dilated_dense_net.6
$region0: #{dilated_dense_net.6}
  #allocation0 [shape = 'u32[]', space=smem, size = 0x4, offset = 0x4, fixed_abs, tag = 'smem constant byte address 0x4 - core index']
  #allocation1 [shape = 'u32[72,128]{1,0:T(1,128)}', space=vmem, size = 0x9000, scoped, tag = 'internal scratch']
  %s0 = inlined_call_operand.vmem [shape: f32[2,48,384], index: 0, kind: input, shape index: {}]
  %s1 = inlined_call_operand.vmem [shape: bf16[6,16,48], index: 1, kind: input, shape index: {}]
  %s2 = inlined_call_operand.vmem [shape: f32[16,4], index: 2, kind: input, shape index: {}]
  %s3 = inlined_call_operand.vmem [shape: f32[1,384], index: 3, kind: input, shape index: {}]
  %s4 = inlined_call_operand.vmem [shape: f32[2,16,384], index: 4, kind: output, shape index: {}]
  %s5 = sld [smem:[#allocation0]]
  $region49: #{dilated_dense_net.6} parent=0
    _
  %s7 = ssub.s32 1, %s5
  %s8 = scalar_select 0, %s7, %s5
  loop: start=0, step=1, limit=4
  $region2: #{dilated_dense_net.6} parent=0 // loop_pre_header
    _
  $region3: #{dilated_dense_net.6} parent=0 // loop_header
    %s10 = sphi 0, %s14
    %p11 = scmp.ge.s32.totalorder %s10, 4
    %s20 = sphi 0, %s22
    %s23 = sphi 0, %s20
    %s24 = sphi 0, %s23
    %s40 = sphi 0, %s24
    %s44 = sphi 0, %s44
    %s46 = sphi 0, %s44
    %s47 = sphi 0, %s46
    %s61 = sphi 0, %s47
    %s65 = sphi 0, %s65
    %s67 = sphi 0, %s65
    %s68 = sphi 0, %s67
    %s82 = sphi 0, %s68
    %s86 = sphi 0, %s86
    %s88 = sphi 0, %s86
    %s89 = sphi 0, %s88
    %s103 = sphi 0, %s89
    %s109 = sphi 0, %s111
    %s112 = sphi 0, %s109
    %s113 = sphi 0, %s112
    %s129 = sphi 0, %s113
  $region4: #{dilated_dense_net.6} parent=0 // loop_header_branch
    %13 = sbr.rel (%p11) target = $region8
  $region5: #{dilated_dense_net.6} parent=0 // loop_body
    %s15 = ssub.s32 %s10, 1
    %s16 = ssub.s32 %s10, 2
    %s17 = sadd.s32 %s10, 1
    %s18 = ssub.s32 %s10, %s17
    %p19 = scmp.eq.s32.totalorder %s18, 0
    %s21 = sadd.s32 %s20, 1
    %s22 = scalar_select %p19, %s20, %s21
    %p25 = pneg %p19
    %p26 = scmp.eq.s32.totalorder %s10, 1
    %p27 = por %p25, %p26
    %p28 = scmp.ne.s32.totalorder %s20, %s23
    %p29 = scmp.eq.s32.totalorder %s10, 0
    %p30 = por %p28, %p29
    %p31 = scmp.ne.s32.totalorder %s20, %s23
    %p32 = scmp.eq.s32.totalorder %s15, 1
    %p33 = por %p31, %p32
    %p34 = scmp.ne.s32.totalorder %s23, %s24
    %p35 = scmp.eq.s32.totalorder %s15, 0
    %p36 = por %p34, %p35
    %p37 = scmp.ne.s32.totalorder %s23, %s24
    %p38 = scmp.eq.s32.totalorder %s16, 1
    %p39 = por %p37, %p38
    %p41 = scmp.ne.s32.totalorder %s24, %s40
    %p42 = scmp.eq.s32.totalorder %s16, 0
    %p43 = por %p41, %p42
    %s45 = sadd.s32 %s44, 1
    %p48 = scmp.eq.s32.totalorder %s10, 1
    %p49 = scmp.ne.s32.totalorder %s44, %s46
    %p50 = scmp.eq.s32.totalorder %s10, 0
    %p51 = por %p49, %p50
    %p52 = scmp.ne.s32.totalorder %s44, %s46
    %p53 = scmp.eq.s32.totalorder %s15, 1
    %p54 = por %p52, %p53
    %p55 = scmp.ne.s32.totalorder %s46, %s47
    %p56 = scmp.eq.s32.totalorder %s15, 0
    %p57 = por %p55, %p56
    %p58 = scmp.ne.s32.totalorder %s46, %s47
    %p59 = scmp.eq.s32.totalorder %s16, 1
    %p60 = por %p58, %p59
    %p62 = scmp.ne.s32.totalorder %s47, %s61
    %p63 = scmp.eq.s32.totalorder %s16, 0
    %p64 = por %p62, %p63
    %s66 = sadd.s32 %s65, 1
    %p69 = scmp.eq.s32.totalorder %s10, 1
    %p70 = scmp.ne.s32.totalorder %s65, %s67
    %p71 = scmp.eq.s32.totalorder %s10, 0
    %p72 = por %p70, %p71
    %p73 = scmp.ne.s32.totalorder %s65, %s67
    %p74 = scmp.eq.s32.totalorder %s15, 1
    %p75 = por %p73, %p74
    %p76 = scmp.ne.s32.totalorder %s67, %s68
    %p77 = scmp.eq.s32.totalorder %s15, 0
    %p78 = por %p76, %p77
    %p79 = scmp.ne.s32.totalorder %s67, %s68
    %p80 = scmp.eq.s32.totalorder %s16, 1
    %p81 = por %p79, %p80
    %p83 = scmp.ne.s32.totalorder %s68, %s82
    %p84 = scmp.eq.s32.totalorder %s16, 0
    %p85 = por %p83, %p84
    %s87 = sadd.s32 %s86, 1
    %p90 = scmp.eq.s32.totalorder %s10, 1
    %p91 = scmp.ne.s32.totalorder %s86, %s88
    %p92 = scmp.eq.s32.totalorder %s10, 0
    %p93 = por %p91, %p92
    %p94 = scmp.ne.s32.totalorder %s86, %s88
    %p95 = scmp.eq.s32.totalorder %s15, 1
    %p96 = por %p94, %p95
    %p97 = scmp.ne.s32.totalorder %s88, %s89
    %p98 = scmp.eq.s32.totalorder %s15, 0
    %p99 = por %p97, %p98
    %p100 = scmp.ne.s32.totalorder %s88, %s89
    %p101 = scmp.eq.s32.totalorder %s16, 1
    %p102 = por %p100, %p101
    %p104 = scmp.ne.s32.totalorder %s89, %s103
    %p105 = scmp.eq.s32.totalorder %s16, 0
    %p106 = por %p104, %p105
    %s107 = ssub.s32 %s10, %s17
    %p108 = scmp.eq.s32.totalorder %s107, 0
    %s110 = sadd.s32 %s109, 1
    %s111 = scalar_select %p108, %s109, %s110
    %p114 = pneg %p108
    %p115 = scmp.eq.s32.totalorder %s10, 1
    %p116 = por %p114, %p115
    %p117 = scmp.ne.s32.totalorder %s109, %s112
    %p118 = scmp.eq.s32.totalorder %s10, 0
    %p119 = por %p117, %p118
    %p120 = scmp.ne.s32.totalorder %s109, %s112
    %p121 = scmp.eq.s32.totalorder %s15, 1
    %p122 = por %p120, %p121
    %p123 = scmp.ne.s32.totalorder %s112, %s113
    %p124 = scmp.eq.s32.totalorder %s15, 0
    %p125 = por %p123, %p124
    %p126 = scmp.ne.s32.totalorder %s112, %s113
    %p127 = scmp.eq.s32.totalorder %s16, 1
    %p128 = por %p126, %p127
    %p130 = scmp.ne.s32.totalorder %s113, %s129
    %p131 = scmp.eq.s32.totalorder %s16, 0
    %p132 = por %p130, %p131
    %p133 = scmp.le.s32.totalorder 1, %s10
    %p134 = scmp.lt.s32.totalorder %s10, 3
    %p135 = pnand %p133, %p134
    %p136 = pneg %p135
    // Predicated region
    $region9: #{dilated_dense_net.6} parent=5 // pred_check
      _
    $region10: #{dilated_dense_net.6} parent=5 // pred_check_branch
      %138 = sbr.rel (%p135) target = $region12
    $region11: #{dilated_dense_net.6} parent=5 // pred_region
      %s139 = ssub.s32 %s10, 1
      // Predicated region
      $region13: #{dilated_dense_net.6} parent=11 // pred_check
        %p140 = pneg %p57
      $region14: #{dilated_dense_net.6} parent=11 // pred_check_branch
        %142 = sbr.rel (%p140) target = $region16
      $region15: #{dilated_dense_net.6} parent=11 // pred_region
        _
      $region16: #{dilated_dense_net.6} parent=11 // pred_fallthru
        _
      // Predicated region
      $region17: #{dilated_dense_net.6} parent=11 // pred_check
        %p143 = pneg %p78
      $region18: #{dilated_dense_net.6} parent=11 // pred_check_branch
        %145 = sbr.rel (%p143) target = $region20
      $region19: #{dilated_dense_net.6} parent=11 // pred_region
        _
      $region20: #{dilated_dense_net.6} parent=11 // pred_fallthru
        _
      // Predicated region
      $region21: #{dilated_dense_net.6} parent=11 // pred_check
        %p146 = pneg %p99
      $region22: #{dilated_dense_net.6} parent=11 // pred_check_branch
        %148 = sbr.rel (%p146) target = $region24
      $region23: #{dilated_dense_net.6} parent=11 // pred_region
        _
      $region24: #{dilated_dense_net.6} parent=11 // pred_fallthru
        _
    $region12: #{dilated_dense_net.6} parent=5 // pred_fallthru
      _
    %p149 = scmp.lt.s32.totalorder %s10, 2
    // Predicated region
    $region25: #{dilated_dense_net.6} parent=5 // pred_check
      %p150 = pneg %p149
    $region26: #{dilated_dense_net.6} parent=5 // pred_check_branch
      %152 = sbr.rel (%p150) target = $region28
    $region27: #{dilated_dense_net.6} parent=5 // pred_region
      // Predicated region
      $region29: #{dilated_dense_net.6} parent=27 // pred_check
        %p153 = pneg %p30
      $region30: #{dilated_dense_net.6} parent=27 // pred_check_branch
        %155 = sbr.rel (%p153) target = $region32
      $region31: #{dilated_dense_net.6} parent=27 // pred_region
        %p156 = scmp.lt.s32.totalorder %s10, 1
        %s157 = scalar_select %p156, %s10, 1
        %s158 = smul.addr %s157, 18
        %s159 = smul.addr %s158, 8
        %s160 = scalar_lea.vmem %s0, %s159
      $region32: #{dilated_dense_net.6} parent=27 // pred_fallthru
        _
    $region28: #{dilated_dense_net.6} parent=5 // pred_fallthru
      _
    %p161 = scmp.le.s32.totalorder 1, %s10
    %p162 = scmp.lt.s32.totalorder %s10, 3
    %p163 = pnand %p161, %p162
    %p164 = pneg %p163
    // Predicated region
    $region33: #{dilated_dense_net.6} parent=5 // pred_check
      _
    $region34: #{dilated_dense_net.6} parent=5 // pred_check_branch
      %166 = sbr.rel (%p163) target = $region36
    $region35: #{dilated_dense_net.6} parent=5 // pred_region
      %s167 = ssub.s32 %s10, 1
      %p168 = scmp.lt.s32.totalorder %s15, 1
      %s169 = scalar_select %p168, %s15, 1
      %s170 = smul.addr %s169, 18
      %s171 = smul.addr %s170, 8
      %s172 = scalar_lea.vmem %s0, %s171
      %p173 = pneg %p36
      %p174 = pneg %p33
      %p175 = pneg %p57
      %p176 = pneg %p54
      %p177 = pneg %p78
      %p178 = pneg %p75
      %p179 = pneg %p99
      %p180 = pneg %p96
      %p181 = pneg %p125
      %p182 = pneg %p122
      %p183 = scmp.lt.s32.totalorder %s15, 1
      %s184 = scalar_select %p183, %s15, 1
      %s185 = smul.addr %s184, 6
      %s186 = smul.addr %s185, 8
      %s187 = scalar_lea.vmem %s4, %s186
      %p188 = scmp.lt.s32.totalorder %s15, 1
      %s189 = scalar_select %p188, %s15, 1
      %s190 = smul.addr %s189, 18
      %s191 = smul.addr %s190, 8
      %s192 = scalar_lea.vmem %s0, %s191
      %p193 = scmp.lt.s32.totalorder %s15, 1
      %s194 = scalar_select %p193, %s15, 1
      %s195 = smul.addr %s194, 6
      %s196 = smul.addr %s195, 8
      %s197 = scalar_lea.vmem %s4, %s196
      %v199 = vld [vmem:[%s192] sm:$0xff]
      %v200 = vld [vmem:[%s192 + $0x8] sm:$0xff]
      %v201 = vld [vmem:[%s192 + $0x10] sm:$0xff]
      %v202 = vld [vmem:[%s192 + $0x18] sm:$0xff]
      %v203 = vld [vmem:[%s192 + $0x20] sm:$0xff]
      %v204 = vld [vmem:[%s192 + $0x28] sm:$0xff]
      %v205 = vld [vmem:[%s192 + $0x30] sm:$0xff]
      %v206 = vld [vmem:[%s192 + $0x38] sm:$0xff]
      %v207 = vld [vmem:[%s192 + $0x40] sm:$0xff]
      %v208 = vld [vmem:[%s192 + $0x48] sm:$0xff]
      %v209 = vld [vmem:[%s192 + $0x50] sm:$0xff]
      %v210 = vld [vmem:[%s192 + $0x58] sm:$0xff]
      %v211 = vld [vmem:[%s192 + $0x60] sm:$0xff]
      %v212 = vld [vmem:[%s192 + $0x68] sm:$0xff]
      %v213 = vld [vmem:[%s192 + $0x70] sm:$0xff]
      %v214 = vld [vmem:[%s192 + $0x78] sm:$0xff]
      %v215 = vld [vmem:[%s192 + $0x80] sm:$0xff]
      %v216 = vld [vmem:[%s192 + $0x88] sm:$0xff]
      %217 = vrot.lane.b32.xlu0 %v199, 1
      %v218 = vpop.permute.xlu0 %217
      %219 = vrot.lane.b32.xlu0 %v202, 1
      %v220 = vpop.permute.xlu0 %219
      %221 = vrot.lane.b32.xlu0 %v205, 1
      %v222 = vpop.permute.xlu0 %221
      %223 = vrot.lane.b32.xlu0 %v208, 1
      %v224 = vpop.permute.xlu0 %223
      %225 = vrot.lane.b32.xlu0 %v211, 1
      %v226 = vpop.permute.xlu0 %225
      %227 = vrot.lane.b32.xlu0 %v214, 1
      %v228 = vpop.permute.xlu0 %227
      %229 = vrot.lane.b32.xlu0 %v200, 1
      %v230 = vpop.permute.xlu0 %229
      %231 = vrot.lane.b32.xlu0 %v203, 1
      %v232 = vpop.permute.xlu0 %231
      %233 = vrot.lane.b32.xlu0 %v206, 1
      %v234 = vpop.permute.xlu0 %233
      %235 = vrot.lane.b32.xlu0 %v209, 1
      %v236 = vpop.permute.xlu0 %235
      %237 = vrot.lane.b32.xlu0 %v212, 1
      %v238 = vpop.permute.xlu0 %237
      %239 = vrot.lane.b32.xlu0 %v215, 1
      %v240 = vpop.permute.xlu0 %239
      %241 = vrot.lane.b32.xlu0 %v201, 1
      %v242 = vpop.permute.xlu0 %241
      %243 = vrot.lane.b32.xlu0 %v204, 1
      %v244 = vpop.permute.xlu0 %243
      %245 = vrot.lane.b32.xlu0 %v207, 1
      %v246 = vpop.permute.xlu0 %245
      %247 = vrot.lane.b32.xlu0 %v210, 1
      %v248 = vpop.permute.xlu0 %247
      %249 = vrot.lane.b32.xlu0 %v213, 1
      %v250 = vpop.permute.xlu0 %249
      %251 = vrot.lane.b32.xlu0 %v216, 1
      %v252 = vpop.permute.xlu0 %251
      %v253 = vlaneseq
      %v254 = vand.u32 %v253, 127
      %vm255 = vcmp.lt.s32.totalorder %v254, 1
      %v256 = vsel %vm255, %v230, %v242
      %v257 = vsel %vm255, %v232, %v244
      %v258 = vsel %vm255, %v234, %v246
      %v259 = vsel %vm255, %v236, %v248
      %v260 = vsel %vm255, %v238, %v250
      %v261 = vsel %vm255, %v240, %v252
      %v262 = vsel %vm255, %v218, %v230
      %v263 = vsel %vm255, %v220, %v232
      %v264 = vsel %vm255, %v222, %v234
      %v265 = vsel %vm255, %v224, %v236
      %v266 = vsel %vm255, %v226, %v238
      %v267 = vsel %vm255, %v228, %v240
      %v268 = vsel %vm255, %v242, %v218
      %v269 = vsel %vm255, %v244, %v220
      %v270 = vsel %vm255, %v246, %v222
      %v271 = vsel %vm255, %v248, %v224
      %v272 = vsel %vm255, %v250, %v226
      %v273 = vsel %vm255, %v252, %v228
      %s274 = scalar_lea.vmem %s1, 24
      %v275 = vld [vmem:[%s274] sm:$0xf]
      %v276 = vld [vmem:[%s274 + $0x4] sm:$0xf]
      %v277 = vpack.c.bf16 %v269, %v268
      %v278 = vpack.c.bf16 %v263, %v262
      %v279 = vpack.c.bf16 %v257, %v256
      %v280 = vpack.c.bf16 %v271, %v270
      %v281 = vpack.c.bf16 %v265, %v264
      %v282 = vpack.c.bf16 %v259, %v258
      %v283 = vpack.c.bf16 %v273, %v272
      %v284 = vpack.c.bf16 %v267, %v266
      %v285 = vpack.c.bf16 %v261, %v260
      %s286 = scalar_lea.vmem %s1, 32
      %v287 = vld [vmem:[%s286] sm:$0xf]
      %v288 = vld [vmem:[%s286 + $0x4] sm:$0xf]
      %v289 = vpack.c.bf16 %v202, %v199
      %v290 = vpack.c.bf16 %v203, %v200
      %v291 = vpack.c.bf16 %v204, %v201
      %v292 = vpack.c.bf16 %v208, %v205
      %v293 = vpack.c.bf16 %v209, %v206
      %v294 = vpack.c.bf16 %v210, %v207
      %v295 = vpack.c.bf16 %v214, %v211
      %v296 = vpack.c.bf16 %v215, %v212
      %v297 = vpack.c.bf16 %v216, %v213
      %v300 = vunpack.c.l.b16 %v287
      %v301 = vunpack.c.l.b16 %v288
      %v302 = vpack.c.b16 %v301, %v300
      %vm303 = vcmask 392192
      %v305 = vsel %vm303, %v302, 0
      %307 = vmatpush.bf16.msra.mxu0 0
      %308 = vmatpush.bf16.msra.mxu0 0
      %309 = vmatpush.bf16.msra.mxu0 0
      %310 = vmatpush.bf16.msra.mxu0 0
      %311 = vmatpush.bf16.msra.mxu0 0
      %312 = vmatpush.bf16.msra.mxu0 %v295
      %313 = vmatpush.bf16.msra.mxu0 %v292
      %314 = vmatpush.bf16.msra.mxu0 %v289
      %315 = vmatmul.bf16.gmra.mxu0 %v305
      %v316 = vpop.f32.mrf.mxu0
      %v317 = vadd.f32 0.0, %v316
      %v318 = vpop.f32.mrf.mxu0
      %v319 = vadd.f32 0.0, %v318
      %320 = vdwg.mxu0
      %321 = vmatpush.bf16.msra.mxu0 0
      %322 = vmatpush.bf16.msra.mxu0 0
      %323 = vmatpush.bf16.msra.mxu0 0
      %324 = vmatpush.bf16.msra.mxu0 0
      %325 = vmatpush.bf16.msra.mxu0 0
      %326 = vmatpush.bf16.msra.mxu0 %v296
      %327 = vmatpush.bf16.msra.mxu0 %v293
      %328 = vmatpush.bf16.msra.mxu0 %v290
      %329 = vmatmul.bf16.gmra.mxu0 %v305
      %v330 = vpop.f32.mrf.mxu0
      %v331 = vadd.f32 0.0, %v330
      %v332 = vpop.f32.mrf.mxu0
      %v333 = vadd.f32 0.0, %v332
      %334 = vdwg.mxu0
      %335 = vmatpush.bf16.msra.mxu0 0
      %336 = vmatpush.bf16.msra.mxu0 0
      %337 = vmatpush.bf16.msra.mxu0 0
      %338 = vmatpush.bf16.msra.mxu0 0
      %339 = vmatpush.bf16.msra.mxu0 0
      %340 = vmatpush.bf16.msra.mxu0 %v297
      %341 = vmatpush.bf16.msra.mxu0 %v294
      %342 = vmatpush.bf16.msra.mxu0 %v291
      %343 = vmatmul.bf16.gmra.mxu0 %v305
      %v344 = vpop.f32.mrf.mxu0
      %v345 = vadd.f32 0.0, %v344
      %v346 = vpop.f32.mrf.mxu0
      %v347 = vadd.f32 0.0, %v346
      %348 = vdwg.mxu0
      %v351 = vunpack.c.l.b16 %v275
      %v352 = vunpack.c.l.b16 %v276
      %v353 = vpack.c.b16 %v352, %v351
      %v355 = vsel %vm303, %v353, 0
      %357 = vmatpush.bf16.msra.mxu0 0
      %358 = vmatpush.bf16.msra.mxu0 0
      %359 = vmatpush.bf16.msra.mxu0 0
      %360 = vmatpush.bf16.msra.mxu0 0
      %361 = vmatpush.bf16.msra.mxu0 0
      %362 = vmatpush.bf16.msra.mxu0 %v283
      %363 = vmatpush.bf16.msra.mxu0 %v280
      %364 = vmatpush.bf16.msra.mxu0 %v277
      %365 = vmatmul.bf16.gmra.mxu0 %v355
      %v366 = vpop.f32.mrf.mxu0
      %v367 = vadd.f32 %v317, %v366
      %v368 = vpop.f32.mrf.mxu0
      %v369 = vadd.f32 %v319, %v368
      %370 = vdwg.mxu0
      %371 = vmatpush.bf16.msra.mxu0 0
      %372 = vmatpush.bf16.msra.mxu0 0
      %373 = vmatpush.bf16.msra.mxu0 0
      %374 = vmatpush.bf16.msra.mxu0 0
      %375 = vmatpush.bf16.msra.mxu0 0
      %376 = vmatpush.bf16.msra.mxu0 %v284
      %377 = vmatpush.bf16.msra.mxu0 %v281
      %378 = vmatpush.bf16.msra.mxu0 %v278
      %379 = vmatmul.bf16.gmra.mxu0 %v355
      %v380 = vpop.f32.mrf.mxu0
      %v381 = vadd.f32 %v331, %v380
      %v382 = vpop.f32.mrf.mxu0
      %v383 = vadd.f32 %v333, %v382
      %384 = vdwg.mxu0
      %385 = vmatpush.bf16.msra.mxu0 0
      %386 = vmatpush.bf16.msra.mxu0 0
      %387 = vmatpush.bf16.msra.mxu0 0
      %388 = vmatpush.bf16.msra.mxu0 0
      %389 = vmatpush.bf16.msra.mxu0 0
      %390 = vmatpush.bf16.msra.mxu0 %v285
      %391 = vmatpush.bf16.msra.mxu0 %v282
      %392 = vmatpush.bf16.msra.mxu0 %v279
      %393 = vmatmul.bf16.gmra.mxu0 %v355
      %v394 = vpop.f32.mrf.mxu0
      %v395 = vadd.f32 %v345, %v394
      %v396 = vpop.f32.mrf.mxu0
      %v397 = vadd.f32 %v347, %v396
      %398 = vdwg.mxu0
      %399 = vrot.lane.b32.xlu0 %v199, 127
      %v400 = vpop.permute.xlu0 %399
      %401 = vrot.lane.b32.xlu0 %v202, 127
      %v402 = vpop.permute.xlu0 %401
      %403 = vrot.lane.b32.xlu0 %v205, 127
      %v404 = vpop.permute.xlu0 %403
      %405 = vrot.lane.b32.xlu0 %v208, 127
      %v406 = vpop.permute.xlu0 %405
      %407 = vrot.lane.b32.xlu0 %v211, 127
      %v408 = vpop.permute.xlu0 %407
      %409 = vrot.lane.b32.xlu0 %v214, 127
      %v410 = vpop.permute.xlu0 %409
      %411 = vrot.lane.b32.xlu0 %v200, 127
      %v412 = vpop.permute.xlu0 %411
      %413 = vrot.lane.b32.xlu0 %v203, 127
      %v414 = vpop.permute.xlu0 %413
      %415 = vrot.lane.b32.xlu0 %v206, 127
      %v416 = vpop.permute.xlu0 %415
      %417 = vrot.lane.b32.xlu0 %v209, 127
      %v418 = vpop.permute.xlu0 %417
      %419 = vrot.lane.b32.xlu0 %v212, 127
      %v420 = vpop.permute.xlu0 %419
      %421 = vrot.lane.b32.xlu0 %v215, 127
      %v422 = vpop.permute.xlu0 %421
      %423 = vrot.lane.b32.xlu0 %v201, 127
      %v424 = vpop.permute.xlu0 %423
      %425 = vrot.lane.b32.xlu0 %v204, 127
      %v426 = vpop.permute.xlu0 %425
      %427 = vrot.lane.b32.xlu0 %v207, 127
      %v428 = vpop.permute.xlu0 %427
      %429 = vrot.lane.b32.xlu0 %v210, 127
      %v430 = vpop.permute.xlu0 %429
      %431 = vrot.lane.b32.xlu0 %v213, 127
      %v432 = vpop.permute.xlu0 %431
      %433 = vrot.lane.b32.xlu0 %v216, 127
      %v434 = vpop.permute.xlu0 %433
      %vm435 = vcmp.lt.s32.totalorder %v254, 127
      %v436 = vsel %vm435, %v412, %v424
      %v437 = vsel %vm435, %v414, %v426
      %v438 = vsel %vm435, %v416, %v428
      %v439 = vsel %vm435, %v418, %v430
      %v440 = vsel %vm435, %v420, %v432
      %v441 = vsel %vm435, %v422, %v434
      %v442 = vsel %vm435, %v400, %v412
      %v443 = vsel %vm435, %v402, %v414
      %v444 = vsel %vm435, %v404, %v416
      %v445 = vsel %vm435, %v406, %v418
      %v446 = vsel %vm435, %v408, %v420
      %v447 = vsel %vm435, %v410, %v422
      %v448 = vsel %vm435, %v424, %v400
      %v449 = vsel %vm435, %v426, %v402
      %v450 = vsel %vm435, %v428, %v404
      %v451 = vsel %vm435, %v430, %v406
      %v452 = vsel %vm435, %v432, %v408
      %v453 = vsel %vm435, %v434, %v410
      %s454 = scalar_lea.vmem %s1, 40
      %v455 = vld [vmem:[%s454] sm:$0xf]
      %v456 = vld [vmem:[%s454 + $0x4] sm:$0xf]
      %v457 = vpack.c.bf16 %v443, %v442
      %v458 = vpack.c.bf16 %v437, %v436
      %v459 = vpack.c.bf16 %v449, %v448
      %v460 = vpack.c.bf16 %v445, %v444
      %v461 = vpack.c.bf16 %v439, %v438
      %v462 = vpack.c.bf16 %v451, %v450
      %v463 = vpack.c.bf16 %v447, %v446
      %v464 = vpack.c.bf16 %v441, %v440
      %v465 = vpack.c.bf16 %v453, %v452
      %v468 = vunpack.c.l.b16 %v455
      %v469 = vunpack.c.l.b16 %v456
      %v470 = vpack.c.b16 %v469, %v468
      %v472 = vsel %vm303, %v470, 0
      %474 = vmatpush.bf16.msra.mxu0 0
      %475 = vmatpush.bf16.msra.mxu0 0
      %476 = vmatpush.bf16.msra.mxu0 0
      %477 = vmatpush.bf16.msra.mxu0 0
      %478 = vmatpush.bf16.msra.mxu0 0
      %479 = vmatpush.bf16.msra.mxu0 %v463
      %480 = vmatpush.bf16.msra.mxu0 %v460
      %481 = vmatpush.bf16.msra.mxu0 %v457
      %482 = vmatmul.bf16.gmra.mxu0 %v472
      %v483 = vpop.f32.mrf.mxu0
      %v484 = vadd.f32 0.0, %v483
      %v485 = vpop.f32.mrf.mxu0
      %v486 = vadd.f32 0.0, %v485
      %487 = vdwg.mxu0
      %488 = vmatpush.bf16.msra.mxu0 0
      %489 = vmatpush.bf16.msra.mxu0 0
      %490 = vmatpush.bf16.msra.mxu0 0
      %491 = vmatpush.bf16.msra.mxu0 0
      %492 = vmatpush.bf16.msra.mxu0 0
      %493 = vmatpush.bf16.msra.mxu0 %v464
      %494 = vmatpush.bf16.msra.mxu0 %v461
      %495 = vmatpush.bf16.msra.mxu0 %v458
      %496 = vmatmul.bf16.gmra.mxu0 %v472
      %v497 = vpop.f32.mrf.mxu0
      %v498 = vadd.f32 0.0, %v497
      %v499 = vpop.f32.mrf.mxu0
      %v500 = vadd.f32 0.0, %v499
      %501 = vdwg.mxu0
      %502 = vmatpush.bf16.msra.mxu0 0
      %503 = vmatpush.bf16.msra.mxu0 0
      %504 = vmatpush.bf16.msra.mxu0 0
      %505 = vmatpush.bf16.msra.mxu0 0
      %506 = vmatpush.bf16.msra.mxu0 0
      %507 = vmatpush.bf16.msra.mxu0 %v465
      %508 = vmatpush.bf16.msra.mxu0 %v462
      %509 = vmatpush.bf16.msra.mxu0 %v459
      %510 = vmatmul.bf16.gmra.mxu0 %v472
      %v511 = vpop.f32.mrf.mxu0
      %v512 = vadd.f32 0.0, %v511
      %v513 = vpop.f32.mrf.mxu0
      %v514 = vadd.f32 0.0, %v513
      %515 = vdwg.mxu0
      %v516 = vadd.f32 %v367, %v484
      %v517 = vadd.f32 %v381, %v498
      %v518 = vadd.f32 %v395, %v512
      %v519 = vadd.f32 %v369, %v486
      %v520 = vadd.f32 %v383, %v500
      %v521 = vadd.f32 %v397, %v514
      %522 = vrot.lane.b32.xlu0 %v199, 97
      %v523 = vpop.permute.xlu0 %522
      %524 = vrot.lane.b32.xlu0 %v202, 97
      %v525 = vpop.permute.xlu0 %524
      %526 = vrot.lane.b32.xlu0 %v205, 97
      %v527 = vpop.permute.xlu0 %526
      %528 = vrot.lane.b32.xlu0 %v208, 97
      %v529 = vpop.permute.xlu0 %528
      %530 = vrot.lane.b32.xlu0 %v211, 97
      %v531 = vpop.permute.xlu0 %530
      %532 = vrot.lane.b32.xlu0 %v214, 97
      %v533 = vpop.permute.xlu0 %532
      %534 = vrot.lane.b32.xlu0 %v200, 97
      %v535 = vpop.permute.xlu0 %534
      %536 = vrot.lane.b32.xlu0 %v203, 97
      %v537 = vpop.permute.xlu0 %536
      %538 = vrot.lane.b32.xlu0 %v206, 97
      %v539 = vpop.permute.xlu0 %538
      %540 = vrot.lane.b32.xlu0 %v209, 97
      %v541 = vpop.permute.xlu0 %540
      %542 = vrot.lane.b32.xlu0 %v212, 97
      %v543 = vpop.permute.xlu0 %542
      %544 = vrot.lane.b32.xlu0 %v215, 97
      %v545 = vpop.permute.xlu0 %544
      %546 = vrot.lane.b32.xlu0 %v201, 97
      %v547 = vpop.permute.xlu0 %546
      %548 = vrot.lane.b32.xlu0 %v204, 97
      %v549 = vpop.permute.xlu0 %548
      %550 = vrot.lane.b32.xlu0 %v207, 97
      %v551 = vpop.permute.xlu0 %550
      %552 = vrot.lane.b32.xlu0 %v210, 97
      %v553 = vpop.permute.xlu0 %552
      %554 = vrot.lane.b32.xlu0 %v213, 97
      %v555 = vpop.permute.xlu0 %554
      %556 = vrot.lane.b32.xlu0 %v216, 97
      %v557 = vpop.permute.xlu0 %556
      %vm558 = vcmp.lt.s32.totalorder %v254, 97
      %v559 = vsel %vm558, %v535, %v547
      %v560 = vsel %vm558, %v537, %v549
      %v561 = vsel %vm558, %v539, %v551
      %v562 = vsel %vm558, %v541, %v553
      %v563 = vsel %vm558, %v543, %v555
      %v564 = vsel %vm558, %v545, %v557
      %v565 = vsel %vm558, %v523, %v535
      %v566 = vsel %vm558, %v525, %v537
      %v567 = vsel %vm558, %v527, %v539
      %v568 = vsel %vm558, %v529, %v541
      %v569 = vsel %vm558, %v531, %v543
      %v570 = vsel %vm558, %v533, %v545
      %v571 = vsel %vm558, %v547, %v523
      %v572 = vsel %vm558, %v549, %v525
      %v573 = vsel %vm558, %v551, %v527
      %v574 = vsel %vm558, %v553, %v529
      %v575 = vsel %vm558, %v555, %v531
      %v576 = vsel %vm558, %v557, %v533
      %v577 = vld [vmem:[%s1] sm:$0xf]
      %v578 = vld [vmem:[%s1 + $0x4] sm:$0xf]
      %v579 = vpack.c.bf16 %v572, %v571
      %v580 = vpack.c.bf16 %v566, %v565
      %v581 = vpack.c.bf16 %v560, %v559
      %v582 = vpack.c.bf16 %v574, %v573
      %v583 = vpack.c.bf16 %v568, %v567
      %v584 = vpack.c.bf16 %v562, %v561
      %v585 = vpack.c.bf16 %v576, %v575
      %v586 = vpack.c.bf16 %v570, %v569
      %v587 = vpack.c.bf16 %v564, %v563
      %588 = vrot.lane.b32.xlu0 %v199, 96
      %v589 = vpop.permute.xlu0 %588
      %590 = vrot.lane.b32.xlu0 %v202, 96
      %v591 = vpop.permute.xlu0 %590
      %592 = vrot.lane.b32.xlu0 %v205, 96
      %v593 = vpop.permute.xlu0 %592
      %594 = vrot.lane.b32.xlu0 %v208, 96
      %v595 = vpop.permute.xlu0 %594
      %596 = vrot.lane.b32.xlu0 %v211, 96
      %v597 = vpop.permute.xlu0 %596
      %598 = vrot.lane.b32.xlu0 %v214, 96
      %v599 = vpop.permute.xlu0 %598
      %600 = vrot.lane.b32.xlu0 %v200, 96
      %v601 = vpop.permute.xlu0 %600
      %602 = vrot.lane.b32.xlu0 %v203, 96
      %v603 = vpop.permute.xlu0 %602
      %604 = vrot.lane.b32.xlu0 %v206, 96
      %v605 = vpop.permute.xlu0 %604
      %606 = vrot.lane.b32.xlu0 %v209, 96
      %v607 = vpop.permute.xlu0 %606
      %608 = vrot.lane.b32.xlu0 %v212, 96
      %v609 = vpop.permute.xlu0 %608
      %610 = vrot.lane.b32.xlu0 %v215, 96
      %v611 = vpop.permute.xlu0 %610
      %612 = vrot.lane.b32.xlu0 %v201, 96
      %v613 = vpop.permute.xlu0 %612
      %614 = vrot.lane.b32.xlu0 %v204, 96
      %v615 = vpop.permute.xlu0 %614
      %616 = vrot.lane.b32.xlu0 %v207, 96
      %v617 = vpop.permute.xlu0 %616
      %618 = vrot.lane.b32.xlu0 %v210, 96
      %v619 = vpop.permute.xlu0 %618
      %620 = vrot.lane.b32.xlu0 %v213, 96
      %v621 = vpop.permute.xlu0 %620
      %622 = vrot.lane.b32.xlu0 %v216, 96
      %v623 = vpop.permute.xlu0 %622
      %vm624 = vcmp.lt.s32.totalorder %v254, 96
      %v625 = vsel %vm624, %v601, %v613
      %v626 = vsel %vm624, %v603, %v615
      %v627 = vsel %vm624, %v605, %v617
      %v628 = vsel %vm624, %v607, %v619
      %v629 = vsel %vm624, %v609, %v621
      %v630 = vsel %vm624, %v611, %v623
      %v631 = vsel %vm624, %v589, %v601
      %v632 = vsel %vm624, %v591, %v603
      %v633 = vsel %vm624, %v593, %v605
      %v634 = vsel %vm624, %v595, %v607
      %v635 = vsel %vm624, %v597, %v609
      %v636 = vsel %vm624, %v599, %v611
      %v637 = vsel %vm624, %v613, %v589
      %v638 = vsel %vm624, %v615, %v591
      %v639 = vsel %vm624, %v617, %v593
      %v640 = vsel %vm624, %v619, %v595
      %v641 = vsel %vm624, %v621, %v597
      %v642 = vsel %vm624, %v623, %v599
      %s643 = scalar_lea.vmem %s1, 8
      %v644 = vld [vmem:[%s643] sm:$0xf]
      %v645 = vld [vmem:[%s643 + $0x4] sm:$0xf]
      %v646 = vpack.c.bf16 %v638, %v637
      %v647 = vpack.c.bf16 %v632, %v631
      %v648 = vpack.c.bf16 %v626, %v625
      %v649 = vpack.c.bf16 %v640, %v639
      %v650 = vpack.c.bf16 %v634, %v633
      %v651 = vpack.c.bf16 %v628, %v627
      %v652 = vpack.c.bf16 %v642, %v641
      %v653 = vpack.c.bf16 %v636, %v635
      %v654 = vpack.c.bf16 %v630, %v629
      %v657 = vunpack.c.l.b16 %v644
      %v658 = vunpack.c.l.b16 %v645
      %v659 = vpack.c.b16 %v658, %v657
      %v661 = vsel %vm303, %v659, 0
      %663 = vmatpush.bf16.msra.mxu0 0
      %664 = vmatpush.bf16.msra.mxu0 0
      %665 = vmatpush.bf16.msra.mxu0 0
      %666 = vmatpush.bf16.msra.mxu0 0
      %667 = vmatpush.bf16.msra.mxu0 0
      %668 = vmatpush.bf16.msra.mxu0 %v652
      %669 = vmatpush.bf16.msra.mxu0 %v649
      %670 = vmatpush.bf16.msra.mxu0 %v646
      %671 = vmatmul.bf16.gmra.mxu0 %v661
      %v672 = vpop.f32.mrf.mxu0
      %v673 = vadd.f32 0.0, %v672
      %v674 = vpop.f32.mrf.mxu0
      %v675 = vadd.f32 0.0, %v674
      %676 = vdwg.mxu0
      %677 = vmatpush.bf16.msra.mxu0 0
      %678 = vmatpush.bf16.msra.mxu0 0
      %679 = vmatpush.bf16.msra.mxu0 0
      %680 = vmatpush.bf16.msra.mxu0 0
      %681 = vmatpush.bf16.msra.mxu0 0
      %682 = vmatpush.bf16.msra.mxu0 %v653
      %683 = vmatpush.bf16.msra.mxu0 %v650
      %684 = vmatpush.bf16.msra.mxu0 %v647
      %685 = vmatmul.bf16.gmra.mxu0 %v661
      %v686 = vpop.f32.mrf.mxu0
      %v687 = vadd.f32 0.0, %v686
      %v688 = vpop.f32.mrf.mxu0
      %v689 = vadd.f32 0.0, %v688
      %690 = vdwg.mxu0
      %691 = vmatpush.bf16.msra.mxu0 0
      %692 = vmatpush.bf16.msra.mxu0 0
      %693 = vmatpush.bf16.msra.mxu0 0
      %694 = vmatpush.bf16.msra.mxu0 0
      %695 = vmatpush.bf16.msra.mxu0 0
      %696 = vmatpush.bf16.msra.mxu0 %v654
      %697 = vmatpush.bf16.msra.mxu0 %v651
      %698 = vmatpush.bf16.msra.mxu0 %v648
      %699 = vmatmul.bf16.gmra.mxu0 %v661
      %v700 = vpop.f32.mrf.mxu0
      %v701 = vadd.f32 0.0, %v700
      %v702 = vpop.f32.mrf.mxu0
      %v703 = vadd.f32 0.0, %v702
      %704 = vdwg.mxu0
      %v707 = vunpack.c.l.b16 %v577
      %v708 = vunpack.c.l.b16 %v578
      %v709 = vpack.c.b16 %v708, %v707
      %v711 = vsel %vm303, %v709, 0
      %713 = vmatpush.bf16.msra.mxu0 0
      %714 = vmatpush.bf16.msra.mxu0 0
      %715 = vmatpush.bf16.msra.mxu0 0
      %716 = vmatpush.bf16.msra.mxu0 0
      %717 = vmatpush.bf16.msra.mxu0 0
      %718 = vmatpush.bf16.msra.mxu0 %v585
      %719 = vmatpush.bf16.msra.mxu0 %v582
      %720 = vmatpush.bf16.msra.mxu0 %v579
      %721 = vmatmul.bf16.gmra.mxu0 %v711
      %v722 = vpop.f32.mrf.mxu0
      %v723 = vadd.f32 %v673, %v722
      %v724 = vpop.f32.mrf.mxu0
      %v725 = vadd.f32 %v675, %v724
      %726 = vdwg.mxu0
      %727 = vmatpush.bf16.msra.mxu0 0
      %728 = vmatpush.bf16.msra.mxu0 0
      %729 = vmatpush.bf16.msra.mxu0 0
      %730 = vmatpush.bf16.msra.mxu0 0
      %731 = vmatpush.bf16.msra.mxu0 0
      %732 = vmatpush.bf16.msra.mxu0 %v586
      %733 = vmatpush.bf16.msra.mxu0 %v583
      %734 = vmatpush.bf16.msra.mxu0 %v580
      %735 = vmatmul.bf16.gmra.mxu0 %v711
      %v736 = vpop.f32.mrf.mxu0
      %v737 = vadd.f32 %v687, %v736
      %v738 = vpop.f32.mrf.mxu0
      %v739 = vadd.f32 %v689, %v738
      %740 = vdwg.mxu0
      %741 = vmatpush.bf16.msra.mxu0 0
      %742 = vmatpush.bf16.msra.mxu0 0
      %743 = vmatpush.bf16.msra.mxu0 0
      %744 = vmatpush.bf16.msra.mxu0 0
      %745 = vmatpush.bf16.msra.mxu0 0
      %746 = vmatpush.bf16.msra.mxu0 %v587
      %747 = vmatpush.bf16.msra.mxu0 %v584
      %748 = vmatpush.bf16.msra.mxu0 %v581
      %749 = vmatmul.bf16.gmra.mxu0 %v711
      %v750 = vpop.f32.mrf.mxu0
      %v751 = vadd.f32 %v701, %v750
      %v752 = vpop.f32.mrf.mxu0
      %v753 = vadd.f32 %v703, %v752
      %754 = vdwg.mxu0
      %755 = vrot.lane.b32.xlu0 %v199, 95
      %v756 = vpop.permute.xlu0 %755
      %757 = vrot.lane.b32.xlu0 %v202, 95
      %v758 = vpop.permute.xlu0 %757
      %759 = vrot.lane.b32.xlu0 %v205, 95
      %v760 = vpop.permute.xlu0 %759
      %761 = vrot.lane.b32.xlu0 %v208, 95
      %v762 = vpop.permute.xlu0 %761
      %763 = vrot.lane.b32.xlu0 %v211, 95
      %v764 = vpop.permute.xlu0 %763
      %765 = vrot.lane.b32.xlu0 %v214, 95
      %v766 = vpop.permute.xlu0 %765
      %767 = vrot.lane.b32.xlu0 %v200, 95
      %v768 = vpop.permute.xlu0 %767
      %769 = vrot.lane.b32.xlu0 %v203, 95
      %v770 = vpop.permute.xlu0 %769
      %771 = vrot.lane.b32.xlu0 %v206, 95
      %v772 = vpop.permute.xlu0 %771
      %773 = vrot.lane.b32.xlu0 %v209, 95
      %v774 = vpop.permute.xlu0 %773
      %775 = vrot.lane.b32.xlu0 %v212, 95
      %v776 = vpop.permute.xlu0 %775
      %777 = vrot.lane.b32.xlu0 %v215, 95
      %v778 = vpop.permute.xlu0 %777
      %779 = vrot.lane.b32.xlu0 %v201, 95
      %v780 = vpop.permute.xlu0 %779
      %781 = vrot.lane.b32.xlu0 %v204, 95
      %v782 = vpop.permute.xlu0 %781
      %783 = vrot.lane.b32.xlu0 %v207, 95
      %v784 = vpop.permute.xlu0 %783
      %785 = vrot.lane.b32.xlu0 %v210, 95
      %v786 = vpop.permute.xlu0 %785
      %787 = vrot.lane.b32.xlu0 %v213, 95
      %v788 = vpop.permute.xlu0 %787
      %789 = vrot.lane.b32.xlu0 %v216, 95
      %v790 = vpop.permute.xlu0 %789
      %vm791 = vcmp.lt.s32.totalorder %v254, 95
      %v792 = vsel %vm791, %v768, %v780
      %v793 = vsel %vm791, %v770, %v782
      %v794 = vsel %vm791, %v772, %v784
      %v795 = vsel %vm791, %v774, %v786
      %v796 = vsel %vm791, %v776, %v788
      %v797 = vsel %vm791, %v778, %v790
      %v798 = vsel %vm791, %v756, %v768
      %v799 = vsel %vm791, %v758, %v770
      %v800 = vsel %vm791, %v760, %v772
      %v801 = vsel %vm791, %v762, %v774
      %v802 = vsel %vm791, %v764, %v776
      %v803 = vsel %vm791, %v766, %v778
      %v804 = vsel %vm791, %v780, %v756
      %v805 = vsel %vm791, %v782, %v758
      %v806 = vsel %vm791, %v784, %v760
      %v807 = vsel %vm791, %v786, %v762
      %v808 = vsel %vm791, %v788, %v764
      %v809 = vsel %vm791, %v790, %v766
      %s810 = scalar_lea.vmem %s1, 16
      %v811 = vld [vmem:[%s810] sm:$0xf]
      %v812 = vld [vmem:[%s810 + $0x4] sm:$0xf]
      %v813 = vpack.c.bf16 %v805, %v804
      %v814 = vpack.c.bf16 %v799, %v798
      %v815 = vpack.c.bf16 %v793, %v792
      %v816 = vpack.c.bf16 %v807, %v806
      %v817 = vpack.c.bf16 %v801, %v800
      %v818 = vpack.c.bf16 %v795, %v794
      %v819 = vpack.c.bf16 %v809, %v808
      %v820 = vpack.c.bf16 %v803, %v802
      %v821 = vpack.c.bf16 %v797, %v796
      %v824 = vunpack.c.l.b16 %v811
      %v825 = vunpack.c.l.b16 %v812
      %v826 = vpack.c.b16 %v825, %v824
      %v828 = vsel %vm303, %v826, 0
      %830 = vmatpush.bf16.msra.mxu0 0
      %831 = vmatpush.bf16.msra.mxu0 0
      %832 = vmatpush.bf16.msra.mxu0 0
      %833 = vmatpush.bf16.msra.mxu0 0
      %834 = vmatpush.bf16.msra.mxu0 0
      %835 = vmatpush.bf16.msra.mxu0 %v819
      %836 = vmatpush.bf16.msra.mxu0 %v816
      %837 = vmatpush.bf16.msra.mxu0 %v813
      %838 = vmatmul.bf16.gmra.mxu0 %v828
      %v839 = vpop.f32.mrf.mxu0
      %v840 = vadd.f32 0.0, %v839
      %v841 = vpop.f32.mrf.mxu0
      %v842 = vadd.f32 0.0, %v841
      %843 = vdwg.mxu0
      %844 = vmatpush.bf16.msra.mxu0 0
      %845 = vmatpush.bf16.msra.mxu0 0
      %846 = vmatpush.bf16.msra.mxu0 0
      %847 = vmatpush.bf16.msra.mxu0 0
      %848 = vmatpush.bf16.msra.mxu0 0
      %849 = vmatpush.bf16.msra.mxu0 %v820
      %850 = vmatpush.bf16.msra.mxu0 %v817
      %851 = vmatpush.bf16.msra.mxu0 %v814
      %852 = vmatmul.bf16.gmra.mxu0 %v828
      %v853 = vpop.f32.mrf.mxu0
      %v854 = vadd.f32 0.0, %v853
      %v855 = vpop.f32.mrf.mxu0
      %v856 = vadd.f32 0.0, %v855
      %857 = vdwg.mxu0
      %858 = vmatpush.bf16.msra.mxu0 0
      %859 = vmatpush.bf16.msra.mxu0 0
      %860 = vmatpush.bf16.msra.mxu0 0
      %861 = vmatpush.bf16.msra.mxu0 0
      %862 = vmatpush.bf16.msra.mxu0 0
      %863 = vmatpush.bf16.msra.mxu0 %v821
      %864 = vmatpush.bf16.msra.mxu0 %v818
      %865 = vmatpush.bf16.msra.mxu0 %v815
      %866 = vmatmul.bf16.gmra.mxu0 %v828
      %v867 = vpop.f32.mrf.mxu0
      %v868 = vadd.f32 0.0, %v867
      %v869 = vpop.f32.mrf.mxu0
      %v870 = vadd.f32 0.0, %v869
      %871 = vdwg.mxu0
      %v872 = vadd.f32 %v723, %v840
      %v873 = vadd.f32 %v737, %v854
      %v874 = vadd.f32 %v751, %v868
      %v875 = vadd.f32 %v725, %v842
      %v876 = vadd.f32 %v739, %v856
      %v877 = vadd.f32 %v753, %v870
      %v878 = vadd.s32 %v254, 128
      %v879 = vadd.s32 %v254, 256
      %vm880 = vcmp.ge.s32.totalorder %v254, 96
      %vm881 = vcmp.ge.s32.totalorder %v878, 96
      %vm882 = vcmp.ge.s32.totalorder %v879, 96
      %v883 = vsel %vm880, %v872, 0.0
      %v884 = vsel %vm881, %v873, 0.0
      %v885 = vsel %vm882, %v874, 0.0
      %v886 = vsel %vm880, %v875, 0.0
      %v887 = vsel %vm881, %v876, 0.0
      %v888 = vsel %vm882, %v877, 0.0
      %v889 = vadd.f32 %v516, %v883
      %v890 = vadd.f32 %v517, %v884
      %v891 = vadd.f32 %v518, %v885
      %v892 = vadd.f32 %v519, %v886
      %v893 = vadd.f32 %v520, %v887
      %v894 = vadd.f32 %v521, %v888
      %v895 = vld [vmem:[%s2] sm:$0xff]
      %v896 = vld [vmem:[%s2 + $0x8] sm:$0xff]
      %v897 = vld [vmem:[%s3] sm:$0x7]
      %899 = vset.pattern.permute.xlu0 0
      %900 = vperm.xlu0 %899, %v895
      %v901 = vpop.permute.xlu0 %900
      %904 = vset.pattern.permute.xlu0 0
      %905 = vperm.xlu0 %904, %v896
      %v906 = vpop.permute.xlu0 %905
      %v908 = vadd.f32 %v889, %v901
      %v909 = vadd.f32 %v890, %v901
      %v910 = vadd.f32 %v891, %v901
      %v911 = vadd.f32 %v892, %v906
      %v912 = vadd.f32 %v893, %v906
      %v913 = vadd.f32 %v894, %v906
      %v915 = vperm.slane %v897, 0
      %v916 = vperm.slane %v897, 1
      %v917 = vperm.slane %v897, 2
      %v921 = vmul.f32 %v908, %v915
      %v922 = vmul.f32 %v909, %v916
      %v923 = vmul.f32 %v910, %v917
      %v924 = vmul.f32 %v911, %v915
      %v925 = vmul.f32 %v912, %v916
      %v926 = vmul.f32 %v913, %v917
      %v927 = vadd.f32 %v921, %v922
      %v928 = vadd.f32 %v927, %v923
      %929 = vadd.xlane.f32.xlu0 %v928
      %v930 = vpop.xlane.xlu0 %929
      %v931 = vadd.f32 %v924, %v925
      %v932 = vadd.f32 %v931, %v926
      %933 = vadd.xlane.f32.xlu0 %v932
      %v934 = vpop.xlane.xlu0 %933
      %v935 = vmul.f32 %v930, 0.0036764706
      %v936 = vmul.f32 %v934, 0.0036764706
      %v937 = vmul.f32 %v921, %v921
      %v938 = vmul.f32 %v922, %v922
      %v939 = vmul.f32 %v923, %v923
      %v940 = vmul.f32 %v924, %v924
      %v941 = vmul.f32 %v925, %v925
      %v942 = vmul.f32 %v926, %v926
      %v943 = vadd.f32 %v937, %v938
      %v944 = vadd.f32 %v943, %v939
      %945 = vadd.xlane.f32.xlu0 %v944
      %v946 = vpop.xlane.xlu0 %945
      %v947 = vadd.f32 %v940, %v941
      %v948 = vadd.f32 %v947, %v942
      %949 = vadd.xlane.f32.xlu0 %v948
      %v950 = vpop.xlane.xlu0 %949
      %v951 = vmul.f32 %v946, 0.0036764706
      %v952 = vmul.f32 %v950, 0.0036764706
      %v953 = vmul.f32 %v935, %v935
      %v954 = vmul.f32 %v936, %v936
      %v955 = vsub.f32 %v951, %v953
      %v956 = vsub.f32 %v952, %v954
      %v957 = vadd.f32 %v955, 1e-05
      %v958 = vadd.f32 %v956, 1e-05
      %v959 = vrsqrt.pop %v957
      %v960 = vmul.f32 %v959, %v957
      %v961 = vmul.f32 %v960, %v959
      %v962 = vmul.f32 0.5, %v961
      %v963 = vsub.f32 1.5, %v962
      %v964 = vmul.f32 %v959, %v963
      %vm965 = vweird.f32 %v957
      %vm966 = vweird.f32 %v959
      %vm967 = vmor %vm965, %vm966
      %v968 = vsel %vm967, %v959, %v964
      %v969 = vrsqrt.pop %v958
      %v970 = vmul.f32 %v969, %v958
      %v971 = vmul.f32 %v970, %v969
      %v972 = vmul.f32 0.5, %v971
      %v973 = vsub.f32 1.5, %v972
      %v974 = vmul.f32 %v969, %v973
      %vm975 = vweird.f32 %v958
      %vm976 = vweird.f32 %v969
      %vm977 = vmor %vm975, %vm976
      %v978 = vsel %vm977, %v969, %v974
      %v979 = vmul.f32 %v895, %v968
      %v980 = vmul.f32 %v896, %v978
      %v981 = vmul.f32 %v935, %v979
      %v982 = vmul.f32 %v936, %v980
      %985 = vrot.lane.b32.xlu0 %v981, 1
      %v986 = vpop.permute.xlu0 %985
      %987 = vrot.lane.b32.xlu0 %v982, 1
      %v988 = vpop.permute.xlu0 %987
      %v991 = vsub.f32 %v895, %v986
      %v992 = vsub.f32 %v896, %v988
      %994 = vset.pattern.permute.xlu0 1
      %995 = vperm.xlu0 %994, %v979
      %v996 = vpop.permute.xlu0 %995
      %999 = vset.pattern.permute.xlu0 1
      %1000 = vperm.xlu0 %999, %v980
      %v1001 = vpop.permute.xlu0 %1000
      %v1003 = vmul.f32 %v908, %v996
      %v1004 = vmul.f32 %v909, %v996
      %v1005 = vmul.f32 %v910, %v996
      %v1006 = vmul.f32 %v911, %v1001
      %v1007 = vmul.f32 %v912, %v1001
      %v1008 = vmul.f32 %v913, %v1001
      %1010 = vset.pattern.permute.xlu0 2
      %1011 = vperm.xlu0 %1010, %v991
      %v1012 = vpop.permute.xlu0 %1011
      %1015 = vset.pattern.permute.xlu0 2
      %1016 = vperm.xlu0 %1015, %v992
      %v1017 = vpop.permute.xlu0 %1016
      %v1019 = vadd.f32 %v1003, %v1012
      %v1020 = vadd.f32 %v1004, %v1012
      %v1021 = vadd.f32 %v1005, %v1012
      %v1022 = vadd.f32 %v1006, %v1017
      %v1023 = vadd.f32 %v1007, %v1017
      %v1024 = vadd.f32 %v1008, %v1017
      %vm1025 = vcmp.ge.f32.partialorder %v1019, 0.0
      %vm1026 = vcmp.ge.f32.partialorder %v1020, 0.0
      %vm1027 = vcmp.ge.f32.partialorder %v1021, 0.0
      %vm1028 = vcmp.ge.f32.partialorder %v1022, 0.0
      %vm1029 = vcmp.ge.f32.partialorder %v1023, 0.0
      %vm1030 = vcmp.ge.f32.partialorder %v1024, 0.0
      %1031 = vset.pattern.permute.xlu0 3
      %1032 = vperm.xlu0 %1031, %v895
      %v1033 = vpop.permute.xlu0 %1032
      %1035 = vset.pattern.permute.xlu0 3
      %1036 = vperm.xlu0 %1035, %v896
      %v1037 = vpop.permute.xlu0 %1036
      %v1039 = vmul.f32 %v1033, %v1019
      %v1040 = vmul.f32 %v1033, %v1020
      %v1041 = vmul.f32 %v1033, %v1021
      %v1042 = vmul.f32 %v1037, %v1022
      %v1043 = vmul.f32 %v1037, %v1023
      %v1044 = vmul.f32 %v1037, %v1024
      %v1045 = vsel %vm1025, %v1019, %v1039
      %v1046 = vsel %vm1026, %v1020, %v1040
      %v1047 = vsel %vm1027, %v1021, %v1041
      %v1048 = vsel %vm1028, %v1022, %v1042
      %v1049 = vsel %vm1029, %v1023, %v1043
      %v1050 = vsel %vm1030, %v1024, %v1044
      %v1051 = vmul.f32 %v1045, %v915
      %v1052 = vmul.f32 %v1046, %v916
      %v1053 = vmul.f32 %v1047, %v917
      %v1054 = vmul.f32 %v1048, %v915
      %v1055 = vmul.f32 %v1049, %v916
      %v1056 = vmul.f32 %v1050, %v917
      %1057 = vst [vmem:[%s197] sm:$0xff] %v1051
      %1058 = vst [vmem:[%s197 + $0x8] sm:$0xff] %v1052
      %1059 = vst [vmem:[%s197 + $0x10] sm:$0xff] %v1053
      %1060 = vst [vmem:[%s197 + $0x18] sm:$0xff] %v1054
      %1061 = vst [vmem:[%s197 + $0x20] sm:$0xff] %v1055
      %1062 = vst [vmem:[%s197 + $0x28] sm:$0xff] %v1056
      %p1063 = scmp.lt.s32.totalorder %s15, 1
      %s1064 = scalar_select %p1063, %s15, 1
      %s1065 = smul.addr %s1064, 6
      %s1066 = smul.addr %s1065, 8
      %s1067 = scalar_lea.vmem %s4, %s1066
      // Predicated region
      $region37: #{dilated_dense_net.6} parent=35 // pred_check
        %p1068 = pneg %p122
      $region38: #{dilated_dense_net.6} parent=35 // pred_check_branch
        %1070 = sbr.rel (%p1068) target = $region40
      $region39: #{dilated_dense_net.6} parent=35 // pred_region
        _
      $region40: #{dilated_dense_net.6} parent=35 // pred_fallthru
        _
    $region36: #{dilated_dense_net.6} parent=5 // pred_fallthru
      _
    %p1071 = scmp.le.s32.totalorder 2, %s10
    // Predicated region
    $region41: #{dilated_dense_net.6} parent=5 // pred_check
      %p1072 = pneg %p1071
    $region42: #{dilated_dense_net.6} parent=5 // pred_check_branch
      %1074 = sbr.rel (%p1072) target = $region44
    $region43: #{dilated_dense_net.6} parent=5 // pred_region
      %s1075 = ssub.s32 %s10, 2
      // Predicated region
      $region45: #{dilated_dense_net.6} parent=43 // pred_check
        %p1076 = pneg %p128
      $region46: #{dilated_dense_net.6} parent=43 // pred_check_branch
        %1078 = sbr.rel (%p1076) target = $region48
      $region47: #{dilated_dense_net.6} parent=43 // pred_region
        %p1079 = scmp.lt.s32.totalorder %s16, 1
        %s1080 = scalar_select %p1079, %s16, 1
        %s1081 = smul.addr %s1080, 6
        %s1082 = smul.addr %s1081, 8
        %s1083 = scalar_lea.vmem %s4, %s1082
      $region48: #{dilated_dense_net.6} parent=43 // pred_fallthru
        _
    $region44: #{dilated_dense_net.6} parent=5 // pred_fallthru
      _
  $region6: #{dilated_dense_net.6} parent=0 // loop_footer
    %s14 = sadd.s32 1, %s10
  $region7: #{dilated_dense_net.6} parent=0 // loop_footer_branch
    %9 = sbr.rel target = $region3
  $region8: #{dilated_dense_net.6} parent=0 // loop_exit
    _

// kernel: dilated_dense_net.7
$region0: #{dilated_dense_net.7}
  #allocation0 [shape = 'u32[]', space=smem, size = 0x4, offset = 0x4, fixed_abs, tag = 'smem constant byte address 0x4 - core index']
  #allocation1 [shape = 'u32[72,128]{1,0:T(1,128)}', space=vmem, size = 0x9000, scoped, tag = 'internal scratch']
  %s0 = inlined_call_operand.vmem [shape: f32[2,64,384], index: 0, kind: input, shape index: {}]
  %s1 = inlined_call_operand.vmem [shape: bf16[6,16,64], index: 1, kind: input, shape index: {}]
  %s2 = inlined_call_operand.vmem [shape: f32[16,4], index: 2, kind: input, shape index: {}]
  %s3 = inlined_call_operand.vmem [shape: f32[1,384], index: 3, kind: input, shape index: {}]
  %s4 = inlined_call_operand.vmem [shape: f32[2,16,384], index: 4, kind: output, shape index: {}]
  %s5 = sld [smem:[#allocation0]]
  $region49: #{dilated_dense_net.7} parent=0
    _
  %s7 = ssub.s32 1, %s5
  %s8 = scalar_select 0, %s7, %s5
  loop: start=0, step=1, limit=4
  $region2: #{dilated_dense_net.7} parent=0 // loop_pre_header
    _
  $region3: #{dilated_dense_net.7} parent=0 // loop_header
    %s10 = sphi 0, %s14
    %p11 = scmp.ge.s32.totalorder %s10, 4
    %s20 = sphi 0, %s22
    %s23 = sphi 0, %s20
    %s24 = sphi 0, %s23
    %s40 = sphi 0, %s24
    %s44 = sphi 0, %s44
    %s46 = sphi 0, %s44
    %s47 = sphi 0, %s46
    %s61 = sphi 0, %s47
    %s65 = sphi 0, %s65
    %s67 = sphi 0, %s65
    %s68 = sphi 0, %s67
    %s82 = sphi 0, %s68
    %s86 = sphi 0, %s86
    %s88 = sphi 0, %s86
    %s89 = sphi 0, %s88
    %s103 = sphi 0, %s89
    %s109 = sphi 0, %s111
    %s112 = sphi 0, %s109
    %s113 = sphi 0, %s112
    %s129 = sphi 0, %s113
  $region4: #{dilated_dense_net.7} parent=0 // loop_header_branch
    %13 = sbr.rel (%p11) target = $region8
  $region5: #{dilated_dense_net.7} parent=0 // loop_body
    %s15 = ssub.s32 %s10, 1
    %s16 = ssub.s32 %s10, 2
    %s17 = sadd.s32 %s10, 1
    %s18 = ssub.s32 %s10, %s17
    %p19 = scmp.eq.s32.totalorder %s18, 0
    %s21 = sadd.s32 %s20, 1
    %s22 = scalar_select %p19, %s20, %s21
    %p25 = pneg %p19
    %p26 = scmp.eq.s32.totalorder %s10, 1
    %p27 = por %p25, %p26
    %p28 = scmp.ne.s32.totalorder %s20, %s23
    %p29 = scmp.eq.s32.totalorder %s10, 0
    %p30 = por %p28, %p29
    %p31 = scmp.ne.s32.totalorder %s20, %s23
    %p32 = scmp.eq.s32.totalorder %s15, 1
    %p33 = por %p31, %p32
    %p34 = scmp.ne.s32.totalorder %s23, %s24
    %p35 = scmp.eq.s32.totalorder %s15, 0
    %p36 = por %p34, %p35
    %p37 = scmp.ne.s32.totalorder %s23, %s24
    %p38 = scmp.eq.s32.totalorder %s16, 1
    %p39 = por %p37, %p38
    %p41 = scmp.ne.s32.totalorder %s24, %s40
    %p42 = scmp.eq.s32.totalorder %s16, 0
    %p43 = por %p41, %p42
    %s45 = sadd.s32 %s44, 1
    %p48 = scmp.eq.s32.totalorder %s10, 1
    %p49 = scmp.ne.s32.totalorder %s44, %s46
    %p50 = scmp.eq.s32.totalorder %s10, 0
    %p51 = por %p49, %p50
    %p52 = scmp.ne.s32.totalorder %s44, %s46
    %p53 = scmp.eq.s32.totalorder %s15, 1
    %p54 = por %p52, %p53
    %p55 = scmp.ne.s32.totalorder %s46, %s47
    %p56 = scmp.eq.s32.totalorder %s15, 0
    %p57 = por %p55, %p56
    %p58 = scmp.ne.s32.totalorder %s46, %s47
    %p59 = scmp.eq.s32.totalorder %s16, 1
    %p60 = por %p58, %p59
    %p62 = scmp.ne.s32.totalorder %s47, %s61
    %p63 = scmp.eq.s32.totalorder %s16, 0
    %p64 = por %p62, %p63
    %s66 = sadd.s32 %s65, 1
    %p69 = scmp.eq.s32.totalorder %s10, 1
    %p70 = scmp.ne.s32.totalorder %s65, %s67
    %p71 = scmp.eq.s32.totalorder %s10, 0
    %p72 = por %p70, %p71
    %p73 = scmp.ne.s32.totalorder %s65, %s67
    %p74 = scmp.eq.s32.totalorder %s15, 1
    %p75 = por %p73, %p74
    %p76 = scmp.ne.s32.totalorder %s67, %s68
    %p77 = scmp.eq.s32.totalorder %s15, 0
    %p78 = por %p76, %p77
    %p79 = scmp.ne.s32.totalorder %s67, %s68
    %p80 = scmp.eq.s32.totalorder %s16, 1
    %p81 = por %p79, %p80
    %p83 = scmp.ne.s32.totalorder %s68, %s82
    %p84 = scmp.eq.s32.totalorder %s16, 0
    %p85 = por %p83, %p84
    %s87 = sadd.s32 %s86, 1
    %p90 = scmp.eq.s32.totalorder %s10, 1
    %p91 = scmp.ne.s32.totalorder %s86, %s88
    %p92 = scmp.eq.s32.totalorder %s10, 0
    %p93 = por %p91, %p92
    %p94 = scmp.ne.s32.totalorder %s86, %s88
    %p95 = scmp.eq.s32.totalorder %s15, 1
    %p96 = por %p94, %p95
    %p97 = scmp.ne.s32.totalorder %s88, %s89
    %p98 = scmp.eq.s32.totalorder %s15, 0
    %p99 = por %p97, %p98
    %p100 = scmp.ne.s32.totalorder %s88, %s89
    %p101 = scmp.eq.s32.totalorder %s16, 1
    %p102 = por %p100, %p101
    %p104 = scmp.ne.s32.totalorder %s89, %s103
    %p105 = scmp.eq.s32.totalorder %s16, 0
    %p106 = por %p104, %p105
    %s107 = ssub.s32 %s10, %s17
    %p108 = scmp.eq.s32.totalorder %s107, 0
    %s110 = sadd.s32 %s109, 1
    %s111 = scalar_select %p108, %s109, %s110
    %p114 = pneg %p108
    %p115 = scmp.eq.s32.totalorder %s10, 1
    %p116 = por %p114, %p115
    %p117 = scmp.ne.s32.totalorder %s109, %s112
    %p118 = scmp.eq.s32.totalorder %s10, 0
    %p119 = por %p117, %p118
    %p120 = scmp.ne.s32.totalorder %s109, %s112
    %p121 = scmp.eq.s32.totalorder %s15, 1
    %p122 = por %p120, %p121
    %p123 = scmp.ne.s32.totalorder %s112, %s113
    %p124 = scmp.eq.s32.totalorder %s15, 0
    %p125 = por %p123, %p124
    %p126 = scmp.ne.s32.totalorder %s112, %s113
    %p127 = scmp.eq.s32.totalorder %s16, 1
    %p128 = por %p126, %p127
    %p130 = scmp.ne.s32.totalorder %s113, %s129
    %p131 = scmp.eq.s32.totalorder %s16, 0
    %p132 = por %p130, %p131
    %p133 = scmp.le.s32.totalorder 1, %s10
    %p134 = scmp.lt.s32.totalorder %s10, 3
    %p135 = pnand %p133, %p134
    %p136 = pneg %p135
    // Predicated region
    $region9: #{dilated_dense_net.7} parent=5 // pred_check
      _
    $region10: #{dilated_dense_net.7} parent=5 // pred_check_branch
      %138 = sbr.rel (%p135) target = $region12
    $region11: #{dilated_dense_net.7} parent=5 // pred_region
      %s139 = ssub.s32 %s10, 1
      // Predicated region
      $region13: #{dilated_dense_net.7} parent=11 // pred_check
        %p140 = pneg %p57
      $region14: #{dilated_dense_net.7} parent=11 // pred_check_branch
        %142 = sbr.rel (%p140) target = $region16
      $region15: #{dilated_dense_net.7} parent=11 // pred_region
        _
      $region16: #{dilated_dense_net.7} parent=11 // pred_fallthru
        _
      // Predicated region
      $region17: #{dilated_dense_net.7} parent=11 // pred_check
        %p143 = pneg %p78
      $region18: #{dilated_dense_net.7} parent=11 // pred_check_branch
        %145 = sbr.rel (%p143) target = $region20
      $region19: #{dilated_dense_net.7} parent=11 // pred_region
        _
      $region20: #{dilated_dense_net.7} parent=11 // pred_fallthru
        _
      // Predicated region
      $region21: #{dilated_dense_net.7} parent=11 // pred_check
        %p146 = pneg %p99
      $region22: #{dilated_dense_net.7} parent=11 // pred_check_branch
        %148 = sbr.rel (%p146) target = $region24
      $region23: #{dilated_dense_net.7} parent=11 // pred_region
        _
      $region24: #{dilated_dense_net.7} parent=11 // pred_fallthru
        _
    $region12: #{dilated_dense_net.7} parent=5 // pred_fallthru
      _
    %p149 = scmp.lt.s32.totalorder %s10, 2
    // Predicated region
    $region25: #{dilated_dense_net.7} parent=5 // pred_check
      %p150 = pneg %p149
    $region26: #{dilated_dense_net.7} parent=5 // pred_check_branch
      %152 = sbr.rel (%p150) target = $region28
    $region27: #{dilated_dense_net.7} parent=5 // pred_region
      // Predicated region
      $region29: #{dilated_dense_net.7} parent=27 // pred_check
        %p153 = pneg %p30
      $region30: #{dilated_dense_net.7} parent=27 // pred_check_branch
        %155 = sbr.rel (%p153) target = $region32
      $region31: #{dilated_dense_net.7} parent=27 // pred_region
        %p156 = scmp.lt.s32.totalorder %s10, 1
        %s157 = scalar_select %p156, %s10, 1
        %s158 = smul.addr %s157, 24
        %s159 = smul.addr %s158, 8
        %s160 = scalar_lea.vmem %s0, %s159
      $region32: #{dilated_dense_net.7} parent=27 // pred_fallthru
        _
    $region28: #{dilated_dense_net.7} parent=5 // pred_fallthru
      _
    %p161 = scmp.le.s32.totalorder 1, %s10
    %p162 = scmp.lt.s32.totalorder %s10, 3
    %p163 = pnand %p161, %p162
    %p164 = pneg %p163
    // Predicated region
    $region33: #{dilated_dense_net.7} parent=5 // pred_check
      _
    $region34: #{dilated_dense_net.7} parent=5 // pred_check_branch
      %166 = sbr.rel (%p163) target = $region36
    $region35: #{dilated_dense_net.7} parent=5 // pred_region
      %s167 = ssub.s32 %s10, 1
      %p168 = scmp.lt.s32.totalorder %s15, 1
      %s169 = scalar_select %p168, %s15, 1
      %s170 = smul.addr %s169, 24
      %s171 = smul.addr %s170, 8
      %s172 = scalar_lea.vmem %s0, %s171
      %p173 = pneg %p36
      %p174 = pneg %p33
      %p175 = pneg %p57
      %p176 = pneg %p54
      %p177 = pneg %p78
      %p178 = pneg %p75
      %p179 = pneg %p99
      %p180 = pneg %p96
      %p181 = pneg %p125
      %p182 = pneg %p122
      %p183 = scmp.lt.s32.totalorder %s15, 1
      %s184 = scalar_select %p183, %s15, 1
      %s185 = smul.addr %s184, 6
      %s186 = smul.addr %s185, 8
      %s187 = scalar_lea.vmem %s4, %s186
      %p188 = scmp.lt.s32.totalorder %s15, 1
      %s189 = scalar_select %p188, %s15, 1
      %s190 = smul.addr %s189, 24
      %s191 = smul.addr %s190, 8
      %s192 = scalar_lea.vmem %s0, %s191
      %p193 = scmp.lt.s32.totalorder %s15, 1
      %s194 = scalar_select %p193, %s15, 1
      %s195 = smul.addr %s194, 6
      %s196 = smul.addr %s195, 8
      %s197 = scalar_lea.vmem %s4, %s196
      %v199 = vld [vmem:[%s192] sm:$0xff]
      %v200 = vld [vmem:[%s192 + $0x8] sm:$0xff]
      %v201 = vld [vmem:[%s192 + $0x10] sm:$0xff]
      %v202 = vld [vmem:[%s192 + $0x18] sm:$0xff]
      %v203 = vld [vmem:[%s192 + $0x20] sm:$0xff]
      %v204 = vld [vmem:[%s192 + $0x28] sm:$0xff]
      %v205 = vld [vmem:[%s192 + $0x30] sm:$0xff]
      %v206 = vld [vmem:[%s192 + $0x38] sm:$0xff]
      %v207 = vld [vmem:[%s192 + $0x40] sm:$0xff]
      %v208 = vld [vmem:[%s192 + $0x48] sm:$0xff]
      %v209 = vld [vmem:[%s192 + $0x50] sm:$0xff]
      %v210 = vld [vmem:[%s192 + $0x58] sm:$0xff]
      %v211 = vld [vmem:[%s192 + $0x60] sm:$0xff]
      %v212 = vld [vmem:[%s192 + $0x68] sm:$0xff]
      %v213 = vld [vmem:[%s192 + $0x70] sm:$0xff]
      %v214 = vld [vmem:[%s192 + $0x78] sm:$0xff]
      %v215 = vld [vmem:[%s192 + $0x80] sm:$0xff]
      %v216 = vld [vmem:[%s192 + $0x88] sm:$0xff]
      %v217 = vld [vmem:[%s192 + $0x90] sm:$0xff]
      %v218 = vld [vmem:[%s192 + $0x98] sm:$0xff]
      %v219 = vld [vmem:[%s192 + $0xa0] sm:$0xff]
      %v220 = vld [vmem:[%s192 + $0xa8] sm:$0xff]
      %v221 = vld [vmem:[%s192 + $0xb0] sm:$0xff]
      %v222 = vld [vmem:[%s192 + $0xb8] sm:$0xff]
      %223 = vrot.lane.b32.xlu0 %v199, 1
      %v224 = vpop.permute.xlu0 %223
      %225 = vrot.lane.b32.xlu0 %v202, 1
      %v226 = vpop.permute.xlu0 %225
      %227 = vrot.lane.b32.xlu0 %v205, 1
      %v228 = vpop.permute.xlu0 %227
      %229 = vrot.lane.b32.xlu0 %v208, 1
      %v230 = vpop.permute.xlu0 %229
      %231 = vrot.lane.b32.xlu0 %v211, 1
      %v232 = vpop.permute.xlu0 %231
      %233 = vrot.lane.b32.xlu0 %v214, 1
      %v234 = vpop.permute.xlu0 %233
      %235 = vrot.lane.b32.xlu0 %v217, 1
      %v236 = vpop.permute.xlu0 %235
      %237 = vrot.lane.b32.xlu0 %v220, 1
      %v238 = vpop.permute.xlu0 %237
      %239 = vrot.lane.b32.xlu0 %v200, 1
      %v240 = vpop.permute.xlu0 %239
      %241 = vrot.lane.b32.xlu0 %v203, 1
      %v242 = vpop.permute.xlu0 %241
      %243 = vrot.lane.b32.xlu0 %v206, 1
      %v244 = vpop.permute.xlu0 %243
      %245 = vrot.lane.b32.xlu0 %v209, 1
      %v246 = vpop.permute.xlu0 %245
      %247 = vrot.lane.b32.xlu0 %v212, 1
      %v248 = vpop.permute.xlu0 %247
      %249 = vrot.lane.b32.xlu0 %v215, 1
      %v250 = vpop.permute.xlu0 %249
      %251 = vrot.lane.b32.xlu0 %v218, 1
      %v252 = vpop.permute.xlu0 %251
      %253 = vrot.lane.b32.xlu0 %v221, 1
      %v254 = vpop.permute.xlu0 %253
      %255 = vrot.lane.b32.xlu0 %v201, 1
      %v256 = vpop.permute.xlu0 %255
      %257 = vrot.lane.b32.xlu0 %v204, 1
      %v258 = vpop.permute.xlu0 %257
      %259 = vrot.lane.b32.xlu0 %v207, 1
      %v260 = vpop.permute.xlu0 %259
      %261 = vrot.lane.b32.xlu0 %v210, 1
      %v262 = vpop.permute.xlu0 %261
      %263 = vrot.lane.b32.xlu0 %v213, 1
      %v264 = vpop.permute.xlu0 %263
      %265 = vrot.lane.b32.xlu0 %v216, 1
      %v266 = vpop.permute.xlu0 %265
      %267 = vrot.lane.b32.xlu0 %v219, 1
      %v268 = vpop.permute.xlu0 %267
      %269 = vrot.lane.b32.xlu0 %v222, 1
      %v270 = vpop.permute.xlu0 %269
      %v271 = vlaneseq
      %v272 = vand.u32 %v271, 127
      %vm273 = vcmp.lt.s32.totalorder %v272, 1
      %v274 = vsel %vm273, %v240, %v256
      %v275 = vsel %vm273, %v242, %v258
      %v276 = vsel %vm273, %v244, %v260
      %v277 = vsel %vm273, %v246, %v262
      %v278 = vsel %vm273, %v248, %v264
      %v279 = vsel %vm273, %v250, %v266
      %v280 = vsel %vm273, %v252, %v268
      %v281 = vsel %vm273, %v254, %v270
      %v282 = vsel %vm273, %v224, %v240
      %v283 = vsel %vm273, %v226, %v242
      %v284 = vsel %vm273, %v228, %v244
      %v285 = vsel %vm273, %v230, %v246
      %v286 = vsel %vm273, %v232, %v248
      %v287 = vsel %vm273, %v234, %v250
      %v288 = vsel %vm273, %v236, %v252
      %v289 = vsel %vm273, %v238, %v254
      %v290 = vsel %vm273, %v256, %v224
      %v291 = vsel %vm273, %v258, %v226
      %v292 = vsel %vm273, %v260, %v228
      %v293 = vsel %vm273, %v262, %v230
      %v294 = vsel %vm273, %v264, %v232
      %v295 = vsel %vm273, %v266, %v234
      %v296 = vsel %vm273, %v268, %v236
      %v297 = vsel %vm273, %v270, %v238
      %s298 = scalar_lea.vmem %s1, 24
      %v299 = vld [vmem:[%s298] sm:$0xf]
      %v300 = vld [vmem:[%s298 + $0x4] sm:$0xf]
      %v301 = vpack.c.bf16 %v291, %v290
      %v302 = vpack.c.bf16 %v283, %v282
      %v303 = vpack.c.bf16 %v275, %v274
      %v304 = vpack.c.bf16 %v293, %v292
      %v305 = vpack.c.bf16 %v285, %v284
      %v306 = vpack.c.bf16 %v277, %v276
      %v307 = vpack.c.bf16 %v295, %v294
      %v308 = vpack.c.bf16 %v287, %v286
      %v309 = vpack.c.bf16 %v279, %v278
      %v310 = vpack.c.bf16 %v297, %v296
      %v311 = vpack.c.bf16 %v289, %v288
      %v312 = vpack.c.bf16 %v281, %v280
      %s313 = scalar_lea.vmem %s1, 32
      %v314 = vld [vmem:[%s313] sm:$0xf]
      %v315 = vld [vmem:[%s313 + $0x4] sm:$0xf]
      %v316 = vpack.c.bf16 %v202, %v199
      %v317 = vpack.c.bf16 %v203, %v200
      %v318 = vpack.c.bf16 %v204, %v201
      %v319 = vpack.c.bf16 %v208, %v205
      %v320 = vpack.c.bf16 %v209, %v206
      %v321 = vpack.c.bf16 %v210, %v207
      %v322 = vpack.c.bf16 %v214, %v211
      %v323 = vpack.c.bf16 %v215, %v212
      %v324 = vpack.c.bf16 %v216, %v213
      %v325 = vpack.c.bf16 %v220, %v217
      %v326 = vpack.c.bf16 %v221, %v218
      %v327 = vpack.c.bf16 %v222, %v219
      %v330 = vunpack.c.l.b16 %v314
      %v331 = vunpack.c.l.b16 %v315
      %v332 = vpack.c.b16 %v331, %v330
      %vm333 = vcmask 523264
      %v335 = vsel %vm333, %v332, 0
      %337 = vmatpush.bf16.msra.mxu0 0
      %338 = vmatpush.bf16.msra.mxu0 0
      %339 = vmatpush.bf16.msra.mxu0 0
      %340 = vmatpush.bf16.msra.mxu0 0
      %341 = vmatpush.bf16.msra.mxu0 %v325
      %342 = vmatpush.bf16.msra.mxu0 %v322
      %343 = vmatpush.bf16.msra.mxu0 %v319
      %344 = vmatpush.bf16.msra.mxu0 %v316
      %345 = vmatmul.bf16.gmra.mxu0 %v335
      %v346 = vpop.f32.mrf.mxu0
      %v347 = vadd.f32 0.0, %v346
      %v348 = vpop.f32.mrf.mxu0
      %v349 = vadd.f32 0.0, %v348
      %350 = vdwg.mxu0
      %351 = vmatpush.bf16.msra.mxu0 0
      %352 = vmatpush.bf16.msra.mxu0 0
      %353 = vmatpush.bf16.msra.mxu0 0
      %354 = vmatpush.bf16.msra.mxu0 0
      %355 = vmatpush.bf16.msra.mxu0 %v326
      %356 = vmatpush.bf16.msra.mxu0 %v323
      %357 = vmatpush.bf16.msra.mxu0 %v320
      %358 = vmatpush.bf16.msra.mxu0 %v317
      %359 = vmatmul.bf16.gmra.mxu0 %v335
      %v360 = vpop.f32.mrf.mxu0
      %v361 = vadd.f32 0.0, %v360
      %v362 = vpop.f32.mrf.mxu0
      %v363 = vadd.f32 0.0, %v362
      %364 = vdwg.mxu0
      %365 = vmatpush.bf16.msra.mxu0 0
      %366 = vmatpush.bf16.msra.mxu0 0
      %367 = vmatpush.bf16.msra.mxu0 0
      %368 = vmatpush.bf16.msra.mxu0 0
      %369 = vmatpush.bf16.msra.mxu0 %v327
      %370 = vmatpush.bf16.msra.mxu0 %v324
      %371 = vmatpush.bf16.msra.mxu0 %v321
      %372 = vmatpush.bf16.msra.mxu0 %v318
      %373 = vmatmul.bf16.gmra.mxu0 %v335
      %v374 = vpop.f32.mrf.mxu0
      %v375 = vadd.f32 0.0, %v374
      %v376 = vpop.f32.mrf.mxu0
      %v377 = vadd.f32 0.0, %v376
      %378 = vdwg.mxu0
      %v381 = vunpack.c.l.b16 %v299
      %v382 = vunpack.c.l.b16 %v300
      %v383 = vpack.c.b16 %v382, %v381
      %v385 = vsel %vm333, %v383, 0
      %387 = vmatpush.bf16.msra.mxu0 0
      %388 = vmatpush.bf16.msra.mxu0 0
      %389 = vmatpush.bf16.msra.mxu0 0
      %390 = vmatpush.bf16.msra.mxu0 0
      %391 = vmatpush.bf16.msra.mxu0 %v310
      %392 = vmatpush.bf16.msra.mxu0 %v307
      %393 = vmatpush.bf16.msra.mxu0 %v304
      %394 = vmatpush.bf16.msra.mxu0 %v301
      %395 = vmatmul.bf16.gmra.mxu0 %v385
      %v396 = vpop.f32.mrf.mxu0
      %v397 = vadd.f32 %v347, %v396
      %v398 = vpop.f32.mrf.mxu0
      %v399 = vadd.f32 %v349, %v398
      %400 = vdwg.mxu0
      %401 = vmatpush.bf16.msra.mxu0 0
      %402 = vmatpush.bf16.msra.mxu0 0
      %403 = vmatpush.bf16.msra.mxu0 0
      %404 = vmatpush.bf16.msra.mxu0 0
      %405 = vmatpush.bf16.msra.mxu0 %v311
      %406 = vmatpush.bf16.msra.mxu0 %v308
      %407 = vmatpush.bf16.msra.mxu0 %v305
      %408 = vmatpush.bf16.msra.mxu0 %v302
      %409 = vmatmul.bf16.gmra.mxu0 %v385
      %v410 = vpop.f32.mrf.mxu0
      %v411 = vadd.f32 %v361, %v410
      %v412 = vpop.f32.mrf.mxu0
      %v413 = vadd.f32 %v363, %v412
      %414 = vdwg.mxu0
      %415 = vmatpush.bf16.msra.mxu0 0
      %416 = vmatpush.bf16.msra.mxu0 0
      %417 = vmatpush.bf16.msra.mxu0 0
      %418 = vmatpush.bf16.msra.mxu0 0
      %419 = vmatpush.bf16.msra.mxu0 %v312
      %420 = vmatpush.bf16.msra.mxu0 %v309
      %421 = vmatpush.bf16.msra.mxu0 %v306
      %422 = vmatpush.bf16.msra.mxu0 %v303
      %423 = vmatmul.bf16.gmra.mxu0 %v385
      %v424 = vpop.f32.mrf.mxu0
      %v425 = vadd.f32 %v375, %v424
      %v426 = vpop.f32.mrf.mxu0
      %v427 = vadd.f32 %v377, %v426
      %428 = vdwg.mxu0
      %429 = vrot.lane.b32.xlu0 %v199, 127
      %v430 = vpop.permute.xlu0 %429
      %431 = vrot.lane.b32.xlu0 %v202, 127
      %v432 = vpop.permute.xlu0 %431
      %433 = vrot.lane.b32.xlu0 %v205, 127
      %v434 = vpop.permute.xlu0 %433
      %435 = vrot.lane.b32.xlu0 %v208, 127
      %v436 = vpop.permute.xlu0 %435
      %437 = vrot.lane.b32.xlu0 %v211, 127
      %v438 = vpop.permute.xlu0 %437
      %439 = vrot.lane.b32.xlu0 %v214, 127
      %v440 = vpop.permute.xlu0 %439
      %441 = vrot.lane.b32.xlu0 %v217, 127
      %v442 = vpop.permute.xlu0 %441
      %443 = vrot.lane.b32.xlu0 %v220, 127
      %v444 = vpop.permute.xlu0 %443
      %445 = vrot.lane.b32.xlu0 %v200, 127
      %v446 = vpop.permute.xlu0 %445
      %447 = vrot.lane.b32.xlu0 %v203, 127
      %v448 = vpop.permute.xlu0 %447
      %449 = vrot.lane.b32.xlu0 %v206, 127
      %v450 = vpop.permute.xlu0 %449
      %451 = vrot.lane.b32.xlu0 %v209, 127
      %v452 = vpop.permute.xlu0 %451
      %453 = vrot.lane.b32.xlu0 %v212, 127
      %v454 = vpop.permute.xlu0 %453
      %455 = vrot.lane.b32.xlu0 %v215, 127
      %v456 = vpop.permute.xlu0 %455
      %457 = vrot.lane.b32.xlu0 %v218, 127
      %v458 = vpop.permute.xlu0 %457
      %459 = vrot.lane.b32.xlu0 %v221, 127
      %v460 = vpop.permute.xlu0 %459
      %461 = vrot.lane.b32.xlu0 %v201, 127
      %v462 = vpop.permute.xlu0 %461
      %463 = vrot.lane.b32.xlu0 %v204, 127
      %v464 = vpop.permute.xlu0 %463
      %465 = vrot.lane.b32.xlu0 %v207, 127
      %v466 = vpop.permute.xlu0 %465
      %467 = vrot.lane.b32.xlu0 %v210, 127
      %v468 = vpop.permute.xlu0 %467
      %469 = vrot.lane.b32.xlu0 %v213, 127
      %v470 = vpop.permute.xlu0 %469
      %471 = vrot.lane.b32.xlu0 %v216, 127
      %v472 = vpop.permute.xlu0 %471
      %473 = vrot.lane.b32.xlu0 %v219, 127
      %v474 = vpop.permute.xlu0 %473
      %475 = vrot.lane.b32.xlu0 %v222, 127
      %v476 = vpop.permute.xlu0 %475
      %vm477 = vcmp.lt.s32.totalorder %v272, 127
      %v478 = vsel %vm477, %v446, %v462
      %v479 = vsel %vm477, %v448, %v464
      %v480 = vsel %vm477, %v450, %v466
      %v481 = vsel %vm477, %v452, %v468
      %v482 = vsel %vm477, %v454, %v470
      %v483 = vsel %vm477, %v456, %v472
      %v484 = vsel %vm477, %v458, %v474
      %v485 = vsel %vm477, %v460, %v476
      %v486 = vsel %vm477, %v430, %v446
      %v487 = vsel %vm477, %v432, %v448
      %v488 = vsel %vm477, %v434, %v450
      %v489 = vsel %vm477, %v436, %v452
      %v490 = vsel %vm477, %v438, %v454
      %v491 = vsel %vm477, %v440, %v456
      %v492 = vsel %vm477, %v442, %v458
      %v493 = vsel %vm477, %v444, %v460
      %v494 = vsel %vm477, %v462, %v430
      %v495 = vsel %vm477, %v464, %v432
      %v496 = vsel %vm477, %v466, %v434
      %v497 = vsel %vm477, %v468, %v436
      %v498 = vsel %vm477, %v470, %v438
      %v499 = vsel %vm477, %v472, %v440
      %v500 = vsel %vm477, %v474, %v442
      %v501 = vsel %vm477, %v476, %v444
      %s502 = scalar_lea.vmem %s1, 40
      %v503 = vld [vmem:[%s502] sm:$0xf]
      %v504 = vld [vmem:[%s502 + $0x4] sm:$0xf]
      %v505 = vpack.c.bf16 %v487, %v486
      %v506 = vpack.c.bf16 %v479, %v478
      %v507 = vpack.c.bf16 %v495, %v494
      %v508 = vpack.c.bf16 %v489, %v488
      %v509 = vpack.c.bf16 %v481, %v480
      %v510 = vpack.c.bf16 %v497, %v496
      %v511 = vpack.c.bf16 %v491, %v490
      %v512 = vpack.c.bf16 %v483, %v482
      %v513 = vpack.c.bf16 %v499, %v498
      %v514 = vpack.c.bf16 %v493, %v492
      %v515 = vpack.c.bf16 %v485, %v484
      %v516 = vpack.c.bf16 %v501, %v500
      %v519 = vunpack.c.l.b16 %v503
      %v520 = vunpack.c.l.b16 %v504
      %v521 = vpack.c.b16 %v520, %v519
      %v523 = vsel %vm333, %v521, 0
      %525 = vmatpush.bf16.msra.mxu0 0
      %526 = vmatpush.bf16.msra.mxu0 0
      %527 = vmatpush.bf16.msra.mxu0 0
      %528 = vmatpush.bf16.msra.mxu0 0
      %529 = vmatpush.bf16.msra.mxu0 %v514
      %530 = vmatpush.bf16.msra.mxu0 %v511
      %531 = vmatpush.bf16.msra.mxu0 %v508
      %532 = vmatpush.bf16.msra.mxu0 %v505
      %533 = vmatmul.bf16.gmra.mxu0 %v523
      %v534 = vpop.f32.mrf.mxu0
      %v535 = vadd.f32 0.0, %v534
      %v536 = vpop.f32.mrf.mxu0
      %v537 = vadd.f32 0.0, %v536
      %538 = vdwg.mxu0
      %539 = vmatpush.bf16.msra.mxu0 0
      %540 = vmatpush.bf16.msra.mxu0 0
      %541 = vmatpush.bf16.msra.mxu0 0
      %542 = vmatpush.bf16.msra.mxu0 0
      %543 = vmatpush.bf16.msra.mxu0 %v515
      %544 = vmatpush.bf16.msra.mxu0 %v512
      %545 = vmatpush.bf16.msra.mxu0 %v509
      %546 = vmatpush.bf16.msra.mxu0 %v506
      %547 = vmatmul.bf16.gmra.mxu0 %v523
      %v548 = vpop.f32.mrf.mxu0
      %v549 = vadd.f32 0.0, %v548
      %v550 = vpop.f32.mrf.mxu0
      %v551 = vadd.f32 0.0, %v550
      %552 = vdwg.mxu0
      %553 = vmatpush.bf16.msra.mxu0 0
      %554 = vmatpush.bf16.msra.mxu0 0
      %555 = vmatpush.bf16.msra.mxu0 0
      %556 = vmatpush.bf16.msra.mxu0 0
      %557 = vmatpush.bf16.msra.mxu0 %v516
      %558 = vmatpush.bf16.msra.mxu0 %v513
      %559 = vmatpush.bf16.msra.mxu0 %v510
      %560 = vmatpush.bf16.msra.mxu0 %v507
      %561 = vmatmul.bf16.gmra.mxu0 %v523
      %v562 = vpop.f32.mrf.mxu0
      %v563 = vadd.f32 0.0, %v562
      %v564 = vpop.f32.mrf.mxu0
      %v565 = vadd.f32 0.0, %v564
      %566 = vdwg.mxu0
      %v567 = vadd.f32 %v397, %v535
      %v568 = vadd.f32 %v411, %v549
      %v569 = vadd.f32 %v425, %v563
      %v570 = vadd.f32 %v399, %v537
      %v571 = vadd.f32 %v413, %v551
      %v572 = vadd.f32 %v427, %v565
      %573 = vrot.lane.b32.xlu0 %v199, 65
      %v574 = vpop.permute.xlu0 %573
      %575 = vrot.lane.b32.xlu0 %v202, 65
      %v576 = vpop.permute.xlu0 %575
      %577 = vrot.lane.b32.xlu0 %v205, 65
      %v578 = vpop.permute.xlu0 %577
      %579 = vrot.lane.b32.xlu0 %v208, 65
      %v580 = vpop.permute.xlu0 %579
      %581 = vrot.lane.b32.xlu0 %v211, 65
      %v582 = vpop.permute.xlu0 %581
      %583 = vrot.lane.b32.xlu0 %v214, 65
      %v584 = vpop.permute.xlu0 %583
      %585 = vrot.lane.b32.xlu0 %v217, 65
      %v586 = vpop.permute.xlu0 %585
      %587 = vrot.lane.b32.xlu0 %v220, 65
      %v588 = vpop.permute.xlu0 %587
      %589 = vrot.lane.b32.xlu0 %v200, 65
      %v590 = vpop.permute.xlu0 %589
      %591 = vrot.lane.b32.xlu0 %v203, 65
      %v592 = vpop.permute.xlu0 %591
      %593 = vrot.lane.b32.xlu0 %v206, 65
      %v594 = vpop.permute.xlu0 %593
      %595 = vrot.lane.b32.xlu0 %v209, 65
      %v596 = vpop.permute.xlu0 %595
      %597 = vrot.lane.b32.xlu0 %v212, 65
      %v598 = vpop.permute.xlu0 %597
      %599 = vrot.lane.b32.xlu0 %v215, 65
      %v600 = vpop.permute.xlu0 %599
      %601 = vrot.lane.b32.xlu0 %v218, 65
      %v602 = vpop.permute.xlu0 %601
      %603 = vrot.lane.b32.xlu0 %v221, 65
      %v604 = vpop.permute.xlu0 %603
      %605 = vrot.lane.b32.xlu0 %v201, 65
      %v606 = vpop.permute.xlu0 %605
      %607 = vrot.lane.b32.xlu0 %v204, 65
      %v608 = vpop.permute.xlu0 %607
      %609 = vrot.lane.b32.xlu0 %v207, 65
      %v610 = vpop.permute.xlu0 %609
      %611 = vrot.lane.b32.xlu0 %v210, 65
      %v612 = vpop.permute.xlu0 %611
      %613 = vrot.lane.b32.xlu0 %v213, 65
      %v614 = vpop.permute.xlu0 %613
      %615 = vrot.lane.b32.xlu0 %v216, 65
      %v616 = vpop.permute.xlu0 %615
      %617 = vrot.lane.b32.xlu0 %v219, 65
      %v618 = vpop.permute.xlu0 %617
      %619 = vrot.lane.b32.xlu0 %v222, 65
      %v620 = vpop.permute.xlu0 %619
      %vm621 = vcmp.lt.s32.totalorder %v272, 65
      %v622 = vsel %vm621, %v590, %v606
      %v623 = vsel %vm621, %v592, %v608
      %v624 = vsel %vm621, %v594, %v610
      %v625 = vsel %vm621, %v596, %v612
      %v626 = vsel %vm621, %v598, %v614
      %v627 = vsel %vm621, %v600, %v616
      %v628 = vsel %vm621, %v602, %v618
      %v629 = vsel %vm621, %v604, %v620
      %v630 = vsel %vm621, %v574, %v590
      %v631 = vsel %vm621, %v576, %v592
      %v632 = vsel %vm621, %v578, %v594
      %v633 = vsel %vm621, %v580, %v596
      %v634 = vsel %vm621, %v582, %v598
      %v635 = vsel %vm621, %v584, %v600
      %v636 = vsel %vm621, %v586, %v602
      %v637 = vsel %vm621, %v588, %v604
      %v638 = vsel %vm621, %v606, %v574
      %v639 = vsel %vm621, %v608, %v576
      %v640 = vsel %vm621, %v610, %v578
      %v641 = vsel %vm621, %v612, %v580
      %v642 = vsel %vm621, %v614, %v582
      %v643 = vsel %vm621, %v616, %v584
      %v644 = vsel %vm621, %v618, %v586
      %v645 = vsel %vm621, %v620, %v588
      %v646 = vld [vmem:[%s1] sm:$0xf]
      %v647 = vld [vmem:[%s1 + $0x4] sm:$0xf]
      %v648 = vpack.c.bf16 %v623, %v622
      %v649 = vpack.c.bf16 %v639, %v638
      %v650 = vpack.c.bf16 %v631, %v630
      %v651 = vpack.c.bf16 %v625, %v624
      %v652 = vpack.c.bf16 %v641, %v640
      %v653 = vpack.c.bf16 %v633, %v632
      %v654 = vpack.c.bf16 %v627, %v626
      %v655 = vpack.c.bf16 %v643, %v642
      %v656 = vpack.c.bf16 %v635, %v634
      %v657 = vpack.c.bf16 %v629, %v628
      %v658 = vpack.c.bf16 %v645, %v644
      %v659 = vpack.c.bf16 %v637, %v636
      %660 = vrot.lane.b32.xlu0 %v199, 64
      %v661 = vpop.permute.xlu0 %660
      %662 = vrot.lane.b32.xlu0 %v202, 64
      %v663 = vpop.permute.xlu0 %662
      %664 = vrot.lane.b32.xlu0 %v205, 64
      %v665 = vpop.permute.xlu0 %664
      %666 = vrot.lane.b32.xlu0 %v208, 64
      %v667 = vpop.permute.xlu0 %666
      %668 = vrot.lane.b32.xlu0 %v211, 64
      %v669 = vpop.permute.xlu0 %668
      %670 = vrot.lane.b32.xlu0 %v214, 64
      %v671 = vpop.permute.xlu0 %670
      %672 = vrot.lane.b32.xlu0 %v217, 64
      %v673 = vpop.permute.xlu0 %672
      %674 = vrot.lane.b32.xlu0 %v220, 64
      %v675 = vpop.permute.xlu0 %674
      %676 = vrot.lane.b32.xlu0 %v200, 64
      %v677 = vpop.permute.xlu0 %676
      %678 = vrot.lane.b32.xlu0 %v203, 64
      %v679 = vpop.permute.xlu0 %678
      %680 = vrot.lane.b32.xlu0 %v206, 64
      %v681 = vpop.permute.xlu0 %680
      %682 = vrot.lane.b32.xlu0 %v209, 64
      %v683 = vpop.permute.xlu0 %682
      %684 = vrot.lane.b32.xlu0 %v212, 64
      %v685 = vpop.permute.xlu0 %684
      %686 = vrot.lane.b32.xlu0 %v215, 64
      %v687 = vpop.permute.xlu0 %686
      %688 = vrot.lane.b32.xlu0 %v218, 64
      %v689 = vpop.permute.xlu0 %688
      %690 = vrot.lane.b32.xlu0 %v221, 64
      %v691 = vpop.permute.xlu0 %690
      %692 = vrot.lane.b32.xlu0 %v201, 64
      %v693 = vpop.permute.xlu0 %692
      %694 = vrot.lane.b32.xlu0 %v204, 64
      %v695 = vpop.permute.xlu0 %694
      %696 = vrot.lane.b32.xlu0 %v207, 64
      %v697 = vpop.permute.xlu0 %696
      %698 = vrot.lane.b32.xlu0 %v210, 64
      %v699 = vpop.permute.xlu0 %698
      %700 = vrot.lane.b32.xlu0 %v213, 64
      %v701 = vpop.permute.xlu0 %700
      %702 = vrot.lane.b32.xlu0 %v216, 64
      %v703 = vpop.permute.xlu0 %702
      %704 = vrot.lane.b32.xlu0 %v219, 64
      %v705 = vpop.permute.xlu0 %704
      %706 = vrot.lane.b32.xlu0 %v222, 64
      %v707 = vpop.permute.xlu0 %706
      %vm708 = vcmp.lt.s32.totalorder %v272, 64
      %v709 = vsel %vm708, %v677, %v693
      %v710 = vsel %vm708, %v679, %v695
      %v711 = vsel %vm708, %v681, %v697
      %v712 = vsel %vm708, %v683, %v699
      %v713 = vsel %vm708, %v685, %v701
      %v714 = vsel %vm708, %v687, %v703
      %v715 = vsel %vm708, %v689, %v705
      %v716 = vsel %vm708, %v691, %v707
      %v717 = vsel %vm708, %v661, %v677
      %v718 = vsel %vm708, %v663, %v679
      %v719 = vsel %vm708, %v665, %v681
      %v720 = vsel %vm708, %v667, %v683
      %v721 = vsel %vm708, %v669, %v685
      %v722 = vsel %vm708, %v671, %v687
      %v723 = vsel %vm708, %v673, %v689
      %v724 = vsel %vm708, %v675, %v691
      %v725 = vsel %vm708, %v693, %v661
      %v726 = vsel %vm708, %v695, %v663
      %v727 = vsel %vm708, %v697, %v665
      %v728 = vsel %vm708, %v699, %v667
      %v729 = vsel %vm708, %v701, %v669
      %v730 = vsel %vm708, %v703, %v671
      %v731 = vsel %vm708, %v705, %v673
      %v732 = vsel %vm708, %v707, %v675
      %s733 = scalar_lea.vmem %s1, 8
      %v734 = vld [vmem:[%s733] sm:$0xf]
      %v735 = vld [vmem:[%s733 + $0x4] sm:$0xf]
      %v736 = vpack.c.bf16 %v710, %v709
      %v737 = vpack.c.bf16 %v726, %v725
      %v738 = vpack.c.bf16 %v718, %v717
      %v739 = vpack.c.bf16 %v712, %v711
      %v740 = vpack.c.bf16 %v728, %v727
      %v741 = vpack.c.bf16 %v720, %v719
      %v742 = vpack.c.bf16 %v714, %v713
      %v743 = vpack.c.bf16 %v730, %v729
      %v744 = vpack.c.bf16 %v722, %v721
      %v745 = vpack.c.bf16 %v716, %v715
      %v746 = vpack.c.bf16 %v732, %v731
      %v747 = vpack.c.bf16 %v724, %v723
      %v750 = vunpack.c.l.b16 %v734
      %v751 = vunpack.c.l.b16 %v735
      %v752 = vpack.c.b16 %v751, %v750
      %v754 = vsel %vm333, %v752, 0
      %756 = vmatpush.bf16.msra.mxu0 0
      %757 = vmatpush.bf16.msra.mxu0 0
      %758 = vmatpush.bf16.msra.mxu0 0
      %759 = vmatpush.bf16.msra.mxu0 0
      %760 = vmatpush.bf16.msra.mxu0 %v745
      %761 = vmatpush.bf16.msra.mxu0 %v742
      %762 = vmatpush.bf16.msra.mxu0 %v739
      %763 = vmatpush.bf16.msra.mxu0 %v736
      %764 = vmatmul.bf16.gmra.mxu0 %v754
      %v765 = vpop.f32.mrf.mxu0
      %v766 = vadd.f32 0.0, %v765
      %v767 = vpop.f32.mrf.mxu0
      %v768 = vadd.f32 0.0, %v767
      %769 = vdwg.mxu0
      %770 = vmatpush.bf16.msra.mxu0 0
      %771 = vmatpush.bf16.msra.mxu0 0
      %772 = vmatpush.bf16.msra.mxu0 0
      %773 = vmatpush.bf16.msra.mxu0 0
      %774 = vmatpush.bf16.msra.mxu0 %v746
      %775 = vmatpush.bf16.msra.mxu0 %v743
      %776 = vmatpush.bf16.msra.mxu0 %v740
      %777 = vmatpush.bf16.msra.mxu0 %v737
      %778 = vmatmul.bf16.gmra.mxu0 %v754
      %v779 = vpop.f32.mrf.mxu0
      %v780 = vadd.f32 0.0, %v779
      %v781 = vpop.f32.mrf.mxu0
      %v782 = vadd.f32 0.0, %v781
      %783 = vdwg.mxu0
      %784 = vmatpush.bf16.msra.mxu0 0
      %785 = vmatpush.bf16.msra.mxu0 0
      %786 = vmatpush.bf16.msra.mxu0 0
      %787 = vmatpush.bf16.msra.mxu0 0
      %788 = vmatpush.bf16.msra.mxu0 %v747
      %789 = vmatpush.bf16.msra.mxu0 %v744
      %790 = vmatpush.bf16.msra.mxu0 %v741
      %791 = vmatpush.bf16.msra.mxu0 %v738
      %792 = vmatmul.bf16.gmra.mxu0 %v754
      %v793 = vpop.f32.mrf.mxu0
      %v794 = vadd.f32 0.0, %v793
      %v795 = vpop.f32.mrf.mxu0
      %v796 = vadd.f32 0.0, %v795
      %797 = vdwg.mxu0
      %v800 = vunpack.c.l.b16 %v646
      %v801 = vunpack.c.l.b16 %v647
      %v802 = vpack.c.b16 %v801, %v800
      %v804 = vsel %vm333, %v802, 0
      %806 = vmatpush.bf16.msra.mxu0 0
      %807 = vmatpush.bf16.msra.mxu0 0
      %808 = vmatpush.bf16.msra.mxu0 0
      %809 = vmatpush.bf16.msra.mxu0 0
      %810 = vmatpush.bf16.msra.mxu0 %v657
      %811 = vmatpush.bf16.msra.mxu0 %v654
      %812 = vmatpush.bf16.msra.mxu0 %v651
      %813 = vmatpush.bf16.msra.mxu0 %v648
      %814 = vmatmul.bf16.gmra.mxu0 %v804
      %v815 = vpop.f32.mrf.mxu0
      %v816 = vadd.f32 %v766, %v815
      %v817 = vpop.f32.mrf.mxu0
      %v818 = vadd.f32 %v768, %v817
      %819 = vdwg.mxu0
      %820 = vmatpush.bf16.msra.mxu0 0
      %821 = vmatpush.bf16.msra.mxu0 0
      %822 = vmatpush.bf16.msra.mxu0 0
      %823 = vmatpush.bf16.msra.mxu0 0
      %824 = vmatpush.bf16.msra.mxu0 %v658
      %825 = vmatpush.bf16.msra.mxu0 %v655
      %826 = vmatpush.bf16.msra.mxu0 %v652
      %827 = vmatpush.bf16.msra.mxu0 %v649
      %828 = vmatmul.bf16.gmra.mxu0 %v804
      %v829 = vpop.f32.mrf.mxu0
      %v830 = vadd.f32 %v780, %v829
      %v831 = vpop.f32.mrf.mxu0
      %v832 = vadd.f32 %v782, %v831
      %833 = vdwg.mxu0
      %834 = vmatpush.bf16.msra.mxu0 0
      %835 = vmatpush.bf16.msra.mxu0 0
      %836 = vmatpush.bf16.msra.mxu0 0
      %837 = vmatpush.bf16.msra.mxu0 0
      %838 = vmatpush.bf16.msra.mxu0 %v659
      %839 = vmatpush.bf16.msra.mxu0 %v656
      %840 = vmatpush.bf16.msra.mxu0 %v653
      %841 = vmatpush.bf16.msra.mxu0 %v650
      %842 = vmatmul.bf16.gmra.mxu0 %v804
      %v843 = vpop.f32.mrf.mxu0
      %v844 = vadd.f32 %v794, %v843
      %v845 = vpop.f32.mrf.mxu0
      %v846 = vadd.f32 %v796, %v845
      %847 = vdwg.mxu0
      %848 = vrot.lane.b32.xlu0 %v199, 63
      %v849 = vpop.permute.xlu0 %848
      %850 = vrot.lane.b32.xlu0 %v202, 63
      %v851 = vpop.permute.xlu0 %850
      %852 = vrot.lane.b32.xlu0 %v205, 63
      %v853 = vpop.permute.xlu0 %852
      %854 = vrot.lane.b32.xlu0 %v208, 63
      %v855 = vpop.permute.xlu0 %854
      %856 = vrot.lane.b32.xlu0 %v211, 63
      %v857 = vpop.permute.xlu0 %856
      %858 = vrot.lane.b32.xlu0 %v214, 63
      %v859 = vpop.permute.xlu0 %858
      %860 = vrot.lane.b32.xlu0 %v217, 63
      %v861 = vpop.permute.xlu0 %860
      %862 = vrot.lane.b32.xlu0 %v220, 63
      %v863 = vpop.permute.xlu0 %862
      %864 = vrot.lane.b32.xlu0 %v200, 63
      %v865 = vpop.permute.xlu0 %864
      %866 = vrot.lane.b32.xlu0 %v203, 63
      %v867 = vpop.permute.xlu0 %866
      %868 = vrot.lane.b32.xlu0 %v206, 63
      %v869 = vpop.permute.xlu0 %868
      %870 = vrot.lane.b32.xlu0 %v209, 63
      %v871 = vpop.permute.xlu0 %870
      %872 = vrot.lane.b32.xlu0 %v212, 63
      %v873 = vpop.permute.xlu0 %872
      %874 = vrot.lane.b32.xlu0 %v215, 63
      %v875 = vpop.permute.xlu0 %874
      %876 = vrot.lane.b32.xlu0 %v218, 63
      %v877 = vpop.permute.xlu0 %876
      %878 = vrot.lane.b32.xlu0 %v221, 63
      %v879 = vpop.permute.xlu0 %878
      %880 = vrot.lane.b32.xlu0 %v201, 63
      %v881 = vpop.permute.xlu0 %880
      %882 = vrot.lane.b32.xlu0 %v204, 63
      %v883 = vpop.permute.xlu0 %882
      %884 = vrot.lane.b32.xlu0 %v207, 63
      %v885 = vpop.permute.xlu0 %884
      %886 = vrot.lane.b32.xlu0 %v210, 63
      %v887 = vpop.permute.xlu0 %886
      %888 = vrot.lane.b32.xlu0 %v213, 63
      %v889 = vpop.permute.xlu0 %888
      %890 = vrot.lane.b32.xlu0 %v216, 63
      %v891 = vpop.permute.xlu0 %890
      %892 = vrot.lane.b32.xlu0 %v219, 63
      %v893 = vpop.permute.xlu0 %892
      %894 = vrot.lane.b32.xlu0 %v222, 63
      %v895 = vpop.permute.xlu0 %894
      %vm896 = vcmp.lt.s32.totalorder %v272, 63
      %v897 = vsel %vm896, %v865, %v881
      %v898 = vsel %vm896, %v867, %v883
      %v899 = vsel %vm896, %v869, %v885
      %v900 = vsel %vm896, %v871, %v887
      %v901 = vsel %vm896, %v873, %v889
      %v902 = vsel %vm896, %v875, %v891
      %v903 = vsel %vm896, %v877, %v893
      %v904 = vsel %vm896, %v879, %v895
      %v905 = vsel %vm896, %v849, %v865
      %v906 = vsel %vm896, %v851, %v867
      %v907 = vsel %vm896, %v853, %v869
      %v908 = vsel %vm896, %v855, %v871
      %v909 = vsel %vm896, %v857, %v873
      %v910 = vsel %vm896, %v859, %v875
      %v911 = vsel %vm896, %v861, %v877
      %v912 = vsel %vm896, %v863, %v879
      %v913 = vsel %vm896, %v881, %v849
      %v914 = vsel %vm896, %v883, %v851
      %v915 = vsel %vm896, %v885, %v853
      %v916 = vsel %vm896, %v887, %v855
      %v917 = vsel %vm896, %v889, %v857
      %v918 = vsel %vm896, %v891, %v859
      %v919 = vsel %vm896, %v893, %v861
      %v920 = vsel %vm896, %v895, %v863
      %s921 = scalar_lea.vmem %s1, 16
      %v922 = vld [vmem:[%s921] sm:$0xf]
      %v923 = vld [vmem:[%s921 + $0x4] sm:$0xf]
      %v924 = vpack.c.bf16 %v898, %v897
      %v925 = vpack.c.bf16 %v914, %v913
      %v926 = vpack.c.bf16 %v906, %v905
      %v927 = vpack.c.bf16 %v900, %v899
      %v928 = vpack.c.bf16 %v916, %v915
      %v929 = vpack.c.bf16 %v908, %v907
      %v930 = vpack.c.bf16 %v902, %v901
      %v931 = vpack.c.bf16 %v918, %v917
      %v932 = vpack.c.bf16 %v910, %v909
      %v933 = vpack.c.bf16 %v904, %v903
      %v934 = vpack.c.bf16 %v920, %v919
      %v935 = vpack.c.bf16 %v912, %v911
      %v938 = vunpack.c.l.b16 %v922
      %v939 = vunpack.c.l.b16 %v923
      %v940 = vpack.c.b16 %v939, %v938
      %v942 = vsel %vm333, %v940, 0
      %944 = vmatpush.bf16.msra.mxu0 0
      %945 = vmatpush.bf16.msra.mxu0 0
      %946 = vmatpush.bf16.msra.mxu0 0
      %947 = vmatpush.bf16.msra.mxu0 0
      %948 = vmatpush.bf16.msra.mxu0 %v933
      %949 = vmatpush.bf16.msra.mxu0 %v930
      %950 = vmatpush.bf16.msra.mxu0 %v927
      %951 = vmatpush.bf16.msra.mxu0 %v924
      %952 = vmatmul.bf16.gmra.mxu0 %v942
      %v953 = vpop.f32.mrf.mxu0
      %v954 = vadd.f32 0.0, %v953
      %v955 = vpop.f32.mrf.mxu0
      %v956 = vadd.f32 0.0, %v955
      %957 = vdwg.mxu0
      %958 = vmatpush.bf16.msra.mxu0 0
      %959 = vmatpush.bf16.msra.mxu0 0
      %960 = vmatpush.bf16.msra.mxu0 0
      %961 = vmatpush.bf16.msra.mxu0 0
      %962 = vmatpush.bf16.msra.mxu0 %v934
      %963 = vmatpush.bf16.msra.mxu0 %v931
      %964 = vmatpush.bf16.msra.mxu0 %v928
      %965 = vmatpush.bf16.msra.mxu0 %v925
      %966 = vmatmul.bf16.gmra.mxu0 %v942
      %v967 = vpop.f32.mrf.mxu0
      %v968 = vadd.f32 0.0, %v967
      %v969 = vpop.f32.mrf.mxu0
      %v970 = vadd.f32 0.0, %v969
      %971 = vdwg.mxu0
      %972 = vmatpush.bf16.msra.mxu0 0
      %973 = vmatpush.bf16.msra.mxu0 0
      %974 = vmatpush.bf16.msra.mxu0 0
      %975 = vmatpush.bf16.msra.mxu0 0
      %976 = vmatpush.bf16.msra.mxu0 %v935
      %977 = vmatpush.bf16.msra.mxu0 %v932
      %978 = vmatpush.bf16.msra.mxu0 %v929
      %979 = vmatpush.bf16.msra.mxu0 %v926
      %980 = vmatmul.bf16.gmra.mxu0 %v942
      %v981 = vpop.f32.mrf.mxu0
      %v982 = vadd.f32 0.0, %v981
      %v983 = vpop.f32.mrf.mxu0
      %v984 = vadd.f32 0.0, %v983
      %985 = vdwg.mxu0
      %v986 = vadd.f32 %v816, %v954
      %v987 = vadd.f32 %v830, %v968
      %v988 = vadd.f32 %v844, %v982
      %v989 = vadd.f32 %v818, %v956
      %v990 = vadd.f32 %v832, %v970
      %v991 = vadd.f32 %v846, %v984
      %v992 = vadd.s32 %v272, 128
      %v993 = vadd.s32 %v272, 256
      %vm994 = vcmp.ge.s32.totalorder %v272, 192
      %vm995 = vcmp.ge.s32.totalorder %v992, 192
      %vm996 = vcmp.ge.s32.totalorder %v993, 192
      %v997 = vsel %vm994, %v986, 0.0
      %v998 = vsel %vm995, %v987, 0.0
      %v999 = vsel %vm996, %v988, 0.0
      %v1000 = vsel %vm994, %v989, 0.0
      %v1001 = vsel %vm995, %v990, 0.0
      %v1002 = vsel %vm996, %v991, 0.0
      %v1003 = vadd.f32 %v567, %v997
      %v1004 = vadd.f32 %v568, %v998
      %v1005 = vadd.f32 %v569, %v999
      %v1006 = vadd.f32 %v570, %v1000
      %v1007 = vadd.f32 %v571, %v1001
      %v1008 = vadd.f32 %v572, %v1002
      %v1009 = vld [vmem:[%s2] sm:$0xff]
      %v1010 = vld [vmem:[%s2 + $0x8] sm:$0xff]
      %v1011 = vld [vmem:[%s3] sm:$0x7]
      %1013 = vset.pattern.permute.xlu0 0
      %1014 = vperm.xlu0 %1013, %v1009
      %v1015 = vpop.permute.xlu0 %1014
      %1018 = vset.pattern.permute.xlu0 0
      %1019 = vperm.xlu0 %1018, %v1010
      %v1020 = vpop.permute.xlu0 %1019
      %v1022 = vadd.f32 %v1003, %v1015
      %v1023 = vadd.f32 %v1004, %v1015
      %v1024 = vadd.f32 %v1005, %v1015
      %v1025 = vadd.f32 %v1006, %v1020
      %v1026 = vadd.f32 %v1007, %v1020
      %v1027 = vadd.f32 %v1008, %v1020
      %v1029 = vperm.slane %v1011, 0
      %v1030 = vperm.slane %v1011, 1
      %v1031 = vperm.slane %v1011, 2
      %v1035 = vmul.f32 %v1022, %v1029
      %v1036 = vmul.f32 %v1023, %v1030
      %v1037 = vmul.f32 %v1024, %v1031
      %v1038 = vmul.f32 %v1025, %v1029
      %v1039 = vmul.f32 %v1026, %v1030
      %v1040 = vmul.f32 %v1027, %v1031
      %v1041 = vadd.f32 %v1035, %v1036
      %v1042 = vadd.f32 %v1041, %v1037
      %1043 = vadd.xlane.f32.xlu0 %v1042
      %v1044 = vpop.xlane.xlu0 %1043
      %v1045 = vadd.f32 %v1038, %v1039
      %v1046 = vadd.f32 %v1045, %v1040
      %1047 = vadd.xlane.f32.xlu0 %v1046
      %v1048 = vpop.xlane.xlu0 %1047
      %v1049 = vmul.f32 %v1044, 0.0036764706
      %v1050 = vmul.f32 %v1048, 0.0036764706
      %v1051 = vmul.f32 %v1035, %v1035
      %v1052 = vmul.f32 %v1036, %v1036
      %v1053 = vmul.f32 %v1037, %v1037
      %v1054 = vmul.f32 %v1038, %v1038
      %v1055 = vmul.f32 %v1039, %v1039
      %v1056 = vmul.f32 %v1040, %v1040
      %v1057 = vadd.f32 %v1051, %v1052
      %v1058 = vadd.f32 %v1057, %v1053
      %1059 = vadd.xlane.f32.xlu0 %v1058
      %v1060 = vpop.xlane.xlu0 %1059
      %v1061 = vadd.f32 %v1054, %v1055
      %v1062 = vadd.f32 %v1061, %v1056
      %1063 = vadd.xlane.f32.xlu0 %v1062
      %v1064 = vpop.xlane.xlu0 %1063
      %v1065 = vmul.f32 %v1060, 0.0036764706
      %v1066 = vmul.f32 %v1064, 0.0036764706
      %v1067 = vmul.f32 %v1049, %v1049
      %v1068 = vmul.f32 %v1050, %v1050
      %v1069 = vsub.f32 %v1065, %v1067
      %v1070 = vsub.f32 %v1066, %v1068
      %v1071 = vadd.f32 %v1069, 1e-05
      %v1072 = vadd.f32 %v1070, 1e-05
      %v1073 = vrsqrt.pop %v1071
      %v1074 = vmul.f32 %v1073, %v1071
      %v1075 = vmul.f32 %v1074, %v1073
      %v1076 = vmul.f32 0.5, %v1075
      %v1077 = vsub.f32 1.5, %v1076
      %v1078 = vmul.f32 %v1073, %v1077
      %vm1079 = vweird.f32 %v1071
      %vm1080 = vweird.f32 %v1073
      %vm1081 = vmor %vm1079, %vm1080
      %v1082 = vsel %vm1081, %v1073, %v1078
      %v1083 = vrsqrt.pop %v1072
      %v1084 = vmul.f32 %v1083, %v1072
      %v1085 = vmul.f32 %v1084, %v1083
      %v1086 = vmul.f32 0.5, %v1085
      %v1087 = vsub.f32 1.5, %v1086
      %v1088 = vmul.f32 %v1083, %v1087
      %vm1089 = vweird.f32 %v1072
      %vm1090 = vweird.f32 %v1083
      %vm1091 = vmor %vm1089, %vm1090
      %v1092 = vsel %vm1091, %v1083, %v1088
      %v1093 = vmul.f32 %v1009, %v1082
      %v1094 = vmul.f32 %v1010, %v1092
      %v1095 = vmul.f32 %v1049, %v1093
      %v1096 = vmul.f32 %v1050, %v1094
      %1099 = vrot.lane.b32.xlu0 %v1095, 1
      %v1100 = vpop.permute.xlu0 %1099
      %1101 = vrot.lane.b32.xlu0 %v1096, 1
      %v1102 = vpop.permute.xlu0 %1101
      %v1105 = vsub.f32 %v1009, %v1100
      %v1106 = vsub.f32 %v1010, %v1102
      %1108 = vset.pattern.permute.xlu0 1
      %1109 = vperm.xlu0 %1108, %v1093
      %v1110 = vpop.permute.xlu0 %1109
      %1113 = vset.pattern.permute.xlu0 1
      %1114 = vperm.xlu0 %1113, %v1094
      %v1115 = vpop.permute.xlu0 %1114
      %v1117 = vmul.f32 %v1022, %v1110
      %v1118 = vmul.f32 %v1023, %v1110
      %v1119 = vmul.f32 %v1024, %v1110
      %v1120 = vmul.f32 %v1025, %v1115
      %v1121 = vmul.f32 %v1026, %v1115
      %v1122 = vmul.f32 %v1027, %v1115
      %1124 = vset.pattern.permute.xlu0 2
      %1125 = vperm.xlu0 %1124, %v1105
      %v1126 = vpop.permute.xlu0 %1125
      %1129 = vset.pattern.permute.xlu0 2
      %1130 = vperm.xlu0 %1129, %v1106
      %v1131 = vpop.permute.xlu0 %1130
      %v1133 = vadd.f32 %v1117, %v1126
      %v1134 = vadd.f32 %v1118, %v1126
      %v1135 = vadd.f32 %v1119, %v1126
      %v1136 = vadd.f32 %v1120, %v1131
      %v1137 = vadd.f32 %v1121, %v1131
      %v1138 = vadd.f32 %v1122, %v1131
      %vm1139 = vcmp.ge.f32.partialorder %v1133, 0.0
      %vm1140 = vcmp.ge.f32.partialorder %v1134, 0.0
      %vm1141 = vcmp.ge.f32.partialorder %v1135, 0.0
      %vm1142 = vcmp.ge.f32.partialorder %v1136, 0.0
      %vm1143 = vcmp.ge.f32.partialorder %v1137, 0.0
      %vm1144 = vcmp.ge.f32.partialorder %v1138, 0.0
      %1145 = vset.pattern.permute.xlu0 3
      %1146 = vperm.xlu0 %1145, %v1009
      %v1147 = vpop.permute.xlu0 %1146
      %1149 = vset.pattern.permute.xlu0 3
      %1150 = vperm.xlu0 %1149, %v1010
      %v1151 = vpop.permute.xlu0 %1150
      %v1153 = vmul.f32 %v1147, %v1133
      %v1154 = vmul.f32 %v1147, %v1134
      %v1155 = vmul.f32 %v1147, %v1135
      %v1156 = vmul.f32 %v1151, %v1136
      %v1157 = vmul.f32 %v1151, %v1137
      %v1158 = vmul.f32 %v1151, %v1138
      %v1159 = vsel %vm1139, %v1133, %v1153
      %v1160 = vsel %vm1140, %v1134, %v1154
      %v1161 = vsel %vm1141, %v1135, %v1155
      %v1162 = vsel %vm1142, %v1136, %v1156
      %v1163 = vsel %vm1143, %v1137, %v1157
      %v1164 = vsel %vm1144, %v1138, %v1158
      %v1165 = vmul.f32 %v1159, %v1029
      %v1166 = vmul.f32 %v1160, %v1030
      %v1167 = vmul.f32 %v1161, %v1031
      %v1168 = vmul.f32 %v1162, %v1029
      %v1169 = vmul.f32 %v1163, %v1030
      %v1170 = vmul.f32 %v1164, %v1031
      %1171 = vst [vmem:[%s197] sm:$0xff] %v1165
      %1172 = vst [vmem:[%s197 + $0x8] sm:$0xff] %v1166
      %1173 = vst [vmem:[%s197 + $0x10] sm:$0xff] %v1167
      %1174 = vst [vmem:[%s197 + $0x18] sm:$0xff] %v1168
      %1175 = vst [vmem:[%s197 + $0x20] sm:$0xff] %v1169
      %1176 = vst [vmem:[%s197 + $0x28] sm:$0xff] %v1170
      %p1177 = scmp.lt.s32.totalorder %s15, 1
      %s1178 = scalar_select %p1177, %s15, 1
      %s1179 = smul.addr %s1178, 6
      %s1180 = smul.addr %s1179, 8
      %s1181 = scalar_lea.vmem %s4, %s1180
      // Predicated region
      $region37: #{dilated_dense_net.7} parent=35 // pred_check
        %p1182 = pneg %p122
      $region38: #{dilated_dense_net.7} parent=35 // pred_check_branch
        %1184 = sbr.rel (%p1182) target = $region40
      $region39: #{dilated_dense_net.7} parent=35 // pred_region
        _
      $region40: #{dilated_dense_net.7} parent=35 // pred_fallthru
        _
    $region36: #{dilated_dense_net.7} parent=5 // pred_fallthru
      _
    %p1185 = scmp.le.s32.totalorder 2, %s10
    // Predicated region
    $region41: #{dilated_dense_net.7} parent=5 // pred_check
      %p1186 = pneg %p1185
    $region42: #{dilated_dense_net.7} parent=5 // pred_check_branch
      %1188 = sbr.rel (%p1186) target = $region44
    $region43: #{dilated_dense_net.7} parent=5 // pred_region
      %s1189 = ssub.s32 %s10, 2
      // Predicated region
      $region45: #{dilated_dense_net.7} parent=43 // pred_check
        %p1190 = pneg %p128
      $region46: #{dilated_dense_net.7} parent=43 // pred_check_branch
        %1192 = sbr.rel (%p1190) target = $region48
      $region47: #{dilated_dense_net.7} parent=43 // pred_region
        %p1193 = scmp.lt.s32.totalorder %s16, 1
        %s1194 = scalar_select %p1193, %s16, 1
        %s1195 = smul.addr %s1194, 6
        %s1196 = smul.addr %s1195, 8
        %s1197 = scalar_lea.vmem %s4, %s1196
      $region48: #{dilated_dense_net.7} parent=43 // pred_fallthru
        _
    $region44: #{dilated_dense_net.7} parent=5 // pred_fallthru
      _
  $region6: #{dilated_dense_net.7} parent=0 // loop_footer
    %s14 = sadd.s32 1, %s10
  $region7: #{dilated_dense_net.7} parent=0 // loop_footer_branch
    %9 = sbr.rel target = $region3
  $region8: #{dilated_dense_net.7} parent=0 // loop_exit
    _

</llo_original>
